<compile_context>
chip_gen: v6e
topology: v6e:2x2x1
jax: 0.10.0
libtpu: 0.0.40
codegen_flags: <defaults>
</compile_context>

<pallas_src>
import functools
import math

import jax
import jax.numpy as jnp
from jax import lax
from jax.experimental import pallas as pl
from jax.experimental.pallas import tpu as pltpu


# ----------------------------- in-kernel helpers -----------------------------

def _layernorm(x, gamma, beta, eps=1e-5):
    # x: (T, C) float32; gamma/beta: (1, C).  Normalizes over the channel axis,
    # exactly what TimeLastLayerNorm does on (N, C, T) inputs.
    mu = jnp.mean(x, axis=-1, keepdims=True)
    xc = x - mu
    var = jnp.mean(xc * xc, axis=-1, keepdims=True)
    return xc * lax.rsqrt(var + eps) * gamma + beta


def _sdpa_heads(q, k, v, w_o_h, b_o, scale):
    """Scaled dot-product attention with heads as a leading batch dim.

    q: (H, T, Dh), k/v: (H, S, Dh), w_o_h: (H, Dh, C), b_o: (1, C) -> (T, C) f32.
    """
    # scores: batched over heads, contraction on the last dims (no materialized
    # transpose of K).
    s = jnp.einsum("htd,hsd->hts", q * scale, k,
                   preferred_element_type=jnp.float32)               # (H, T, S)
    s = s - jnp.max(s, axis=-1, keepdims=True)
    p = jnp.exp(s)
    # divide -> EUP reciprocal (otherwise-idle slot)
    p = p * pl.reciprocal(jnp.sum(p, axis=-1, keepdims=True), approx=True)
    o = jnp.einsum("hts,hsd->htd", p, v,
                   preferred_element_type=jnp.float32)               # (H, T, Dh)
    # Fold the output projection per head and accumulate over heads
    # instead of a lane-axis concat followed by one big dot.
    oc = jnp.einsum("htd,hdc->htc", o, w_o_h,
                    preferred_element_type=jnp.float32)              # (H, T, C)
    return jnp.sum(oc, axis=0) + b_o                                 # (T, C)


def _self_attention(x, w_qkv_h, b_qkv_h, w_o_h, b_o, num_heads):
    # x: (T, C); w_qkv_h: (H, C, 3*Dh); b_qkv_h: (H, 1, 3*Dh)
    T, C = x.shape
    H = num_heads
    Dh = C // H
    x_b = jnp.broadcast_to(x[None], (H, T, C))
    # One fused QKV projection (single batched MXU call + single bias add).
    qkv = jnp.einsum("htc,hce->hte", x_b, w_qkv_h,
                     preferred_element_type=jnp.float32) + b_qkv_h   # (H, T, 3*Dh)
    q, k, v = qkv[..., :Dh], qkv[..., Dh:2 * Dh], qkv[..., 2 * Dh:]
    return _sdpa_heads(q, k, v, w_o_h, b_o, 1.0 / math.sqrt(Dh))


def _cross_attention(x, cross, w_q_h, w_kv_h, b_qkv_h, w_o_h, b_o, num_heads):
    # x: (T, C); cross: (S, C); w_q_h: (H, C, Dh); w_kv_h: (H, C, 2*Dh);
    # b_qkv_h: (H, 1, 3*Dh) with layout [q | k | v] along the last dim.
    T, C = x.shape
    S = cross.shape[0]
    H = num_heads
    Dh = C // H
    x_b = jnp.broadcast_to(x[None], (H, T, C))
    c_b = jnp.broadcast_to(cross[None], (H, S, C))
    q = jnp.einsum("htc,hcd->htd", x_b, w_q_h,
                   preferred_element_type=jnp.float32) + b_qkv_h[..., :Dh]
    # Fused KV projection (one batched dot + one bias add).
    kv = jnp.einsum("hsc,hce->hse", c_b, w_kv_h,
                    preferred_element_type=jnp.float32) + b_qkv_h[..., Dh:]
    k, v = kv[..., :Dh], kv[..., Dh:]
    return _sdpa_heads(q, k, v, w_o_h, b_o, 1.0 / math.sqrt(Dh))


# Row indices inside the packed (9, C) vector slab.
(_V_SELF_OUT_B, _V_N1G, _V_N1B, _V_CROSS_OUT_B, _V_N2G, _V_N2B,
 _V_FF_B2, _V_N3G, _V_N3B) = range(9)
_VEC_NAMES = ("self_out_b", "norm1_g", "norm1_b", "cross_out_b", "norm2_g",
              "norm2_b", "ff_b2", "norm3_g", "norm3_b")


# --------------------------------- kernel ------------------------------------

def _decoder_layer_kernel(num_heads,
                          x_ref, cross_ref,
                          wqkv_s_ref, bqkv_s_ref, wo_s_ref,
                          wq_c_ref, wkv_c_ref, bqkv_c_ref, wo_c_ref,
                          w1_ref, b1_ref, w2_ref,
                          vecs_ref,
                          out_ref):
    x = x_ref[0]          # (T, C) bf16
    cr = cross_ref[0]     # (S, C) bf16

    def vec(i):
        return vecs_ref[i:i + 1, :]                                   # (1, C) f32

    # self-attention + residual + norm1
    attn = _self_attention(x, wqkv_s_ref[...], bqkv_s_ref[...],
                           wo_s_ref[...], vec(_V_SELF_OUT_B), num_heads)
    x = _layernorm(x.astype(jnp.float32) + attn, vec(_V_N1G), vec(_V_N1B))

    # cross-attention + residual + norm2
    attn = _cross_attention(x, cr, wq_c_ref[...], wkv_c_ref[...],
                            bqkv_c_ref[...], wo_c_ref[...],
                            vec(_V_CROSS_OUT_B), num_heads)
    x = _layernorm(x + attn, vec(_V_N2G), vec(_V_N2B))

    # feed-forward + residual + norm3 (intermediates kept in f32)
    h = jnp.maximum(
        jnp.dot(x, w1_ref[...], preferred_element_type=jnp.float32) + b1_ref[...],
        0.0)
    ff = jnp.dot(h, w2_ref[...], preferred_element_type=jnp.float32) + vec(_V_FF_B2)
    x = _layernorm(x + ff, vec(_V_N3G), vec(_V_N3B))

    # TODO(synk): output stores are lane-masked since C=32 < 128; for larger
    # models pad C to 128 (masking layernorm stats) or emit a lane-dense slab.
    out_ref[0] = x.astype(out_ref.dtype)


# --------------------------------- wrapper -----------------------------------

def decoder_layer_pallas(x_nct, cross_nct, params, num_heads,
                         weight_dtype=jnp.bfloat16):
    """x_nct: (N, C, T), cross_nct: (N, C, S) — PyTorch layout.  Returns (N, C, T)."""
    N, C, T = x_nct.shape
    S = cross_nct.shape[2]
    H = num_heads
    Dh = C // H
    f32 = jnp.float32

    # TODO(synk): at realistic T/C, fold these transposes into the kernel
    # (read (N, C, T) blocks + in-kernel einshape) to avoid an extra HBM pass.
    x = jnp.transpose(x_nct, (0, 2, 1)).astype(weight_dtype)        # (N, T, C)
    cr = jnp.transpose(cross_nct, (0, 2, 1)).astype(weight_dtype)   # (N, S, C)

    def per_head_in(w):
        # torch (C_out, C_in) -> (H, C_in, Dh) so x @ w.T == batched x @ w_h
        c_out, c_in = w.shape
        d = c_out // H
        return jnp.transpose(w.T.reshape(c_in, H, d), (1, 0, 2))

    def per_head_b(b):
        return b.reshape(H, 1, b.shape[0] // H)

    siw, sib = params["self_in_w"], params["self_in_b"]
    ciw, cib = params["cross_in_w"], params["cross_in_b"]

    # self-attention: fused per-head QKV weight/bias
    w_qkv_s = jnp.concatenate([per_head_in(siw[0 * C:1 * C]),
                               per_head_in(siw[1 * C:2 * C]),
                               per_head_in(siw[2 * C:3 * C])], axis=-1).astype(weight_dtype)
    b_qkv_s = jnp.concatenate([per_head_b(sib[0 * C:1 * C]),
                               per_head_b(sib[1 * C:2 * C]),
                               per_head_b(sib[2 * C:3 * C])], axis=-1).astype(f32)
    w_o_s = params["self_out_w"].T.reshape(H, Dh, C).astype(weight_dtype)

    # cross-attention: per-head Q weight + fused per-head KV weight, fused bias
    w_q_c = per_head_in(ciw[0 * C:1 * C]).astype(weight_dtype)
    w_kv_c = jnp.concatenate([per_head_in(ciw[1 * C:2 * C]),
                              per_head_in(ciw[2 * C:3 * C])], axis=-1).astype(weight_dtype)
    b_qkv_c = jnp.concatenate([per_head_b(cib[0 * C:1 * C]),
                               per_head_b(cib[1 * C:2 * C]),
                               per_head_b(cib[2 * C:3 * C])], axis=-1).astype(f32)
    w_o_c = params["cross_out_w"].T.reshape(H, Dh, C).astype(weight_dtype)

    # All nine (C,) bias / layernorm vectors packed into one (9, C) slab.
    vecs = jnp.stack([params[k].astype(f32) for k in _VEC_NAMES], axis=0)

    kargs = (
        x, cr,
        w_qkv_s, b_qkv_s, w_o_s,
        w_q_c, w_kv_c, b_qkv_c, w_o_c,
        params["ff_w1"].T.astype(weight_dtype),
        params["ff_b1"].reshape(1, -1).astype(f32),
        params["ff_w2"].T.astype(weight_dtype),
        vecs,
    )

    def full_spec(a):
        ndim = a.ndim
        return pl.BlockSpec(a.shape, lambda n, _nd=ndim: (0,) * _nd)

    # TODO(synk): per-batch (1, T, C) blocks are tiny at these shapes; when
    # scaling up, pack several batch elements per block (>=128 token rows) while
    # keeping >=2 "parallel" grid steps so both v7x TensorCores stay busy, and
    # set vmem_limit_bytes for the 64 MiB v7x / 16 MiB default v5e budgets.
    in_specs = [
        pl.BlockSpec((1, T, C), lambda n: (n, 0, 0)),   # x (per-batch block)
        pl.BlockSpec((1, S, C), lambda n: (n, 0, 0)),   # cross (per-batch block)
    ] + [full_spec(a) for a in kargs[2:]]

    out = pl.pallas_call(
        functools.partial(_decoder_layer_kernel, num_heads),
        out_shape=jax.ShapeDtypeStruct((N, T, C), jnp.float32),
        grid=(N,),
        in_specs=in_specs,
        out_specs=pl.BlockSpec((1, T, C), lambda n: (n, 0, 0)),
        compiler_params=pltpu.CompilerParams(dimension_semantics=("parallel",)),
    )(*kargs)

    return jnp.transpose(out, (0, 2, 1))                # back to (N, C, T)


# ------------------------------ pure-JAX reference ----------------------------

def decoder_layer_ref(x_nct, cross_nct, params, num_heads):
    x = jnp.transpose(x_nct, (0, 2, 1)).astype(jnp.float32)
    cr = jnp.transpose(cross_nct, (0, 2, 1)).astype(jnp.float32)

    def mha(qin, kvin, w_in, b_in, w_out, b_out):
        C = qin.shape[-1]
        Dh = C // num_heads
        q = qin @ w_in[:C].T + b_in[:C]
        k = kvin @ w_in[C:2 * C].T + b_in[C:2 * C]
        v = kvin @ w_in[2 * C:].T + b_in[2 * C:]
        n, t, _ = q.shape
        s_len = k.shape[1]
        q = q.reshape(n, t, num_heads, Dh).transpose(0, 2, 1, 3)
        k = k.reshape(n, s_len, num_heads, Dh).transpose(0, 2, 1, 3)
        v = v.reshape(n, s_len, num_heads, Dh).transpose(0, 2, 1, 3)
        s = jnp.einsum("nhtd,nhsd->nhts", q, k) / math.sqrt(Dh)
        p = jax.nn.softmax(s, axis=-1)
        o = jnp.einsum("nhts,nhsd->nhtd", p, v)
        o = o.transpose(0, 2, 1, 3).reshape(n, t, C)
        return o @ w_out.T + b_out

    def ln(z, g, b):
        mu = z.mean(-1, keepdims=True)
        var = ((z - mu) ** 2).mean(-1, keepdims=True)
        return (z - mu) / jnp.sqrt(var + 1e-5) * g + b

    a = mha(x, x, params["self_in_w"], params["self_in_b"],
            params["self_out_w"], params["self_out_b"])
    x = ln(x + a, params["norm1_g"], params["norm1_b"])
    a = mha(x, cr, params["cross_in_w"], params["cross_in_b"],
            params["cross_out_w"], params["cross_out_b"])
    x = ln(x + a, params["norm2_g"], params["norm2_b"])
    h = jax.nn.relu(x @ params["ff_w1"].T + params["ff_b1"])
    f = h @ params["ff_w2"].T + params["ff_b2"]
    x = ln(x + f, params["norm3_g"], params["norm3_b"])
    return jnp.transpose(x, (0, 2, 1))


# ----------------------------------- main -------------------------------------

if __name__ == "__main__":
    N, DIM, T, S = 2, 32, 8, 8
    NUM_HEADS, HIDDEN = 4, 64

    key = jax.random.PRNGKey(0)
    ks = jax.random.split(key, 16)

    def xavier(k, shape):
        fan = sum(shape)
        a = math.sqrt(6.0 / fan)
        return jax.random.uniform(k, shape, jnp.float32, -a, a)

    def kaiming(k, shape):
        std = math.sqrt(2.0 / shape[1])
        return std * jax.random.normal(k, shape, jnp.float32)

    params = {
        # self-attention (MultiheadAttention: in_proj (3C,C)+(3C,), out_proj (C,C)+(C,))
        "self_in_w": xavier(ks[0], (3 * DIM, DIM)),
        "self_in_b": jnp.zeros((3 * DIM,), jnp.float32),
        "self_out_w": xavier(ks[1], (DIM, DIM)),
        "self_out_b": jnp.zeros((DIM,), jnp.float32),
        "norm1_g": jnp.ones((DIM,), jnp.float32),
        "norm1_b": jnp.zeros((DIM,), jnp.float32),
        # cross-attention
        "cross_in_w": xavier(ks[2], (3 * DIM, DIM)),
        "cross_in_b": jnp.zeros((3 * DIM,), jnp.float32),
        "cross_out_w": xavier(ks[3], (DIM, DIM)),
        "cross_out_b": jnp.zeros((DIM,), jnp.float32),
        "norm2_g": jnp.ones((DIM,), jnp.float32),
        "norm2_b": jnp.zeros((DIM,), jnp.float32),
        # feed-forward (Linear(dim, hidden), ReLU, Linear(hidden, dim))
        "ff_w1": kaiming(ks[4], (HIDDEN, DIM)),
        "ff_b1": jnp.zeros((HIDDEN,), jnp.float32),
        "ff_w2": kaiming(ks[5], (DIM, HIDDEN)),
        "ff_b2": jnp.zeros((DIM,), jnp.float32),
        "norm3_g": jnp.ones((DIM,), jnp.float32),
        "norm3_b": jnp.zeros((DIM,), jnp.float32),
    }

    x = jax.random.normal(ks[6], (N, DIM, T), jnp.float32)       # (N, C, T)
    cross = jax.random.normal(ks[7], (N, DIM, S), jnp.float32)   # (N, C, S)

    out = decoder_layer_pallas(x, cross, params, NUM_HEADS)
    out = jax.block_until_ready(out)

    # Reference uses the same bf16-rounded inputs / weight matrices (biases and
    # layernorm params stay f32 in both) so the comparison isolates kernel math.
    def bf16_round(a):
        return a.astype(jnp.bfloat16).astype(jnp.float32)

    params_ref = dict(params)
    for name in ["self_in_w", "self_out_w", "cross_in_w", "cross_out_w",
                 "ff_w1", "ff_w2"]:
        params_ref[name] = bf16_round(params[name])
    ref = decoder_layer_ref(bf16_round(x), bf16_round(cross), params_ref, NUM_HEADS)

    assert out.shape == (N, DIM, T)
    assert jnp.allclose(out, ref, atol=2e-2, rtol=2e-2), float(jnp.max(jnp.abs(out - ref)))

    print("KERNEL_OK")
</pallas_src>

<mosaic_0001>
module attributes {stable_mosaic.version = 11 : i64} {
  func.func @_decoder_layer_kernel(%arg0: i32, %arg1: memref<1x8x32xbf16, #tpu.memory_space<vmem>>, %arg2: memref<1x8x32xbf16, #tpu.memory_space<vmem>>, %arg3: memref<4x32x24xbf16, #tpu.memory_space<vmem>>, %arg4: memref<4x1x24xf32, #tpu.memory_space<vmem>>, %arg5: memref<4x8x32xbf16, #tpu.memory_space<vmem>>, %arg6: memref<4x32x8xbf16, #tpu.memory_space<vmem>>, %arg7: memref<4x32x16xbf16, #tpu.memory_space<vmem>>, %arg8: memref<4x1x24xf32, #tpu.memory_space<vmem>>, %arg9: memref<4x8x32xbf16, #tpu.memory_space<vmem>>, %arg10: memref<32x64xbf16, #tpu.memory_space<vmem>>, %arg11: memref<1x64xf32, #tpu.memory_space<vmem>>, %arg12: memref<64x32xbf16, #tpu.memory_space<vmem>>, %arg13: memref<9x32xf32, #tpu.memory_space<vmem>>, %arg14: memref<1x8x32xf32, #tpu.memory_space<vmem>>) attributes {dimension_semantics = [#tpu.dimension_semantics<parallel>], iteration_bounds = array<i64: 2>, scalar_prefetch = 0 : i64, scratch_operands = 0 : i64, tpu.core_type = #tpu.core_type<tc>, window_params = [{transform_indices = @transform_0, window_bounds = array<i64: 1, 8, 32>}, {transform_indices = @transform_1, window_bounds = array<i64: 1, 8, 32>}, {pipeline_mode = #tpu.pipeline_mode<synchronous>, transform_indices = @transform_2, window_bounds = array<i64: 4, 32, 24>}, {pipeline_mode = #tpu.pipeline_mode<synchronous>, transform_indices = @transform_3, window_bounds = array<i64: 4, 1, 24>}, {pipeline_mode = #tpu.pipeline_mode<synchronous>, transform_indices = @transform_4, window_bounds = array<i64: 4, 8, 32>}, {pipeline_mode = #tpu.pipeline_mode<synchronous>, transform_indices = @transform_5, window_bounds = array<i64: 4, 32, 8>}, {pipeline_mode = #tpu.pipeline_mode<synchronous>, transform_indices = @transform_6, window_bounds = array<i64: 4, 32, 16>}, {pipeline_mode = #tpu.pipeline_mode<synchronous>, transform_indices = @transform_7, window_bounds = array<i64: 4, 1, 24>}, {pipeline_mode = #tpu.pipeline_mode<synchronous>, transform_indices = @transform_8, window_bounds = array<i64: 4, 8, 32>}, {pipeline_mode = #tpu.pipeline_mode<synchronous>, transform_indices = @transform_9, window_bounds = array<i64: 32, 64>}, {pipeline_mode = #tpu.pipeline_mode<synchronous>, transform_indices = @transform_10, window_bounds = array<i64: 1, 64>}, {pipeline_mode = #tpu.pipeline_mode<synchronous>, transform_indices = @transform_11, window_bounds = array<i64: 64, 32>}, {pipeline_mode = #tpu.pipeline_mode<synchronous>, transform_indices = @transform_12, window_bounds = array<i64: 9, 32>}, {transform_indices = @transform_13, window_bounds = array<i64: 1, 8, 32>}]} {
    %c0 = arith.constant 0 : index
    %c0_0 = arith.constant 0 : index
    %c0_1 = arith.constant 0 : index
    %0 = vector.load %arg1[%c0, %c0_0, %c0_1] : memref<1x8x32xbf16, #tpu.memory_space<vmem>>, vector<1x8x32xbf16>
    %1 = vector.shape_cast %0 : vector<1x8x32xbf16> to vector<8x32xbf16>
    %c0_2 = arith.constant 0 : index
    %c0_3 = arith.constant 0 : index
    %c0_4 = arith.constant 0 : index
    %2 = vector.load %arg2[%c0_2, %c0_3, %c0_4] : memref<1x8x32xbf16, #tpu.memory_space<vmem>>, vector<1x8x32xbf16>
    %3 = vector.shape_cast %2 : vector<1x8x32xbf16> to vector<8x32xbf16>
    %c0_5 = arith.constant 0 : index
    %c0_6 = arith.constant 0 : index
    %c0_7 = arith.constant 0 : index
    %4 = vector.load %arg3[%c0_5, %c0_6, %c0_7] : memref<4x32x24xbf16, #tpu.memory_space<vmem>>, vector<4x32x24xbf16>
    %c0_8 = arith.constant 0 : index
    %c0_9 = arith.constant 0 : index
    %c0_10 = arith.constant 0 : index
    %5 = vector.load %arg4[%c0_8, %c0_9, %c0_10] : memref<4x1x24xf32, #tpu.memory_space<vmem>>, vector<4x1x24xf32>
    %c0_11 = arith.constant 0 : index
    %c0_12 = arith.constant 0 : index
    %c0_13 = arith.constant 0 : index
    %6 = vector.load %arg5[%c0_11, %c0_12, %c0_13] : memref<4x8x32xbf16, #tpu.memory_space<vmem>>, vector<4x8x32xbf16>
    %c0_14 = arith.constant 0 : index
    %c0_15 = arith.constant 0 : index
    %7 = vector.load %arg13[%c0_14, %c0_15] : memref<9x32xf32, #tpu.memory_space<vmem>>, vector<1x32xf32>
    %8 = vector.shape_cast %1 : vector<8x32xbf16> to vector<1x8x32xbf16>
    %9 = vector.shape_cast %8 : vector<1x8x32xbf16> to vector<1x8x32xbf16>
    %10 = vector.broadcast %9 : vector<1x8x32xbf16> to vector<4x8x32xbf16>
    "tpu.trace_start"() <{level = 10 : i32, message = "htc,hce->hte"}> : () -> ()
    %cst = arith.constant dense<0.000000e+00> : vector<4x8x24xf32>
    %11 = tpu.matmul %10, %4, %cst {dimension_numbers = #tpu.dot_dimension_numbers<[2], [1], [1], [2], [0, 0, 0, 1, 1, 2], [0], [0]>} : vector<4x8x32xbf16>, vector<4x32x24xbf16>, vector<4x8x24xf32> -> vector<4x8x24xf32>
    "tpu.trace_stop"() : () -> ()
    %12 = vector.broadcast %5 : vector<4x1x24xf32> to vector<4x8x24xf32>
    %13 = arith.addf %11, %12 : vector<4x8x24xf32>
    %14 = vector.extract_strided_slice %13 {offsets = [0, 0, 0], sizes = [4, 8, 8], strides = [1, 1, 1]} : vector<4x8x24xf32> to vector<4x8x8xf32>
    %15 = vector.extract_strided_slice %13 {offsets = [0, 0, 8], sizes = [4, 8, 8], strides = [1, 1, 1]} : vector<4x8x24xf32> to vector<4x8x8xf32>
    %16 = vector.extract_strided_slice %13 {offsets = [0, 0, 16], sizes = [4, 8, 8], strides = [1, 1, 1]} : vector<4x8x24xf32> to vector<4x8x8xf32>
    %cst_16 = arith.constant 0.353553385 : f32
    %17 = vector.broadcast %cst_16 : f32 to vector<4x8x8xf32>
    %18 = arith.mulf %14, %17 : vector<4x8x8xf32>
    "tpu.trace_start"() <{level = 10 : i32, message = "htd,hsd->hts"}> : () -> ()
    %cst_17 = arith.constant dense<0.000000e+00> : vector<4x8x8xf32>
    %19 = tpu.matmul %18, %15, %cst_17 {dimension_numbers = #tpu.dot_dimension_numbers<[2], [2], [1], [1], [0, 0, 0, 1, 1, 1], [0], [0]>} : vector<4x8x8xf32>, vector<4x8x8xf32>, vector<4x8x8xf32> -> vector<4x8x8xf32>
    "tpu.trace_stop"() : () -> ()
    %cst_18 = arith.constant dense<0xFF800000> : vector<4x8xf32>
    %20 = vector.multi_reduction <maximumf>, %19, %cst_18 [2] : vector<4x8x8xf32> to vector<4x8xf32>
    %21 = vector.shape_cast %20 : vector<4x8xf32> to vector<4x8x1xf32>
    %22 = vector.broadcast %21 : vector<4x8x1xf32> to vector<4x8x8xf32>
    %23 = arith.subf %19, %22 : vector<4x8x8xf32>
    %24 = math.exp %23 : vector<4x8x8xf32>
    %cst_19 = arith.constant dense<0.000000e+00> : vector<4x8xf32>
    %25 = vector.multi_reduction <add>, %24, %cst_19 [2] : vector<4x8x8xf32> to vector<4x8xf32>
    %26 = vector.shape_cast %25 : vector<4x8xf32> to vector<4x8x1xf32>
    %27 = tpu.reciprocal %26 {approx = true} : vector<4x8x1xf32> -> vector<4x8x1xf32>
    %28 = vector.broadcast %27 : vector<4x8x1xf32> to vector<4x8x8xf32>
    %29 = arith.mulf %24, %28 : vector<4x8x8xf32>
    "tpu.trace_start"() <{level = 10 : i32, message = "hts,hsd->htd"}> : () -> ()
    %cst_20 = arith.constant dense<0.000000e+00> : vector<4x8x8xf32>
    %30 = tpu.matmul %29, %16, %cst_20 {dimension_numbers = #tpu.dot_dimension_numbers<[2], [1], [1], [2], [0, 0, 0, 1, 1, 2], [0], [0]>} : vector<4x8x8xf32>, vector<4x8x8xf32>, vector<4x8x8xf32> -> vector<4x8x8xf32>
    "tpu.trace_stop"() : () -> ()
    "tpu.trace_start"() <{level = 10 : i32, message = "htd,hdc->htc"}> : () -> ()
    %cst_21 = arith.constant dense<0.000000e+00> : vector<4x8x32xf32>
    %31 = tpu.matmul %30, %6, %cst_21 {dimension_numbers = #tpu.dot_dimension_numbers<[2], [1], [1], [2], [0, 0, 0, 1, 1, 2], [0], [0]>} : vector<4x8x8xf32>, vector<4x8x32xbf16>, vector<4x8x32xf32> -> vector<4x8x32xf32>
    "tpu.trace_stop"() : () -> ()
    %cst_22 = arith.constant dense<0.000000e+00> : vector<8x32xf32>
    %32 = vector.multi_reduction <add>, %31, %cst_22 [0] : vector<4x8x32xf32> to vector<8x32xf32>
    %33 = vector.broadcast %7 : vector<1x32xf32> to vector<8x32xf32>
    %34 = arith.addf %32, %33 : vector<8x32xf32>
    %35 = arith.extf %1 : vector<8x32xbf16> to vector<8x32xf32>
    %36 = arith.addf %35, %34 : vector<8x32xf32>
    %c1 = arith.constant 1 : index
    %c0_23 = arith.constant 0 : index
    %37 = vector.load %arg13[%c1, %c0_23] : memref<9x32xf32, #tpu.memory_space<vmem>>, vector<1x32xf32>
    %c2 = arith.constant 2 : index
    %c0_24 = arith.constant 0 : index
    %38 = vector.load %arg13[%c2, %c0_24] : memref<9x32xf32, #tpu.memory_space<vmem>>, vector<1x32xf32>
    %cst_25 = arith.constant dense<0.000000e+00> : vector<8xf32>
    %39 = vector.multi_reduction <add>, %36, %cst_25 [1] : vector<8x32xf32> to vector<8xf32>
    %40 = vector.shape_cast %39 : vector<8xf32> to vector<8x1xf32>
    %cst_26 = arith.constant 3.200000e+01 : f32
    %41 = vector.broadcast %cst_26 : f32 to vector<8x1xf32>
    %42 = arith.divf %40, %41 : vector<8x1xf32>
    %43 = vector.broadcast %42 : vector<8x1xf32> to vector<8x32xf32>
    %44 = arith.subf %36, %43 : vector<8x32xf32>
    %45 = arith.mulf %44, %44 : vector<8x32xf32>
    %cst_27 = arith.constant dense<0.000000e+00> : vector<8xf32>
    %46 = vector.multi_reduction <add>, %45, %cst_27 [1] : vector<8x32xf32> to vector<8xf32>
    %47 = vector.shape_cast %46 : vector<8xf32> to vector<8x1xf32>
    %cst_28 = arith.constant 3.200000e+01 : f32
    %48 = vector.broadcast %cst_28 : f32 to vector<8x1xf32>
    %49 = arith.divf %47, %48 : vector<8x1xf32>
    %cst_29 = arith.constant 9.99999974E-6 : f32
    %50 = vector.broadcast %cst_29 : f32 to vector<8x1xf32>
    %51 = arith.addf %49, %50 : vector<8x1xf32>
    %52 = math.rsqrt %51 : vector<8x1xf32>
    %53 = vector.broadcast %52 : vector<8x1xf32> to vector<8x32xf32>
    %54 = arith.mulf %44, %53 : vector<8x32xf32>
    %55 = vector.broadcast %37 : vector<1x32xf32> to vector<8x32xf32>
    %56 = arith.mulf %54, %55 : vector<8x32xf32>
    %57 = vector.broadcast %38 : vector<1x32xf32> to vector<8x32xf32>
    %58 = arith.addf %56, %57 : vector<8x32xf32>
    %c0_30 = arith.constant 0 : index
    %c0_31 = arith.constant 0 : index
    %c0_32 = arith.constant 0 : index
    %59 = vector.load %arg6[%c0_30, %c0_31, %c0_32] : memref<4x32x8xbf16, #tpu.memory_space<vmem>>, vector<4x32x8xbf16>
    %c0_33 = arith.constant 0 : index
    %c0_34 = arith.constant 0 : index
    %c0_35 = arith.constant 0 : index
    %60 = vector.load %arg7[%c0_33, %c0_34, %c0_35] : memref<4x32x16xbf16, #tpu.memory_space<vmem>>, vector<4x32x16xbf16>
    %c0_36 = arith.constant 0 : index
    %c0_37 = arith.constant 0 : index
    %c0_38 = arith.constant 0 : index
    %61 = vector.load %arg8[%c0_36, %c0_37, %c0_38] : memref<4x1x24xf32, #tpu.memory_space<vmem>>, vector<4x1x24xf32>
    %c0_39 = arith.constant 0 : index
    %c0_40 = arith.constant 0 : index
    %c0_41 = arith.constant 0 : index
    %62 = vector.load %arg9[%c0_39, %c0_40, %c0_41] : memref<4x8x32xbf16, #tpu.memory_space<vmem>>, vector<4x8x32xbf16>
    %c3 = arith.constant 3 : index
    %c0_42 = arith.constant 0 : index
    %63 = vector.load %arg13[%c3, %c0_42] : memref<9x32xf32, #tpu.memory_space<vmem>>, vector<1x32xf32>
    %64 = vector.shape_cast %58 : vector<8x32xf32> to vector<1x8x32xf32>
    %65 = vector.shape_cast %64 : vector<1x8x32xf32> to vector<1x8x32xf32>
    %66 = vector.broadcast %65 : vector<1x8x32xf32> to vector<4x8x32xf32>
    %67 = vector.shape_cast %3 : vector<8x32xbf16> to vector<1x8x32xbf16>
    %68 = vector.shape_cast %67 : vector<1x8x32xbf16> to vector<1x8x32xbf16>
    %69 = vector.broadcast %68 : vector<1x8x32xbf16> to vector<4x8x32xbf16>
    "tpu.trace_start"() <{level = 10 : i32, message = "htc,hcd->htd"}> : () -> ()
    %cst_43 = arith.constant dense<0.000000e+00> : vector<4x8x8xf32>
    %70 = tpu.matmul %66, %59, %cst_43 {dimension_numbers = #tpu.dot_dimension_numbers<[2], [1], [1], [2], [0, 0, 0, 1, 1, 2], [0], [0]>} : vector<4x8x32xf32>, vector<4x32x8xbf16>, vector<4x8x8xf32> -> vector<4x8x8xf32>
    "tpu.trace_stop"() : () -> ()
    %71 = vector.extract_strided_slice %61 {offsets = [0, 0, 0], sizes = [4, 1, 8], strides = [1, 1, 1]} : vector<4x1x24xf32> to vector<4x1x8xf32>
    %72 = vector.broadcast %71 : vector<4x1x8xf32> to vector<4x8x8xf32>
    %73 = arith.addf %70, %72 : vector<4x8x8xf32>
    "tpu.trace_start"() <{level = 10 : i32, message = "hsc,hce->hse"}> : () -> ()
    %cst_44 = arith.constant dense<0.000000e+00> : vector<4x8x16xf32>
    %74 = tpu.matmul %69, %60, %cst_44 {dimension_numbers = #tpu.dot_dimension_numbers<[2], [1], [1], [2], [0, 0, 0, 1, 1, 2], [0], [0]>} : vector<4x8x32xbf16>, vector<4x32x16xbf16>, vector<4x8x16xf32> -> vector<4x8x16xf32>
    "tpu.trace_stop"() : () -> ()
    %75 = vector.extract_strided_slice %61 {offsets = [0, 0, 8], sizes = [4, 1, 16], strides = [1, 1, 1]} : vector<4x1x24xf32> to vector<4x1x16xf32>
    %76 = vector.broadcast %75 : vector<4x1x16xf32> to vector<4x8x16xf32>
    %77 = arith.addf %74, %76 : vector<4x8x16xf32>
    %78 = vector.extract_strided_slice %77 {offsets = [0, 0, 0], sizes = [4, 8, 8], strides = [1, 1, 1]} : vector<4x8x16xf32> to vector<4x8x8xf32>
    %79 = vector.extract_strided_slice %77 {offsets = [0, 0, 8], sizes = [4, 8, 8], strides = [1, 1, 1]} : vector<4x8x16xf32> to vector<4x8x8xf32>
    %cst_45 = arith.constant 0.353553385 : f32
    %80 = vector.broadcast %cst_45 : f32 to vector<4x8x8xf32>
    %81 = arith.mulf %73, %80 : vector<4x8x8xf32>
    "tpu.trace_start"() <{level = 10 : i32, message = "htd,hsd->hts"}> : () -> ()
    %cst_46 = arith.constant dense<0.000000e+00> : vector<4x8x8xf32>
    %82 = tpu.matmul %81, %78, %cst_46 {dimension_numbers = #tpu.dot_dimension_numbers<[2], [2], [1], [1], [0, 0, 0, 1, 1, 1], [0], [0]>} : vector<4x8x8xf32>, vector<4x8x8xf32>, vector<4x8x8xf32> -> vector<4x8x8xf32>
    "tpu.trace_stop"() : () -> ()
    %cst_47 = arith.constant dense<0xFF800000> : vector<4x8xf32>
    %83 = vector.multi_reduction <maximumf>, %82, %cst_47 [2] : vector<4x8x8xf32> to vector<4x8xf32>
    %84 = vector.shape_cast %83 : vector<4x8xf32> to vector<4x8x1xf32>
    %85 = vector.broadcast %84 : vector<4x8x1xf32> to vector<4x8x8xf32>
    %86 = arith.subf %82, %85 : vector<4x8x8xf32>
    %87 = math.exp %86 : vector<4x8x8xf32>
    %cst_48 = arith.constant dense<0.000000e+00> : vector<4x8xf32>
    %88 = vector.multi_reduction <add>, %87, %cst_48 [2] : vector<4x8x8xf32> to vector<4x8xf32>
    %89 = vector.shape_cast %88 : vector<4x8xf32> to vector<4x8x1xf32>
    %90 = tpu.reciprocal %89 {approx = true} : vector<4x8x1xf32> -> vector<4x8x1xf32>
    %91 = vector.broadcast %90 : vector<4x8x1xf32> to vector<4x8x8xf32>
    %92 = arith.mulf %87, %91 : vector<4x8x8xf32>
    "tpu.trace_start"() <{level = 10 : i32, message = "hts,hsd->htd"}> : () -> ()
    %cst_49 = arith.constant dense<0.000000e+00> : vector<4x8x8xf32>
    %93 = tpu.matmul %92, %79, %cst_49 {dimension_numbers = #tpu.dot_dimension_numbers<[2], [1], [1], [2], [0, 0, 0, 1, 1, 2], [0], [0]>} : vector<4x8x8xf32>, vector<4x8x8xf32>, vector<4x8x8xf32> -> vector<4x8x8xf32>
    "tpu.trace_stop"() : () -> ()
    "tpu.trace_start"() <{level = 10 : i32, message = "htd,hdc->htc"}> : () -> ()
    %cst_50 = arith.constant dense<0.000000e+00> : vector<4x8x32xf32>
    %94 = tpu.matmul %93, %62, %cst_50 {dimension_numbers = #tpu.dot_dimension_numbers<[2], [1], [1], [2], [0, 0, 0, 1, 1, 2], [0], [0]>} : vector<4x8x8xf32>, vector<4x8x32xbf16>, vector<4x8x32xf32> -> vector<4x8x32xf32>
    "tpu.trace_stop"() : () -> ()
    %cst_51 = arith.constant dense<0.000000e+00> : vector<8x32xf32>
    %95 = vector.multi_reduction <add>, %94, %cst_51 [0] : vector<4x8x32xf32> to vector<8x32xf32>
    %96 = vector.broadcast %63 : vector<1x32xf32> to vector<8x32xf32>
    %97 = arith.addf %95, %96 : vector<8x32xf32>
    %98 = arith.addf %58, %97 : vector<8x32xf32>
    %c4 = arith.constant 4 : index
    %c0_52 = arith.constant 0 : index
    %99 = vector.load %arg13[%c4, %c0_52] : memref<9x32xf32, #tpu.memory_space<vmem>>, vector<1x32xf32>
    %c5 = arith.constant 5 : index
    %c0_53 = arith.constant 0 : index
    %100 = vector.load %arg13[%c5, %c0_53] : memref<9x32xf32, #tpu.memory_space<vmem>>, vector<1x32xf32>
    %cst_54 = arith.constant dense<0.000000e+00> : vector<8xf32>
    %101 = vector.multi_reduction <add>, %98, %cst_54 [1] : vector<8x32xf32> to vector<8xf32>
    %102 = vector.shape_cast %101 : vector<8xf32> to vector<8x1xf32>
    %cst_55 = arith.constant 3.200000e+01 : f32
    %103 = vector.broadcast %cst_55 : f32 to vector<8x1xf32>
    %104 = arith.divf %102, %103 : vector<8x1xf32>
    %105 = vector.broadcast %104 : vector<8x1xf32> to vector<8x32xf32>
    %106 = arith.subf %98, %105 : vector<8x32xf32>
    %107 = arith.mulf %106, %106 : vector<8x32xf32>
    %cst_56 = arith.constant dense<0.000000e+00> : vector<8xf32>
    %108 = vector.multi_reduction <add>, %107, %cst_56 [1] : vector<8x32xf32> to vector<8xf32>
    %109 = vector.shape_cast %108 : vector<8xf32> to vector<8x1xf32>
    %cst_57 = arith.constant 3.200000e+01 : f32
    %110 = vector.broadcast %cst_57 : f32 to vector<8x1xf32>
    %111 = arith.divf %109, %110 : vector<8x1xf32>
    %cst_58 = arith.constant 9.99999974E-6 : f32
    %112 = vector.broadcast %cst_58 : f32 to vector<8x1xf32>
    %113 = arith.addf %111, %112 : vector<8x1xf32>
    %114 = math.rsqrt %113 : vector<8x1xf32>
    %115 = vector.broadcast %114 : vector<8x1xf32> to vector<8x32xf32>
    %116 = arith.mulf %106, %115 : vector<8x32xf32>
    %117 = vector.broadcast %99 : vector<1x32xf32> to vector<8x32xf32>
    %118 = arith.mulf %116, %117 : vector<8x32xf32>
    %119 = vector.broadcast %100 : vector<1x32xf32> to vector<8x32xf32>
    %120 = arith.addf %118, %119 : vector<8x32xf32>
    %c0_59 = arith.constant 0 : index
    %c0_60 = arith.constant 0 : index
    %121 = vector.load %arg10[%c0_59, %c0_60] : memref<32x64xbf16, #tpu.memory_space<vmem>>, vector<32x64xbf16>
    %cst_61 = arith.constant dense<0.000000e+00> : vector<8x64xf32>
    %122 = tpu.matmul %120, %121, %cst_61 {dimension_numbers = #tpu.dot_dimension_numbers<[1], [0], [0], [1], [0, 0, 1, 1], [], []>} : vector<8x32xf32>, vector<32x64xbf16>, vector<8x64xf32> -> vector<8x64xf32>
    %c0_62 = arith.constant 0 : index
    %c0_63 = arith.constant 0 : index
    %123 = vector.load %arg11[%c0_62, %c0_63] : memref<1x64xf32, #tpu.memory_space<vmem>>, vector<1x64xf32>
    %124 = vector.broadcast %123 : vector<1x64xf32> to vector<8x64xf32>
    %125 = arith.addf %122, %124 : vector<8x64xf32>
    %cst_64 = arith.constant 0.000000e+00 : f32
    %126 = vector.broadcast %cst_64 : f32 to vector<8x64xf32>
    %127 = arith.maximumf %125, %126 : vector<8x64xf32>
    %c0_65 = arith.constant 0 : index
    %c0_66 = arith.constant 0 : index
    %128 = vector.load %arg12[%c0_65, %c0_66] : memref<64x32xbf16, #tpu.memory_space<vmem>>, vector<64x32xbf16>
    %cst_67 = arith.constant dense<0.000000e+00> : vector<8x32xf32>
    %129 = tpu.matmul %127, %128, %cst_67 {dimension_numbers = #tpu.dot_dimension_numbers<[1], [0], [0], [1], [0, 0, 1, 1], [], []>} : vector<8x64xf32>, vector<64x32xbf16>, vector<8x32xf32> -> vector<8x32xf32>
    %c6 = arith.constant 6 : index
    %c0_68 = arith.constant 0 : index
    %130 = vector.load %arg13[%c6, %c0_68] : memref<9x32xf32, #tpu.memory_space<vmem>>, vector<1x32xf32>
    %131 = vector.broadcast %130 : vector<1x32xf32> to vector<8x32xf32>
    %132 = arith.addf %129, %131 : vector<8x32xf32>
    %133 = arith.addf %120, %132 : vector<8x32xf32>
    %c7 = arith.constant 7 : index
    %c0_69 = arith.constant 0 : index
    %134 = vector.load %arg13[%c7, %c0_69] : memref<9x32xf32, #tpu.memory_space<vmem>>, vector<1x32xf32>
    %c8 = arith.constant 8 : index
    %c0_70 = arith.constant 0 : index
    %135 = vector.load %arg13[%c8, %c0_70] : memref<9x32xf32, #tpu.memory_space<vmem>>, vector<1x32xf32>
    %cst_71 = arith.constant dense<0.000000e+00> : vector<8xf32>
    %136 = vector.multi_reduction <add>, %133, %cst_71 [1] : vector<8x32xf32> to vector<8xf32>
    %137 = vector.shape_cast %136 : vector<8xf32> to vector<8x1xf32>
    %cst_72 = arith.constant 3.200000e+01 : f32
    %138 = vector.broadcast %cst_72 : f32 to vector<8x1xf32>
    %139 = arith.divf %137, %138 : vector<8x1xf32>
    %140 = vector.broadcast %139 : vector<8x1xf32> to vector<8x32xf32>
    %141 = arith.subf %133, %140 : vector<8x32xf32>
    %142 = arith.mulf %141, %141 : vector<8x32xf32>
    %cst_73 = arith.constant dense<0.000000e+00> : vector<8xf32>
    %143 = vector.multi_reduction <add>, %142, %cst_73 [1] : vector<8x32xf32> to vector<8xf32>
    %144 = vector.shape_cast %143 : vector<8xf32> to vector<8x1xf32>
    %cst_74 = arith.constant 3.200000e+01 : f32
    %145 = vector.broadcast %cst_74 : f32 to vector<8x1xf32>
    %146 = arith.divf %144, %145 : vector<8x1xf32>
    %cst_75 = arith.constant 9.99999974E-6 : f32
    %147 = vector.broadcast %cst_75 : f32 to vector<8x1xf32>
    %148 = arith.addf %146, %147 : vector<8x1xf32>
    %149 = math.rsqrt %148 : vector<8x1xf32>
    %150 = vector.broadcast %149 : vector<8x1xf32> to vector<8x32xf32>
    %151 = arith.mulf %141, %150 : vector<8x32xf32>
    %152 = vector.broadcast %134 : vector<1x32xf32> to vector<8x32xf32>
    %153 = arith.mulf %151, %152 : vector<8x32xf32>
    %154 = vector.broadcast %135 : vector<1x32xf32> to vector<8x32xf32>
    %155 = arith.addf %153, %154 : vector<8x32xf32>
    %c0_76 = arith.constant 0 : index
    %c0_77 = arith.constant 0 : index
    %c0_78 = arith.constant 0 : index
    %156 = vector.load %arg14[%c0_76, %c0_77, %c0_78] : memref<1x8x32xf32, #tpu.memory_space<vmem>>, vector<1x8x32xf32>
    %157 = vector.shape_cast %156 : vector<1x8x32xf32> to vector<8x32xf32>
    %158 = vector.shape_cast %155 : vector<8x32xf32> to vector<1x8x32xf32>
    tpu.vector_store %arg14[%c0_76, %c0_77, %c0_78], %158 {strides = array<i32>} : memref<1x8x32xf32, #tpu.memory_space<vmem>>, vector<1x8x32xf32>,
    return
  }
  func.func @transform_0(%arg0: i32) -> (i32, i32, i32) {
    %c0_i32 = arith.constant 0 : i32
    %c0_i32_0 = arith.constant 0 : i32
    %c0_i32_1 = arith.constant 0 : i32
    return %arg0, %c0_i32, %c0_i32_0 : i32, i32, i32
  }
  func.func @transform_1(%arg0: i32) -> (i32, i32, i32) {
    %c0_i32 = arith.constant 0 : i32
    %c0_i32_0 = arith.constant 0 : i32
    %c0_i32_1 = arith.constant 0 : i32
    return %arg0, %c0_i32, %c0_i32_0 : i32, i32, i32
  }
  func.func @transform_2(%arg0: i32) -> (i32, i32, i32) {
    %c0_i32 = arith.constant 0 : i32
    %c0_i32_0 = arith.constant 0 : i32
    %c0_i32_1 = arith.constant 0 : i32
    %c0_i32_2 = arith.constant 0 : i32
    return %c0_i32, %c0_i32_0, %c0_i32_1 : i32, i32, i32
  }
  func.func @transform_3(%arg0: i32) -> (i32, i32, i32) {
    %c0_i32 = arith.constant 0 : i32
    %c0_i32_0 = arith.constant 0 : i32
    %c0_i32_1 = arith.constant 0 : i32
    %c0_i32_2 = arith.constant 0 : i32
    return %c0_i32, %c0_i32_0, %c0_i32_1 : i32, i32, i32
  }
  func.func @transform_4(%arg0: i32) -> (i32, i32, i32) {
    %c0_i32 = arith.constant 0 : i32
    %c0_i32_0 = arith.constant 0 : i32
    %c0_i32_1 = arith.constant 0 : i32
    %c0_i32_2 = arith.constant 0 : i32
    return %c0_i32, %c0_i32_0, %c0_i32_1 : i32, i32, i32
  }
  func.func @transform_5(%arg0: i32) -> (i32, i32, i32) {
    %c0_i32 = arith.constant 0 : i32
    %c0_i32_0 = arith.constant 0 : i32
    %c0_i32_1 = arith.constant 0 : i32
    %c0_i32_2 = arith.constant 0 : i32
    return %c0_i32, %c0_i32_0, %c0_i32_1 : i32, i32, i32
  }
  func.func @transform_6(%arg0: i32) -> (i32, i32, i32) {
    %c0_i32 = arith.constant 0 : i32
    %c0_i32_0 = arith.constant 0 : i32
    %c0_i32_1 = arith.constant 0 : i32
    %c0_i32_2 = arith.constant 0 : i32
    return %c0_i32, %c0_i32_0, %c0_i32_1 : i32, i32, i32
  }
  func.func @transform_7(%arg0: i32) -> (i32, i32, i32) {
    %c0_i32 = arith.constant 0 : i32
    %c0_i32_0 = arith.constant 0 : i32
    %c0_i32_1 = arith.constant 0 : i32
    %c0_i32_2 = arith.constant 0 : i32
    return %c0_i32, %c0_i32_0, %c0_i32_1 : i32, i32, i32
  }
  func.func @transform_8(%arg0: i32) -> (i32, i32, i32) {
    %c0_i32 = arith.constant 0 : i32
    %c0_i32_0 = arith.constant 0 : i32
    %c0_i32_1 = arith.constant 0 : i32
    %c0_i32_2 = arith.constant 0 : i32
    return %c0_i32, %c0_i32_0, %c0_i32_1 : i32, i32, i32
  }
  func.func @transform_9(%arg0: i32) -> (i32, i32) {
    %c0_i32 = arith.constant 0 : i32
    %c0_i32_0 = arith.constant 0 : i32
    %c0_i32_1 = arith.constant 0 : i32
    return %c0_i32, %c0_i32_0 : i32, i32
  }
  func.func @transform_10(%arg0: i32) -> (i32, i32) {
    %c0_i32 = arith.constant 0 : i32
    %c0_i32_0 = arith.constant 0 : i32
    %c0_i32_1 = arith.constant 0 : i32
    return %c0_i32, %c0_i32_0 : i32, i32
  }
  func.func @transform_11(%arg0: i32) -> (i32, i32) {
    %c0_i32 = arith.constant 0 : i32
    %c0_i32_0 = arith.constant 0 : i32
    %c0_i32_1 = arith.constant 0 : i32
    return %c0_i32, %c0_i32_0 : i32, i32
  }
  func.func @transform_12(%arg0: i32) -> (i32, i32) {
    %c0_i32 = arith.constant 0 : i32
    %c0_i32_0 = arith.constant 0 : i32
    %c0_i32_1 = arith.constant 0 : i32
    return %c0_i32, %c0_i32_0 : i32, i32
  }
  func.func @transform_13(%arg0: i32) -> (i32, i32, i32) {
    %c0_i32 = arith.constant 0 : i32
    %c0_i32_0 = arith.constant 0 : i32
    %c0_i32_1 = arith.constant 0 : i32
    return %arg0, %c0_i32, %c0_i32_0 : i32, i32, i32
  }
}

</mosaic_0001>

<llo_original>
// kernel: tpu_custom_call.1
$region0: #{tpu_custom_call.1}
  #allocation0 [shape = 'u32[]', space=smem, size = 0x4, offset = 0x4, fixed_abs, tag = 'smem constant byte address 0x4 - core index']
  #allocation1 [shape = 'u32[144,128]{1,0:T(1,128)}', space=vmem, size = 0x12000, scoped, tag = 'internal scratch']
  %s0 = inlined_call_operand.vmem [shape: bf16[2,8,32], index: 0, kind: input, shape index: {}]
  %s1 = inlined_call_operand.vmem [shape: bf16[2,8,32], index: 1, kind: input, shape index: {}]
  %s2 = inlined_call_operand.vmem [shape: bf16[4,32,24], index: 2, kind: input, shape index: {}]
  %s3 = inlined_call_operand.vmem [shape: f32[4,1,24], index: 3, kind: input, shape index: {}]
  %s4 = inlined_call_operand.vmem [shape: bf16[4,8,32], index: 4, kind: input, shape index: {}]
  %s5 = inlined_call_operand.vmem [shape: bf16[4,32,8], index: 5, kind: input, shape index: {}]
  %s6 = inlined_call_operand.vmem [shape: bf16[4,32,16], index: 6, kind: input, shape index: {}]
  %s7 = inlined_call_operand.vmem [shape: f32[4,1,24], index: 7, kind: input, shape index: {}]
  %s8 = inlined_call_operand.vmem [shape: bf16[4,8,32], index: 8, kind: input, shape index: {}]
  %s9 = inlined_call_operand.vmem [shape: bf16[32,64], index: 9, kind: input, shape index: {}]
  %s10 = inlined_call_operand.vmem [shape: f32[1,64], index: 10, kind: input, shape index: {}]
  %s11 = inlined_call_operand.vmem [shape: bf16[64,32], index: 11, kind: input, shape index: {}]
  %s12 = inlined_call_operand.vmem [shape: f32[9,32], index: 12, kind: input, shape index: {}]
  %s13 = inlined_call_operand.hbm [shape: f32[2,8,32], index: 13, kind: output, shape index: {}]
  %s14 = sld [smem:[#allocation0]]
  $region85: #{tpu_custom_call.1} parent=0
    _
  %s16 = ssub.s32 1, %s14
  %s17 = scalar_select 0, %s16, %s14
  $region1: #{tpu_custom_call.1} parent=0
    #allocation2 [shape = 'u8[8192]{0}', space=vmem, size = 0x2000, scoped, tag = 'output window, operand 0']
    #allocation3 [shape = 's32[2]{0}', space=sflag, size = 0x8, scoped, tag = 'scoped memory for tpu_custom_call.1']
    %18 = vsyncpa [#allocation3], 0
    %s19 = scalar_lea.sflag [#allocation3], 1
    %20 = vsyncpa %s19, 0
    loop: start=0, step=1, limit=4
    $region2: #{tpu_custom_call.1} parent=1 // loop_pre_header
      _
    $region3: #{tpu_custom_call.1} parent=1 // loop_header
      %s22 = sphi 0, %s26
      %p23 = scmp.ge.s32.totalorder %s22, 4
      %s32 = sphi 0, %s34
      %s35 = sphi 0, %s32
      %s36 = sphi 0, %s35
      %s52 = sphi 0, %s36
      %s58 = sphi 0, %s60
      %s61 = sphi 0, %s58
      %s62 = sphi 0, %s61
      %s78 = sphi 0, %s62
      %s82 = sphi 0, %s82
      %s84 = sphi 0, %s82
      %s85 = sphi 0, %s84
      %s99 = sphi 0, %s85
      %s103 = sphi 0, %s103
      %s105 = sphi 0, %s103
      %s106 = sphi 0, %s105
      %s120 = sphi 0, %s106
      %s124 = sphi 0, %s124
      %s126 = sphi 0, %s124
      %s127 = sphi 0, %s126
      %s141 = sphi 0, %s127
      %s145 = sphi 0, %s145
      %s147 = sphi 0, %s145
      %s148 = sphi 0, %s147
      %s162 = sphi 0, %s148
      %s166 = sphi 0, %s166
      %s168 = sphi 0, %s166
      %s169 = sphi 0, %s168
      %s183 = sphi 0, %s169
      %s187 = sphi 0, %s187
      %s189 = sphi 0, %s187
      %s190 = sphi 0, %s189
      %s204 = sphi 0, %s190
      %s208 = sphi 0, %s208
      %s210 = sphi 0, %s208
      %s211 = sphi 0, %s210
      %s225 = sphi 0, %s211
      %s229 = sphi 0, %s229
      %s231 = sphi 0, %s229
      %s232 = sphi 0, %s231
      %s246 = sphi 0, %s232
      %s250 = sphi 0, %s250
      %s252 = sphi 0, %s250
      %s253 = sphi 0, %s252
      %s267 = sphi 0, %s253
      %s271 = sphi 0, %s271
      %s273 = sphi 0, %s271
      %s274 = sphi 0, %s273
      %s288 = sphi 0, %s274
      %s292 = sphi 0, %s292
      %s294 = sphi 0, %s292
      %s295 = sphi 0, %s294
      %s309 = sphi 0, %s295
      %s315 = sphi 0, %s317
      %s318 = sphi 0, %s315
      %s319 = sphi 0, %s318
      %s335 = sphi 0, %s319
    $region4: #{tpu_custom_call.1} parent=1 // loop_header_branch
      %25 = sbr.rel (%p23) target = $region8
    $region5: #{tpu_custom_call.1} parent=1 // loop_body
      %s27 = ssub.s32 %s22, 1
      %s28 = ssub.s32 %s22, 2
      %s29 = sadd.s32 %s22, 1
      %s30 = ssub.s32 %s22, %s29
      %p31 = scmp.eq.s32.totalorder %s30, 0
      %s33 = sadd.s32 %s32, 1
      %s34 = scalar_select %p31, %s32, %s33
      %p37 = pneg %p31
      %p38 = scmp.eq.s32.totalorder %s22, 1
      %p39 = por %p37, %p38
      %p40 = scmp.ne.s32.totalorder %s32, %s35
      %p41 = scmp.eq.s32.totalorder %s22, 0
      %p42 = por %p40, %p41
      %p43 = scmp.ne.s32.totalorder %s32, %s35
      %p44 = scmp.eq.s32.totalorder %s27, 1
      %p45 = por %p43, %p44
      %p46 = scmp.ne.s32.totalorder %s35, %s36
      %p47 = scmp.eq.s32.totalorder %s27, 0
      %p48 = por %p46, %p47
      %p49 = scmp.ne.s32.totalorder %s35, %s36
      %p50 = scmp.eq.s32.totalorder %s28, 1
      %p51 = por %p49, %p50
      %p53 = scmp.ne.s32.totalorder %s36, %s52
      %p54 = scmp.eq.s32.totalorder %s28, 0
      %p55 = por %p53, %p54
      %s56 = ssub.s32 %s22, %s29
      %p57 = scmp.eq.s32.totalorder %s56, 0
      %s59 = sadd.s32 %s58, 1
      %s60 = scalar_select %p57, %s58, %s59
      %p63 = pneg %p57
      %p64 = scmp.eq.s32.totalorder %s22, 1
      %p65 = por %p63, %p64
      %p66 = scmp.ne.s32.totalorder %s58, %s61
      %p67 = scmp.eq.s32.totalorder %s22, 0
      %p68 = por %p66, %p67
      %p69 = scmp.ne.s32.totalorder %s58, %s61
      %p70 = scmp.eq.s32.totalorder %s27, 1
      %p71 = por %p69, %p70
      %p72 = scmp.ne.s32.totalorder %s61, %s62
      %p73 = scmp.eq.s32.totalorder %s27, 0
      %p74 = por %p72, %p73
      %p75 = scmp.ne.s32.totalorder %s61, %s62
      %p76 = scmp.eq.s32.totalorder %s28, 1
      %p77 = por %p75, %p76
      %p79 = scmp.ne.s32.totalorder %s62, %s78
      %p80 = scmp.eq.s32.totalorder %s28, 0
      %p81 = por %p79, %p80
      %s83 = sadd.s32 %s82, 1
      %p86 = scmp.eq.s32.totalorder %s22, 1
      %p87 = scmp.ne.s32.totalorder %s82, %s84
      %p88 = scmp.eq.s32.totalorder %s22, 0
      %p89 = por %p87, %p88
      %p90 = scmp.ne.s32.totalorder %s82, %s84
      %p91 = scmp.eq.s32.totalorder %s27, 1
      %p92 = por %p90, %p91
      %p93 = scmp.ne.s32.totalorder %s84, %s85
      %p94 = scmp.eq.s32.totalorder %s27, 0
      %p95 = por %p93, %p94
      %p96 = scmp.ne.s32.totalorder %s84, %s85
      %p97 = scmp.eq.s32.totalorder %s28, 1
      %p98 = por %p96, %p97
      %p100 = scmp.ne.s32.totalorder %s85, %s99
      %p101 = scmp.eq.s32.totalorder %s28, 0
      %p102 = por %p100, %p101
      %s104 = sadd.s32 %s103, 1
      %p107 = scmp.eq.s32.totalorder %s22, 1
      %p108 = scmp.ne.s32.totalorder %s103, %s105
      %p109 = scmp.eq.s32.totalorder %s22, 0
      %p110 = por %p108, %p109
      %p111 = scmp.ne.s32.totalorder %s103, %s105
      %p112 = scmp.eq.s32.totalorder %s27, 1
      %p113 = por %p111, %p112
      %p114 = scmp.ne.s32.totalorder %s105, %s106
      %p115 = scmp.eq.s32.totalorder %s27, 0
      %p116 = por %p114, %p115
      %p117 = scmp.ne.s32.totalorder %s105, %s106
      %p118 = scmp.eq.s32.totalorder %s28, 1
      %p119 = por %p117, %p118
      %p121 = scmp.ne.s32.totalorder %s106, %s120
      %p122 = scmp.eq.s32.totalorder %s28, 0
      %p123 = por %p121, %p122
      %s125 = sadd.s32 %s124, 1
      %p128 = scmp.eq.s32.totalorder %s22, 1
      %p129 = scmp.ne.s32.totalorder %s124, %s126
      %p130 = scmp.eq.s32.totalorder %s22, 0
      %p131 = por %p129, %p130
      %p132 = scmp.ne.s32.totalorder %s124, %s126
      %p133 = scmp.eq.s32.totalorder %s27, 1
      %p134 = por %p132, %p133
      %p135 = scmp.ne.s32.totalorder %s126, %s127
      %p136 = scmp.eq.s32.totalorder %s27, 0
      %p137 = por %p135, %p136
      %p138 = scmp.ne.s32.totalorder %s126, %s127
      %p139 = scmp.eq.s32.totalorder %s28, 1
      %p140 = por %p138, %p139
      %p142 = scmp.ne.s32.totalorder %s127, %s141
      %p143 = scmp.eq.s32.totalorder %s28, 0
      %p144 = por %p142, %p143
      %s146 = sadd.s32 %s145, 1
      %p149 = scmp.eq.s32.totalorder %s22, 1
      %p150 = scmp.ne.s32.totalorder %s145, %s147
      %p151 = scmp.eq.s32.totalorder %s22, 0
      %p152 = por %p150, %p151
      %p153 = scmp.ne.s32.totalorder %s145, %s147
      %p154 = scmp.eq.s32.totalorder %s27, 1
      %p155 = por %p153, %p154
      %p156 = scmp.ne.s32.totalorder %s147, %s148
      %p157 = scmp.eq.s32.totalorder %s27, 0
      %p158 = por %p156, %p157
      %p159 = scmp.ne.s32.totalorder %s147, %s148
      %p160 = scmp.eq.s32.totalorder %s28, 1
      %p161 = por %p159, %p160
      %p163 = scmp.ne.s32.totalorder %s148, %s162
      %p164 = scmp.eq.s32.totalorder %s28, 0
      %p165 = por %p163, %p164
      %s167 = sadd.s32 %s166, 1
      %p170 = scmp.eq.s32.totalorder %s22, 1
      %p171 = scmp.ne.s32.totalorder %s166, %s168
      %p172 = scmp.eq.s32.totalorder %s22, 0
      %p173 = por %p171, %p172
      %p174 = scmp.ne.s32.totalorder %s166, %s168
      %p175 = scmp.eq.s32.totalorder %s27, 1
      %p176 = por %p174, %p175
      %p177 = scmp.ne.s32.totalorder %s168, %s169
      %p178 = scmp.eq.s32.totalorder %s27, 0
      %p179 = por %p177, %p178
      %p180 = scmp.ne.s32.totalorder %s168, %s169
      %p181 = scmp.eq.s32.totalorder %s28, 1
      %p182 = por %p180, %p181
      %p184 = scmp.ne.s32.totalorder %s169, %s183
      %p185 = scmp.eq.s32.totalorder %s28, 0
      %p186 = por %p184, %p185
      %s188 = sadd.s32 %s187, 1
      %p191 = scmp.eq.s32.totalorder %s22, 1
      %p192 = scmp.ne.s32.totalorder %s187, %s189
      %p193 = scmp.eq.s32.totalorder %s22, 0
      %p194 = por %p192, %p193
      %p195 = scmp.ne.s32.totalorder %s187, %s189
      %p196 = scmp.eq.s32.totalorder %s27, 1
      %p197 = por %p195, %p196
      %p198 = scmp.ne.s32.totalorder %s189, %s190
      %p199 = scmp.eq.s32.totalorder %s27, 0
      %p200 = por %p198, %p199
      %p201 = scmp.ne.s32.totalorder %s189, %s190
      %p202 = scmp.eq.s32.totalorder %s28, 1
      %p203 = por %p201, %p202
      %p205 = scmp.ne.s32.totalorder %s190, %s204
      %p206 = scmp.eq.s32.totalorder %s28, 0
      %p207 = por %p205, %p206
      %s209 = sadd.s32 %s208, 1
      %p212 = scmp.eq.s32.totalorder %s22, 1
      %p213 = scmp.ne.s32.totalorder %s208, %s210
      %p214 = scmp.eq.s32.totalorder %s22, 0
      %p215 = por %p213, %p214
      %p216 = scmp.ne.s32.totalorder %s208, %s210
      %p217 = scmp.eq.s32.totalorder %s27, 1
      %p218 = por %p216, %p217
      %p219 = scmp.ne.s32.totalorder %s210, %s211
      %p220 = scmp.eq.s32.totalorder %s27, 0
      %p221 = por %p219, %p220
      %p222 = scmp.ne.s32.totalorder %s210, %s211
      %p223 = scmp.eq.s32.totalorder %s28, 1
      %p224 = por %p222, %p223
      %p226 = scmp.ne.s32.totalorder %s211, %s225
      %p227 = scmp.eq.s32.totalorder %s28, 0
      %p228 = por %p226, %p227
      %s230 = sadd.s32 %s229, 1
      %p233 = scmp.eq.s32.totalorder %s22, 1
      %p234 = scmp.ne.s32.totalorder %s229, %s231
      %p235 = scmp.eq.s32.totalorder %s22, 0
      %p236 = por %p234, %p235
      %p237 = scmp.ne.s32.totalorder %s229, %s231
      %p238 = scmp.eq.s32.totalorder %s27, 1
      %p239 = por %p237, %p238
      %p240 = scmp.ne.s32.totalorder %s231, %s232
      %p241 = scmp.eq.s32.totalorder %s27, 0
      %p242 = por %p240, %p241
      %p243 = scmp.ne.s32.totalorder %s231, %s232
      %p244 = scmp.eq.s32.totalorder %s28, 1
      %p245 = por %p243, %p244
      %p247 = scmp.ne.s32.totalorder %s232, %s246
      %p248 = scmp.eq.s32.totalorder %s28, 0
      %p249 = por %p247, %p248
      %s251 = sadd.s32 %s250, 1
      %p254 = scmp.eq.s32.totalorder %s22, 1
      %p255 = scmp.ne.s32.totalorder %s250, %s252
      %p256 = scmp.eq.s32.totalorder %s22, 0
      %p257 = por %p255, %p256
      %p258 = scmp.ne.s32.totalorder %s250, %s252
      %p259 = scmp.eq.s32.totalorder %s27, 1
      %p260 = por %p258, %p259
      %p261 = scmp.ne.s32.totalorder %s252, %s253
      %p262 = scmp.eq.s32.totalorder %s27, 0
      %p263 = por %p261, %p262
      %p264 = scmp.ne.s32.totalorder %s252, %s253
      %p265 = scmp.eq.s32.totalorder %s28, 1
      %p266 = por %p264, %p265
      %p268 = scmp.ne.s32.totalorder %s253, %s267
      %p269 = scmp.eq.s32.totalorder %s28, 0
      %p270 = por %p268, %p269
      %s272 = sadd.s32 %s271, 1
      %p275 = scmp.eq.s32.totalorder %s22, 1
      %p276 = scmp.ne.s32.totalorder %s271, %s273
      %p277 = scmp.eq.s32.totalorder %s22, 0
      %p278 = por %p276, %p277
      %p279 = scmp.ne.s32.totalorder %s271, %s273
      %p280 = scmp.eq.s32.totalorder %s27, 1
      %p281 = por %p279, %p280
      %p282 = scmp.ne.s32.totalorder %s273, %s274
      %p283 = scmp.eq.s32.totalorder %s27, 0
      %p284 = por %p282, %p283
      %p285 = scmp.ne.s32.totalorder %s273, %s274
      %p286 = scmp.eq.s32.totalorder %s28, 1
      %p287 = por %p285, %p286
      %p289 = scmp.ne.s32.totalorder %s274, %s288
      %p290 = scmp.eq.s32.totalorder %s28, 0
      %p291 = por %p289, %p290
      %s293 = sadd.s32 %s292, 1
      %p296 = scmp.eq.s32.totalorder %s22, 1
      %p297 = scmp.ne.s32.totalorder %s292, %s294
      %p298 = scmp.eq.s32.totalorder %s22, 0
      %p299 = por %p297, %p298
      %p300 = scmp.ne.s32.totalorder %s292, %s294
      %p301 = scmp.eq.s32.totalorder %s27, 1
      %p302 = por %p300, %p301
      %p303 = scmp.ne.s32.totalorder %s294, %s295
      %p304 = scmp.eq.s32.totalorder %s27, 0
      %p305 = por %p303, %p304
      %p306 = scmp.ne.s32.totalorder %s294, %s295
      %p307 = scmp.eq.s32.totalorder %s28, 1
      %p308 = por %p306, %p307
      %p310 = scmp.ne.s32.totalorder %s295, %s309
      %p311 = scmp.eq.s32.totalorder %s28, 0
      %p312 = por %p310, %p311
      %s313 = ssub.s32 %s22, %s29
      %p314 = scmp.eq.s32.totalorder %s313, 0
      %s316 = sadd.s32 %s315, 1
      %s317 = scalar_select %p314, %s315, %s316
      %p320 = pneg %p314
      %p321 = scmp.eq.s32.totalorder %s22, 1
      %p322 = por %p320, %p321
      %p323 = scmp.ne.s32.totalorder %s315, %s318
      %p324 = scmp.eq.s32.totalorder %s22, 0
      %p325 = por %p323, %p324
      %p326 = scmp.ne.s32.totalorder %s315, %s318
      %p327 = scmp.eq.s32.totalorder %s27, 1
      %p328 = por %p326, %p327
      %p329 = scmp.ne.s32.totalorder %s318, %s319
      %p330 = scmp.eq.s32.totalorder %s27, 0
      %p331 = por %p329, %p330
      %p332 = scmp.ne.s32.totalorder %s318, %s319
      %p333 = scmp.eq.s32.totalorder %s28, 1
      %p334 = por %p332, %p333
      %p336 = scmp.ne.s32.totalorder %s319, %s335
      %p337 = scmp.eq.s32.totalorder %s28, 0
      %p338 = por %p336, %p337
      %p339 = scmp.le.s32.totalorder 1, %s22
      %p340 = scmp.lt.s32.totalorder %s22, 3
      %p341 = pnand %p339, %p340
      %p342 = pneg %p341
      // Predicated region
      $region9: #{tpu_custom_call.1} parent=5 // pred_check
        _
      $region10: #{tpu_custom_call.1} parent=5 // pred_check_branch
        %344 = sbr.rel (%p341) target = $region12
      $region11: #{tpu_custom_call.1} parent=5 // pred_region
        %s345 = ssub.s32 %s22, 1
        // Predicated region
        $region13: #{tpu_custom_call.1} parent=11 // pred_check
          %p346 = pneg %p95
        $region14: #{tpu_custom_call.1} parent=11 // pred_check_branch
          %348 = sbr.rel (%p346) target = $region16
        $region15: #{tpu_custom_call.1} parent=11 // pred_region
          _
        $region16: #{tpu_custom_call.1} parent=11 // pred_fallthru
          _
        // Predicated region
        $region17: #{tpu_custom_call.1} parent=11 // pred_check
          %p349 = pneg %p116
        $region18: #{tpu_custom_call.1} parent=11 // pred_check_branch
          %351 = sbr.rel (%p349) target = $region20
        $region19: #{tpu_custom_call.1} parent=11 // pred_region
          _
        $region20: #{tpu_custom_call.1} parent=11 // pred_fallthru
          _
        // Predicated region
        $region21: #{tpu_custom_call.1} parent=11 // pred_check
          %p352 = pneg %p137
        $region22: #{tpu_custom_call.1} parent=11 // pred_check_branch
          %354 = sbr.rel (%p352) target = $region24
        $region23: #{tpu_custom_call.1} parent=11 // pred_region
          _
        $region24: #{tpu_custom_call.1} parent=11 // pred_fallthru
          _
        // Predicated region
        $region25: #{tpu_custom_call.1} parent=11 // pred_check
          %p355 = pneg %p158
        $region26: #{tpu_custom_call.1} parent=11 // pred_check_branch
          %357 = sbr.rel (%p355) target = $region28
        $region27: #{tpu_custom_call.1} parent=11 // pred_region
          _
        $region28: #{tpu_custom_call.1} parent=11 // pred_fallthru
          _
        // Predicated region
        $region29: #{tpu_custom_call.1} parent=11 // pred_check
          %p358 = pneg %p179
        $region30: #{tpu_custom_call.1} parent=11 // pred_check_branch
          %360 = sbr.rel (%p358) target = $region32
        $region31: #{tpu_custom_call.1} parent=11 // pred_region
          _
        $region32: #{tpu_custom_call.1} parent=11 // pred_fallthru
          _
        // Predicated region
        $region33: #{tpu_custom_call.1} parent=11 // pred_check
          %p361 = pneg %p200
        $region34: #{tpu_custom_call.1} parent=11 // pred_check_branch
          %363 = sbr.rel (%p361) target = $region36
        $region35: #{tpu_custom_call.1} parent=11 // pred_region
          _
        $region36: #{tpu_custom_call.1} parent=11 // pred_fallthru
          _
        // Predicated region
        $region37: #{tpu_custom_call.1} parent=11 // pred_check
          %p364 = pneg %p221
        $region38: #{tpu_custom_call.1} parent=11 // pred_check_branch
          %366 = sbr.rel (%p364) target = $region40
        $region39: #{tpu_custom_call.1} parent=11 // pred_region
          _
        $region40: #{tpu_custom_call.1} parent=11 // pred_fallthru
          _
        // Predicated region
        $region41: #{tpu_custom_call.1} parent=11 // pred_check
          %p367 = pneg %p242
        $region42: #{tpu_custom_call.1} parent=11 // pred_check_branch
          %369 = sbr.rel (%p367) target = $region44
        $region43: #{tpu_custom_call.1} parent=11 // pred_region
          _
        $region44: #{tpu_custom_call.1} parent=11 // pred_fallthru
          _
        // Predicated region
        $region45: #{tpu_custom_call.1} parent=11 // pred_check
          %p370 = pneg %p263
        $region46: #{tpu_custom_call.1} parent=11 // pred_check_branch
          %372 = sbr.rel (%p370) target = $region48
        $region47: #{tpu_custom_call.1} parent=11 // pred_region
          _
        $region48: #{tpu_custom_call.1} parent=11 // pred_fallthru
          _
        // Predicated region
        $region49: #{tpu_custom_call.1} parent=11 // pred_check
          %p373 = pneg %p284
        $region50: #{tpu_custom_call.1} parent=11 // pred_check_branch
          %375 = sbr.rel (%p373) target = $region52
        $region51: #{tpu_custom_call.1} parent=11 // pred_region
          _
        $region52: #{tpu_custom_call.1} parent=11 // pred_fallthru
          _
        // Predicated region
        $region53: #{tpu_custom_call.1} parent=11 // pred_check
          %p376 = pneg %p305
        $region54: #{tpu_custom_call.1} parent=11 // pred_check_branch
          %378 = sbr.rel (%p376) target = $region56
        $region55: #{tpu_custom_call.1} parent=11 // pred_region
          _
        $region56: #{tpu_custom_call.1} parent=11 // pred_fallthru
          _
      $region12: #{tpu_custom_call.1} parent=5 // pred_fallthru
        _
      %p379 = scmp.lt.s32.totalorder %s22, 2
      // Predicated region
      $region57: #{tpu_custom_call.1} parent=5 // pred_check
        %p380 = pneg %p379
      $region58: #{tpu_custom_call.1} parent=5 // pred_check_branch
        %382 = sbr.rel (%p380) target = $region60
      $region59: #{tpu_custom_call.1} parent=5 // pred_region
        // Predicated region
        $region61: #{tpu_custom_call.1} parent=59 // pred_check
          %p383 = pneg %p42
        $region62: #{tpu_custom_call.1} parent=59 // pred_check_branch
          %385 = sbr.rel (%p383) target = $region64
        $region63: #{tpu_custom_call.1} parent=59 // pred_region
          %p386 = scmp.lt.s32.totalorder %s22, 1
          %s387 = scalar_select %p386, %s22, 1
          %s388 = smul.addr %s387, 4
          %s389 = scalar_lea.vmem %s0, %s388
        $region64: #{tpu_custom_call.1} parent=59 // pred_fallthru
          _
        // Predicated region
        $region65: #{tpu_custom_call.1} parent=59 // pred_check
          %p390 = pneg %p68
        $region66: #{tpu_custom_call.1} parent=59 // pred_check_branch
          %392 = sbr.rel (%p390) target = $region68
        $region67: #{tpu_custom_call.1} parent=59 // pred_region
          %p393 = scmp.lt.s32.totalorder %s22, 1
          %s394 = scalar_select %p393, %s22, 1
          %s395 = smul.addr %s394, 4
          %s396 = scalar_lea.vmem %s1, %s395
        $region68: #{tpu_custom_call.1} parent=59 // pred_fallthru
          _
      $region60: #{tpu_custom_call.1} parent=5 // pred_fallthru
        _
      %p397 = scmp.le.s32.totalorder 1, %s22
      %p398 = scmp.lt.s32.totalorder %s22, 3
      %p399 = pnand %p397, %p398
      %p400 = pneg %p399
      // Predicated region
      $region69: #{tpu_custom_call.1} parent=5 // pred_check
        _
      $region70: #{tpu_custom_call.1} parent=5 // pred_check_branch
        %402 = sbr.rel (%p399) target = $region72
      $region71: #{tpu_custom_call.1} parent=5 // pred_region
        %s403 = ssub.s32 %s22, 1
        %p404 = scmp.lt.s32.totalorder %s27, 1
        %s405 = scalar_select %p404, %s27, 1
        %s406 = smul.addr %s405, 4
        %s407 = scalar_lea.vmem %s0, %s406
        %p408 = pneg %p48
        %p409 = pneg %p45
        %p410 = scmp.lt.s32.totalorder %s27, 1
        %s411 = scalar_select %p410, %s27, 1
        %s412 = smul.addr %s411, 4
        %s413 = scalar_lea.vmem %s1, %s412
        %p414 = pneg %p74
        %p415 = pneg %p71
        %p416 = pneg %p95
        %p417 = pneg %p92
        %p418 = pneg %p116
        %p419 = pneg %p113
        %p420 = pneg %p137
        %p421 = pneg %p134
        %p422 = pneg %p158
        %p423 = pneg %p155
        %p424 = pneg %p179
        %p425 = pneg %p176
        %p426 = pneg %p200
        %p427 = pneg %p197
        %p428 = pneg %p221
        %p429 = pneg %p218
        %p430 = pneg %p242
        %p431 = pneg %p239
        %p432 = pneg %p263
        %p433 = pneg %p260
        %p434 = pneg %p284
        %p435 = pneg %p281
        %p436 = pneg %p305
        %p437 = pneg %p302
        %p438 = pneg %p331
        %p439 = pneg %p328
        %s440 = sand.u32 %s318, 1
        %s441 = scalar_lea.sflag [#allocation3], %s440
        %s442 = sand.u32 %s318, 1
        %s443 = smul.addr %s442, 8
        %s444 = scalar_lea.vmem [#allocation2], %s443
        %p445 = scmp.lt.s32.totalorder %s27, 1
        %s446 = scalar_select %p445, %s27, 1
        %s447 = smul.addr %s446, 4
        %s448 = scalar_lea.vmem %s0, %s447
        %p449 = scmp.lt.s32.totalorder %s27, 1
        %s450 = scalar_select %p449, %s27, 1
        %s451 = smul.addr %s450, 4
        %s452 = scalar_lea.vmem %s1, %s451
        %v454 = vld [vmem:[%s448] sm:$0xf]
        %v455 = vld [vmem:[%s452] sm:$0xf]
        %v456 = vld [vmem:[%s2] sm:$0xf]
        %v457 = vld [vmem:[%s2 + $0x4] sm:$0xf]
        %v458 = vld [vmem:[%s2 + $0x8] sm:$0xf]
        %v459 = vld [vmem:[%s2 + $0xc] sm:$0xf]
        %v460 = vld [vmem:[%s2 + $0x10] sm:$0xf]
        %v461 = vld [vmem:[%s2 + $0x14] sm:$0xf]
        %v462 = vld [vmem:[%s2 + $0x18] sm:$0xf]
        %v463 = vld [vmem:[%s2 + $0x1c] sm:$0xf]
        %v464 = vld [vmem:[%s2 + $0x20] sm:$0xf]
        %v465 = vld [vmem:[%s2 + $0x24] sm:$0xf]
        %v466 = vld [vmem:[%s2 + $0x28] sm:$0xf]
        %v467 = vld [vmem:[%s2 + $0x2c] sm:$0xf]
        %v468 = vld [vmem:[%s2 + $0x30] sm:$0xf]
        %v469 = vld [vmem:[%s2 + $0x34] sm:$0xf]
        %v470 = vld [vmem:[%s2 + $0x38] sm:$0xf]
        %v471 = vld [vmem:[%s2 + $0x3c] sm:$0xf]
        %v472 = vld [vmem:[%s3] sm:$0x1]
        %v473 = vld [vmem:[%s3 + $0x1] sm:$0x1]
        %v474 = vld [vmem:[%s3 + $0x2] sm:$0x1]
        %v475 = vld [vmem:[%s3 + $0x3] sm:$0x1]
        %v476 = vld [vmem:[%s4] sm:$0xf]
        %v477 = vld [vmem:[%s4 + $0x4] sm:$0xf]
        %v478 = vld [vmem:[%s4 + $0x8] sm:$0xf]
        %v479 = vld [vmem:[%s4 + $0xc] sm:$0xf]
        %v480 = vld [vmem:[%s12] sm:$0x1]
        %v485 = vlaneseq
        %v486 = vshrl.u32 %v485, 7
        %v487 = vsub.s32 0, %v486
        %v488 = vrot.slane %v472, %v487
        %v489 = vlaneseq
        %v490 = vshrl.u32 %v489, 7
        %v491 = vsub.s32 0, %v490
        %v492 = vrot.slane %v473, %v491
        %v493 = vlaneseq
        %v494 = vshrl.u32 %v493, 7
        %v495 = vsub.s32 0, %v494
        %v496 = vrot.slane %v474, %v495
        %v497 = vlaneseq
        %v498 = vshrl.u32 %v497, 7
        %v499 = vsub.s32 0, %v498
        %v500 = vrot.slane %v475, %v499
        %v509 = vunpack.c.l.b16 %v456
        %v510 = vunpack.c.l.b16 %v457
        %v511 = vunpack.c.l.b16 %v458
        %v512 = vunpack.c.l.b16 %v459
        %v513 = vpack.c.b16 %v510, %v509
        %v514 = vpack.c.b16 %v512, %v511
        %vm517 = vcmask 261120
        %v519 = vsel %vm517, %v454, 0
        %521 = vmatprep.subr.bf16.mxu0 0
        %522 = vmatpush1.bf16.msra.mxu0 0
        %523 = vmatprep.subr.bf16.mxu0 0
        %524 = vmatpush1.bf16.msra.mxu0 0
        %525 = vmatprep.subr.bf16.mxu0 0
        %526 = vmatpush1.bf16.msra.mxu0 0
        %527 = vmatprep.subr.bf16.mxu0 0
        %528 = vmatpush1.bf16.msra.mxu0 0
        %529 = vmatprep.subr.bf16.mxu0 0
        %530 = vmatpush1.bf16.msra.mxu0 0
        %531 = vmatprep.subr.bf16.mxu0 0
        %532 = vmatpush1.bf16.msra.mxu0 0
        %533 = vmatprep.subr.bf16.mxu0 0
        %534 = vmatpush1.bf16.msra.mxu0 %v514
        %535 = vmatprep.subr.bf16.mxu0 0
        %536 = vmatpush1.bf16.msra.mxu0 %v513
        %537 = vmatprep.subr.bf16.mxu0 0
        %538 = vmatpush2.bf16.msra.mxu0 0
        %539 = vmatprep.subr.bf16.mxu0 0
        %540 = vmatpush2.bf16.msra.mxu0 0
        %541 = vmatprep.subr.bf16.mxu0 0
        %542 = vmatpush2.bf16.msra.mxu0 0
        %543 = vmatprep.subr.bf16.mxu0 0
        %544 = vmatpush2.bf16.msra.mxu0 0
        %545 = vmatprep.subr.bf16.mxu0 0
        %546 = vmatpush2.bf16.msra.mxu0 0
        %547 = vmatprep.subr.bf16.mxu0 0
        %548 = vmatpush2.bf16.msra.mxu0 0
        %549 = vmatprep.subr.bf16.mxu0 0
        %550 = vmatpush2.bf16.msra.mxu0 0
        %551 = vmatprep.subr.bf16.mxu0 0
        %552 = vmatpush2.bf16.msra.mxu0 0
        %553 = vmatprep.mubr.bf16.mxu0 0
        %554 = vmatmul.mubr.bf16.gmra.mxu0 %v519
        %v555 = vpop.f32.mrf.mxu0
        %v556 = vadd.f32 %v488, %v555
        %v557 = vpop.f32.mrf.mxu0
        %v558 = vpop.f32.mrf.mxu0
        %v559 = vpop.f32.mrf.mxu0
        %560 = vdwg.mxu0
        %v565 = vunpack.c.l.b16 %v460
        %v566 = vunpack.c.l.b16 %v461
        %v567 = vunpack.c.l.b16 %v462
        %v568 = vunpack.c.l.b16 %v463
        %v569 = vpack.c.b16 %v566, %v565
        %v570 = vpack.c.b16 %v568, %v567
        %573 = vmatprep.subr.bf16.mxu0 0
        %574 = vmatpush1.bf16.msra.mxu0 0
        %575 = vmatprep.subr.bf16.mxu0 0
        %576 = vmatpush1.bf16.msra.mxu0 0
        %577 = vmatprep.subr.bf16.mxu0 0
        %578 = vmatpush1.bf16.msra.mxu0 0
        %579 = vmatprep.subr.bf16.mxu0 0
        %580 = vmatpush1.bf16.msra.mxu0 0
        %581 = vmatprep.subr.bf16.mxu0 0
        %582 = vmatpush1.bf16.msra.mxu0 0
        %583 = vmatprep.subr.bf16.mxu0 0
        %584 = vmatpush1.bf16.msra.mxu0 0
        %585 = vmatprep.subr.bf16.mxu0 0
        %586 = vmatpush1.bf16.msra.mxu0 %v570
        %587 = vmatprep.subr.bf16.mxu0 0
        %588 = vmatpush1.bf16.msra.mxu0 %v569
        %589 = vmatprep.subr.bf16.mxu0 0
        %590 = vmatpush2.bf16.msra.mxu0 0
        %591 = vmatprep.subr.bf16.mxu0 0
        %592 = vmatpush2.bf16.msra.mxu0 0
        %593 = vmatprep.subr.bf16.mxu0 0
        %594 = vmatpush2.bf16.msra.mxu0 0
        %595 = vmatprep.subr.bf16.mxu0 0
        %596 = vmatpush2.bf16.msra.mxu0 0
        %597 = vmatprep.subr.bf16.mxu0 0
        %598 = vmatpush2.bf16.msra.mxu0 0
        %599 = vmatprep.subr.bf16.mxu0 0
        %600 = vmatpush2.bf16.msra.mxu0 0
        %601 = vmatprep.subr.bf16.mxu0 0
        %602 = vmatpush2.bf16.msra.mxu0 0
        %603 = vmatprep.subr.bf16.mxu0 0
        %604 = vmatpush2.bf16.msra.mxu0 0
        %605 = vmatprep.mubr.bf16.mxu0 0
        %606 = vmatmul.mubr.bf16.gmra.mxu0 %v519
        %v607 = vpop.f32.mrf.mxu0
        %v608 = vadd.f32 %v492, %v607
        %v609 = vpop.f32.mrf.mxu0
        %v610 = vpop.f32.mrf.mxu0
        %v611 = vpop.f32.mrf.mxu0
        %612 = vdwg.mxu0
        %v617 = vunpack.c.l.b16 %v464
        %v618 = vunpack.c.l.b16 %v465
        %v619 = vunpack.c.l.b16 %v466
        %v620 = vunpack.c.l.b16 %v467
        %v621 = vpack.c.b16 %v618, %v617
        %v622 = vpack.c.b16 %v620, %v619
        %625 = vmatprep.subr.bf16.mxu0 0
        %626 = vmatpush1.bf16.msra.mxu0 0
        %627 = vmatprep.subr.bf16.mxu0 0
        %628 = vmatpush1.bf16.msra.mxu0 0
        %629 = vmatprep.subr.bf16.mxu0 0
        %630 = vmatpush1.bf16.msra.mxu0 0
        %631 = vmatprep.subr.bf16.mxu0 0
        %632 = vmatpush1.bf16.msra.mxu0 0
        %633 = vmatprep.subr.bf16.mxu0 0
        %634 = vmatpush1.bf16.msra.mxu0 0
        %635 = vmatprep.subr.bf16.mxu0 0
        %636 = vmatpush1.bf16.msra.mxu0 0
        %637 = vmatprep.subr.bf16.mxu0 0
        %638 = vmatpush1.bf16.msra.mxu0 %v622
        %639 = vmatprep.subr.bf16.mxu0 0
        %640 = vmatpush1.bf16.msra.mxu0 %v621
        %641 = vmatprep.subr.bf16.mxu0 0
        %642 = vmatpush2.bf16.msra.mxu0 0
        %643 = vmatprep.subr.bf16.mxu0 0
        %644 = vmatpush2.bf16.msra.mxu0 0
        %645 = vmatprep.subr.bf16.mxu0 0
        %646 = vmatpush2.bf16.msra.mxu0 0
        %647 = vmatprep.subr.bf16.mxu0 0
        %648 = vmatpush2.bf16.msra.mxu0 0
        %649 = vmatprep.subr.bf16.mxu0 0
        %650 = vmatpush2.bf16.msra.mxu0 0
        %651 = vmatprep.subr.bf16.mxu0 0
        %652 = vmatpush2.bf16.msra.mxu0 0
        %653 = vmatprep.subr.bf16.mxu0 0
        %654 = vmatpush2.bf16.msra.mxu0 0
        %655 = vmatprep.subr.bf16.mxu0 0
        %656 = vmatpush2.bf16.msra.mxu0 0
        %657 = vmatprep.mubr.bf16.mxu0 0
        %658 = vmatmul.mubr.bf16.gmra.mxu0 %v519
        %v659 = vpop.f32.mrf.mxu0
        %v660 = vadd.f32 %v496, %v659
        %v661 = vpop.f32.mrf.mxu0
        %v662 = vpop.f32.mrf.mxu0
        %v663 = vpop.f32.mrf.mxu0
        %664 = vdwg.mxu0
        %v669 = vunpack.c.l.b16 %v468
        %v670 = vunpack.c.l.b16 %v469
        %v671 = vunpack.c.l.b16 %v470
        %v672 = vunpack.c.l.b16 %v471
        %v673 = vpack.c.b16 %v670, %v669
        %v674 = vpack.c.b16 %v672, %v671
        %677 = vmatprep.subr.bf16.mxu0 0
        %678 = vmatpush1.bf16.msra.mxu0 0
        %679 = vmatprep.subr.bf16.mxu0 0
        %680 = vmatpush1.bf16.msra.mxu0 0
        %681 = vmatprep.subr.bf16.mxu0 0
        %682 = vmatpush1.bf16.msra.mxu0 0
        %683 = vmatprep.subr.bf16.mxu0 0
        %684 = vmatpush1.bf16.msra.mxu0 0
        %685 = vmatprep.subr.bf16.mxu0 0
        %686 = vmatpush1.bf16.msra.mxu0 0
        %687 = vmatprep.subr.bf16.mxu0 0
        %688 = vmatpush1.bf16.msra.mxu0 0
        %689 = vmatprep.subr.bf16.mxu0 0
        %690 = vmatpush1.bf16.msra.mxu0 %v674
        %691 = vmatprep.subr.bf16.mxu0 0
        %692 = vmatpush1.bf16.msra.mxu0 %v673
        %693 = vmatprep.subr.bf16.mxu0 0
        %694 = vmatpush2.bf16.msra.mxu0 0
        %695 = vmatprep.subr.bf16.mxu0 0
        %696 = vmatpush2.bf16.msra.mxu0 0
        %697 = vmatprep.subr.bf16.mxu0 0
        %698 = vmatpush2.bf16.msra.mxu0 0
        %699 = vmatprep.subr.bf16.mxu0 0
        %700 = vmatpush2.bf16.msra.mxu0 0
        %701 = vmatprep.subr.bf16.mxu0 0
        %702 = vmatpush2.bf16.msra.mxu0 0
        %703 = vmatprep.subr.bf16.mxu0 0
        %704 = vmatpush2.bf16.msra.mxu0 0
        %705 = vmatprep.subr.bf16.mxu0 0
        %706 = vmatpush2.bf16.msra.mxu0 0
        %707 = vmatprep.subr.bf16.mxu0 0
        %708 = vmatpush2.bf16.msra.mxu0 0
        %709 = vmatprep.mubr.bf16.mxu0 0
        %710 = vmatmul.mubr.bf16.gmra.mxu0 %v519
        %v711 = vpop.f32.mrf.mxu0
        %v712 = vadd.f32 %v500, %v711
        %v713 = vpop.f32.mrf.mxu0
        %v714 = vpop.f32.mrf.mxu0
        %v715 = vpop.f32.mrf.mxu0
        %716 = vdwg.mxu0
        %v717 = vmul.f32 %v556, 0.35355338
        %v718 = vmul.f32 %v608, 0.35355338
        %v719 = vmul.f32 %v660, 0.35355338
        %v720 = vmul.f32 %v712, 0.35355338
        %722 = vrot.lane.b32.xlu0 %v556, 120
        %v723 = vpop.permute.xlu0 %722
        %vm724 = vcmask 64512
        %v726 = vsel %vm724, %v717, 0
        %v728 = vsel %vm724, %v723, 0
        %730 = vmatprep.subr.mxu0 0.0
        %731 = vmatpush1.xpose.msra.mxu0 0.0
        %732 = vmatprep.subr.mxu0 0.0
        %733 = vmatpush1.xpose.msra.mxu0 0.0
        %734 = vmatprep.subr.mxu0 0.0
        %735 = vmatpush1.xpose.msra.mxu0 0.0
        %736 = vmatprep.subr.mxu0 0.0
        %737 = vmatpush1.xpose.msra.mxu0 0.0
        %738 = vmatprep.subr.mxu0 0.0
        %739 = vmatpush1.xpose.msra.mxu0 0.0
        %740 = vmatprep.subr.mxu0 0.0
        %741 = vmatpush1.xpose.msra.mxu0 0.0
        %742 = vmatprep.subr.mxu0 0.0
        %743 = vmatpush1.xpose.msra.mxu0 0.0
        %744 = vmatprep.subr.mxu0 0.0
        %745 = vmatpush1.xpose.msra.mxu0 0.0
        %746 = vmatprep.subr.mxu0 0.0
        %747 = vmatpush1.xpose.msra.mxu0 0.0
        %748 = vmatprep.subr.mxu0 0.0
        %749 = vmatpush1.xpose.msra.mxu0 0.0
        %750 = vmatprep.subr.mxu0 0.0
        %751 = vmatpush1.xpose.msra.mxu0 0.0
        %752 = vmatprep.subr.mxu0 0.0
        %753 = vmatpush1.xpose.msra.mxu0 0.0
        %754 = vmatprep.subr.mxu0 0.0
        %755 = vmatpush1.xpose.msra.mxu0 0.0
        %756 = vmatprep.subr.mxu0 0.0
        %757 = vmatpush1.xpose.msra.mxu0 0.0
        %758 = vmatprep.subr.mxu0 0.0
        %759 = vmatpush1.xpose.msra.mxu0 0.0
        %760 = vmatprep.subr.mxu0 0.0
        %761 = vmatpush1.xpose.msra.mxu0 %v728
        %762 = vmatprep.subr.mxu0 0.0
        %763 = vmatpush2.xpose.msra.mxu0 0.0
        %764 = vmatprep.subr.mxu0 0.0
        %765 = vmatpush2.xpose.msra.mxu0 0.0
        %766 = vmatprep.subr.mxu0 0.0
        %767 = vmatpush2.xpose.msra.mxu0 0.0
        %768 = vmatprep.subr.mxu0 0.0
        %769 = vmatpush2.xpose.msra.mxu0 0.0
        %770 = vmatprep.subr.mxu0 0.0
        %771 = vmatpush2.xpose.msra.mxu0 0.0
        %772 = vmatprep.subr.mxu0 0.0
        %773 = vmatpush2.xpose.msra.mxu0 0.0
        %774 = vmatprep.subr.mxu0 0.0
        %775 = vmatpush2.xpose.msra.mxu0 0.0
        %776 = vmatprep.subr.mxu0 0.0
        %777 = vmatpush2.xpose.msra.mxu0 0.0
        %778 = vmatprep.subr.mxu0 0.0
        %779 = vmatpush2.xpose.msra.mxu0 0.0
        %780 = vmatprep.subr.mxu0 0.0
        %781 = vmatpush2.xpose.msra.mxu0 0.0
        %782 = vmatprep.subr.mxu0 0.0
        %783 = vmatpush2.xpose.msra.mxu0 0.0
        %784 = vmatprep.subr.mxu0 0.0
        %785 = vmatpush2.xpose.msra.mxu0 0.0
        %786 = vmatprep.subr.mxu0 0.0
        %787 = vmatpush2.xpose.msra.mxu0 0.0
        %788 = vmatprep.subr.mxu0 0.0
        %789 = vmatpush2.xpose.msra.mxu0 0.0
        %790 = vmatprep.subr.mxu0 0.0
        %791 = vmatpush2.xpose.msra.mxu0 0.0
        %792 = vmatprep.subr.mxu0 0.0
        %793 = vmatpush2.xpose.msra.mxu0 0.0
        %794 = vmatprep.mubr.f32.mxu0 0.0
        %795 = vmatmul.mubr.f32.gmra.mxu0 %v726
        %v796 = vpop.f32.mrf.mxu0
        %v797 = vadd.f32 0.0, %v796
        %v798 = vpop.f32.mrf.mxu0
        %799 = vdwg.mxu0
        %801 = vrot.lane.b32.xlu0 %v608, 120
        %v802 = vpop.permute.xlu0 %801
        %v804 = vsel %vm724, %v718, 0
        %v806 = vsel %vm724, %v802, 0
        %808 = vmatprep.subr.mxu0 0.0
        %809 = vmatpush1.xpose.msra.mxu0 0.0
        %810 = vmatprep.subr.mxu0 0.0
        %811 = vmatpush1.xpose.msra.mxu0 0.0
        %812 = vmatprep.subr.mxu0 0.0
        %813 = vmatpush1.xpose.msra.mxu0 0.0
        %814 = vmatprep.subr.mxu0 0.0
        %815 = vmatpush1.xpose.msra.mxu0 0.0
        %816 = vmatprep.subr.mxu0 0.0
        %817 = vmatpush1.xpose.msra.mxu0 0.0
        %818 = vmatprep.subr.mxu0 0.0
        %819 = vmatpush1.xpose.msra.mxu0 0.0
        %820 = vmatprep.subr.mxu0 0.0
        %821 = vmatpush1.xpose.msra.mxu0 0.0
        %822 = vmatprep.subr.mxu0 0.0
        %823 = vmatpush1.xpose.msra.mxu0 0.0
        %824 = vmatprep.subr.mxu0 0.0
        %825 = vmatpush1.xpose.msra.mxu0 0.0
        %826 = vmatprep.subr.mxu0 0.0
        %827 = vmatpush1.xpose.msra.mxu0 0.0
        %828 = vmatprep.subr.mxu0 0.0
        %829 = vmatpush1.xpose.msra.mxu0 0.0
        %830 = vmatprep.subr.mxu0 0.0
        %831 = vmatpush1.xpose.msra.mxu0 0.0
        %832 = vmatprep.subr.mxu0 0.0
        %833 = vmatpush1.xpose.msra.mxu0 0.0
        %834 = vmatprep.subr.mxu0 0.0
        %835 = vmatpush1.xpose.msra.mxu0 0.0
        %836 = vmatprep.subr.mxu0 0.0
        %837 = vmatpush1.xpose.msra.mxu0 0.0
        %838 = vmatprep.subr.mxu0 0.0
        %839 = vmatpush1.xpose.msra.mxu0 %v806
        %840 = vmatprep.subr.mxu0 0.0
        %841 = vmatpush2.xpose.msra.mxu0 0.0
        %842 = vmatprep.subr.mxu0 0.0
        %843 = vmatpush2.xpose.msra.mxu0 0.0
        %844 = vmatprep.subr.mxu0 0.0
        %845 = vmatpush2.xpose.msra.mxu0 0.0
        %846 = vmatprep.subr.mxu0 0.0
        %847 = vmatpush2.xpose.msra.mxu0 0.0
        %848 = vmatprep.subr.mxu0 0.0
        %849 = vmatpush2.xpose.msra.mxu0 0.0
        %850 = vmatprep.subr.mxu0 0.0
        %851 = vmatpush2.xpose.msra.mxu0 0.0
        %852 = vmatprep.subr.mxu0 0.0
        %853 = vmatpush2.xpose.msra.mxu0 0.0
        %854 = vmatprep.subr.mxu0 0.0
        %855 = vmatpush2.xpose.msra.mxu0 0.0
        %856 = vmatprep.subr.mxu0 0.0
        %857 = vmatpush2.xpose.msra.mxu0 0.0
        %858 = vmatprep.subr.mxu0 0.0
        %859 = vmatpush2.xpose.msra.mxu0 0.0
        %860 = vmatprep.subr.mxu0 0.0
        %861 = vmatpush2.xpose.msra.mxu0 0.0
        %862 = vmatprep.subr.mxu0 0.0
        %863 = vmatpush2.xpose.msra.mxu0 0.0
        %864 = vmatprep.subr.mxu0 0.0
        %865 = vmatpush2.xpose.msra.mxu0 0.0
        %866 = vmatprep.subr.mxu0 0.0
        %867 = vmatpush2.xpose.msra.mxu0 0.0
        %868 = vmatprep.subr.mxu0 0.0
        %869 = vmatpush2.xpose.msra.mxu0 0.0
        %870 = vmatprep.subr.mxu0 0.0
        %871 = vmatpush2.xpose.msra.mxu0 0.0
        %872 = vmatprep.mubr.f32.mxu0 0.0
        %873 = vmatmul.mubr.f32.gmra.mxu0 %v804
        %v874 = vpop.f32.mrf.mxu0
        %v875 = vadd.f32 0.0, %v874
        %v876 = vpop.f32.mrf.mxu0
        %877 = vdwg.mxu0
        %879 = vrot.lane.b32.xlu0 %v660, 120
        %v880 = vpop.permute.xlu0 %879
        %v882 = vsel %vm724, %v719, 0
        %v884 = vsel %vm724, %v880, 0
        %886 = vmatprep.subr.mxu0 0.0
        %887 = vmatpush1.xpose.msra.mxu0 0.0
        %888 = vmatprep.subr.mxu0 0.0
        %889 = vmatpush1.xpose.msra.mxu0 0.0
        %890 = vmatprep.subr.mxu0 0.0
        %891 = vmatpush1.xpose.msra.mxu0 0.0
        %892 = vmatprep.subr.mxu0 0.0
        %893 = vmatpush1.xpose.msra.mxu0 0.0
        %894 = vmatprep.subr.mxu0 0.0
        %895 = vmatpush1.xpose.msra.mxu0 0.0
        %896 = vmatprep.subr.mxu0 0.0
        %897 = vmatpush1.xpose.msra.mxu0 0.0
        %898 = vmatprep.subr.mxu0 0.0
        %899 = vmatpush1.xpose.msra.mxu0 0.0
        %900 = vmatprep.subr.mxu0 0.0
        %901 = vmatpush1.xpose.msra.mxu0 0.0
        %902 = vmatprep.subr.mxu0 0.0
        %903 = vmatpush1.xpose.msra.mxu0 0.0
        %904 = vmatprep.subr.mxu0 0.0
        %905 = vmatpush1.xpose.msra.mxu0 0.0
        %906 = vmatprep.subr.mxu0 0.0
        %907 = vmatpush1.xpose.msra.mxu0 0.0
        %908 = vmatprep.subr.mxu0 0.0
        %909 = vmatpush1.xpose.msra.mxu0 0.0
        %910 = vmatprep.subr.mxu0 0.0
        %911 = vmatpush1.xpose.msra.mxu0 0.0
        %912 = vmatprep.subr.mxu0 0.0
        %913 = vmatpush1.xpose.msra.mxu0 0.0
        %914 = vmatprep.subr.mxu0 0.0
        %915 = vmatpush1.xpose.msra.mxu0 0.0
        %916 = vmatprep.subr.mxu0 0.0
        %917 = vmatpush1.xpose.msra.mxu0 %v884
        %918 = vmatprep.subr.mxu0 0.0
        %919 = vmatpush2.xpose.msra.mxu0 0.0
        %920 = vmatprep.subr.mxu0 0.0
        %921 = vmatpush2.xpose.msra.mxu0 0.0
        %922 = vmatprep.subr.mxu0 0.0
        %923 = vmatpush2.xpose.msra.mxu0 0.0
        %924 = vmatprep.subr.mxu0 0.0
        %925 = vmatpush2.xpose.msra.mxu0 0.0
        %926 = vmatprep.subr.mxu0 0.0
        %927 = vmatpush2.xpose.msra.mxu0 0.0
        %928 = vmatprep.subr.mxu0 0.0
        %929 = vmatpush2.xpose.msra.mxu0 0.0
        %930 = vmatprep.subr.mxu0 0.0
        %931 = vmatpush2.xpose.msra.mxu0 0.0
        %932 = vmatprep.subr.mxu0 0.0
        %933 = vmatpush2.xpose.msra.mxu0 0.0
        %934 = vmatprep.subr.mxu0 0.0
        %935 = vmatpush2.xpose.msra.mxu0 0.0
        %936 = vmatprep.subr.mxu0 0.0
        %937 = vmatpush2.xpose.msra.mxu0 0.0
        %938 = vmatprep.subr.mxu0 0.0
        %939 = vmatpush2.xpose.msra.mxu0 0.0
        %940 = vmatprep.subr.mxu0 0.0
        %941 = vmatpush2.xpose.msra.mxu0 0.0
        %942 = vmatprep.subr.mxu0 0.0
        %943 = vmatpush2.xpose.msra.mxu0 0.0
        %944 = vmatprep.subr.mxu0 0.0
        %945 = vmatpush2.xpose.msra.mxu0 0.0
        %946 = vmatprep.subr.mxu0 0.0
        %947 = vmatpush2.xpose.msra.mxu0 0.0
        %948 = vmatprep.subr.mxu0 0.0
        %949 = vmatpush2.xpose.msra.mxu0 0.0
        %950 = vmatprep.mubr.f32.mxu0 0.0
        %951 = vmatmul.mubr.f32.gmra.mxu0 %v882
        %v952 = vpop.f32.mrf.mxu0
        %v953 = vadd.f32 0.0, %v952
        %v954 = vpop.f32.mrf.mxu0
        %955 = vdwg.mxu0
        %957 = vrot.lane.b32.xlu0 %v712, 120
        %v958 = vpop.permute.xlu0 %957
        %v960 = vsel %vm724, %v720, 0
        %v962 = vsel %vm724, %v958, 0
        %964 = vmatprep.subr.mxu0 0.0
        %965 = vmatpush1.xpose.msra.mxu0 0.0
        %966 = vmatprep.subr.mxu0 0.0
        %967 = vmatpush1.xpose.msra.mxu0 0.0
        %968 = vmatprep.subr.mxu0 0.0
        %969 = vmatpush1.xpose.msra.mxu0 0.0
        %970 = vmatprep.subr.mxu0 0.0
        %971 = vmatpush1.xpose.msra.mxu0 0.0
        %972 = vmatprep.subr.mxu0 0.0
        %973 = vmatpush1.xpose.msra.mxu0 0.0
        %974 = vmatprep.subr.mxu0 0.0
        %975 = vmatpush1.xpose.msra.mxu0 0.0
        %976 = vmatprep.subr.mxu0 0.0
        %977 = vmatpush1.xpose.msra.mxu0 0.0
        %978 = vmatprep.subr.mxu0 0.0
        %979 = vmatpush1.xpose.msra.mxu0 0.0
        %980 = vmatprep.subr.mxu0 0.0
        %981 = vmatpush1.xpose.msra.mxu0 0.0
        %982 = vmatprep.subr.mxu0 0.0
        %983 = vmatpush1.xpose.msra.mxu0 0.0
        %984 = vmatprep.subr.mxu0 0.0
        %985 = vmatpush1.xpose.msra.mxu0 0.0
        %986 = vmatprep.subr.mxu0 0.0
        %987 = vmatpush1.xpose.msra.mxu0 0.0
        %988 = vmatprep.subr.mxu0 0.0
        %989 = vmatpush1.xpose.msra.mxu0 0.0
        %990 = vmatprep.subr.mxu0 0.0
        %991 = vmatpush1.xpose.msra.mxu0 0.0
        %992 = vmatprep.subr.mxu0 0.0
        %993 = vmatpush1.xpose.msra.mxu0 0.0
        %994 = vmatprep.subr.mxu0 0.0
        %995 = vmatpush1.xpose.msra.mxu0 %v962
        %996 = vmatprep.subr.mxu0 0.0
        %997 = vmatpush2.xpose.msra.mxu0 0.0
        %998 = vmatprep.subr.mxu0 0.0
        %999 = vmatpush2.xpose.msra.mxu0 0.0
        %1000 = vmatprep.subr.mxu0 0.0
        %1001 = vmatpush2.xpose.msra.mxu0 0.0
        %1002 = vmatprep.subr.mxu0 0.0
        %1003 = vmatpush2.xpose.msra.mxu0 0.0
        %1004 = vmatprep.subr.mxu0 0.0
        %1005 = vmatpush2.xpose.msra.mxu0 0.0
        %1006 = vmatprep.subr.mxu0 0.0
        %1007 = vmatpush2.xpose.msra.mxu0 0.0
        %1008 = vmatprep.subr.mxu0 0.0
        %1009 = vmatpush2.xpose.msra.mxu0 0.0
        %1010 = vmatprep.subr.mxu0 0.0
        %1011 = vmatpush2.xpose.msra.mxu0 0.0
        %1012 = vmatprep.subr.mxu0 0.0
        %1013 = vmatpush2.xpose.msra.mxu0 0.0
        %1014 = vmatprep.subr.mxu0 0.0
        %1015 = vmatpush2.xpose.msra.mxu0 0.0
        %1016 = vmatprep.subr.mxu0 0.0
        %1017 = vmatpush2.xpose.msra.mxu0 0.0
        %1018 = vmatprep.subr.mxu0 0.0
        %1019 = vmatpush2.xpose.msra.mxu0 0.0
        %1020 = vmatprep.subr.mxu0 0.0
        %1021 = vmatpush2.xpose.msra.mxu0 0.0
        %1022 = vmatprep.subr.mxu0 0.0
        %1023 = vmatpush2.xpose.msra.mxu0 0.0
        %1024 = vmatprep.subr.mxu0 0.0
        %1025 = vmatpush2.xpose.msra.mxu0 0.0
        %1026 = vmatprep.subr.mxu0 0.0
        %1027 = vmatpush2.xpose.msra.mxu0 0.0
        %1028 = vmatprep.mubr.f32.mxu0 0.0
        %1029 = vmatmul.mubr.f32.gmra.mxu0 %v960
        %v1030 = vpop.f32.mrf.mxu0
        %v1031 = vadd.f32 0.0, %v1030
        %v1032 = vpop.f32.mrf.mxu0
        %1033 = vdwg.mxu0
        %v1034 = vsel %vm724, %v797, -inf
        %1035 = vmax.xlane.f32.xlu0 %v1034
        %v1036 = vpop.xlane.xlu0 %1035
        %v1037 = vsel %vm724, %v875, -inf
        %1038 = vmax.xlane.f32.xlu0 %v1037
        %v1039 = vpop.xlane.xlu0 %1038
        %v1040 = vsel %vm724, %v953, -inf
        %1041 = vmax.xlane.f32.xlu0 %v1040
        %v1042 = vpop.xlane.xlu0 %1041
        %v1043 = vsel %vm724, %v1031, -inf
        %1044 = vmax.xlane.f32.xlu0 %v1043
        %v1045 = vpop.xlane.xlu0 %1044
        %v1046 = vsub.f32 %v797, %v1036
        %v1047 = vsub.f32 %v875, %v1039
        %v1048 = vsub.f32 %v953, %v1042
        %v1049 = vsub.f32 %v1031, %v1045
        %v1050 = vmul.f32 %v1046, 1.442695
        %v1051 = vpow.pop %v1050
        %v1052 = vmul.f32 %v1047, 1.442695
        %v1053 = vpow.pop %v1052
        %v1054 = vmul.f32 %v1048, 1.442695
        %v1055 = vpow.pop %v1054
        %v1056 = vmul.f32 %v1049, 1.442695
        %v1057 = vpow.pop %v1056
        %v1058 = vsel %vm724, %v1051, 0.0
        %1059 = vadd.xlane.f32.xlu0 %v1058
        %v1060 = vpop.xlane.xlu0 %1059
        %v1061 = vsel %vm724, %v1053, 0.0
        %1062 = vadd.xlane.f32.xlu0 %v1061
        %v1063 = vpop.xlane.xlu0 %1062
        %v1064 = vsel %vm724, %v1055, 0.0
        %1065 = vadd.xlane.f32.xlu0 %v1064
        %v1066 = vpop.xlane.xlu0 %1065
        %v1067 = vsel %vm724, %v1057, 0.0
        %1068 = vadd.xlane.f32.xlu0 %v1067
        %v1069 = vpop.xlane.xlu0 %1068
        %v1070 = vrcp.pop %v1060
        %v1071 = vrcp.pop %v1063
        %v1072 = vrcp.pop %v1066
        %v1073 = vrcp.pop %v1069
        %v1074 = vmul.f32 %v1051, %v1070
        %v1075 = vmul.f32 %v1053, %v1071
        %v1076 = vmul.f32 %v1055, %v1072
        %v1077 = vmul.f32 %v1057, %v1073
        %1078 = vrot.lane.b32.xlu0 %v556, 112
        %v1079 = vpop.permute.xlu0 %1078
        %v1082 = vsel %vm724, %v1074, 0
        %1084 = vmatprep.subr.mxu0 0.0
        %1085 = vmatpush1.msra.mxu0 0.0
        %1086 = vmatprep.subr.mxu0 0.0
        %1087 = vmatpush1.msra.mxu0 0.0
        %1088 = vmatprep.subr.mxu0 0.0
        %1089 = vmatpush1.msra.mxu0 0.0
        %1090 = vmatprep.subr.mxu0 0.0
        %1091 = vmatpush1.msra.mxu0 0.0
        %1092 = vmatprep.subr.mxu0 0.0
        %1093 = vmatpush1.msra.mxu0 0.0
        %1094 = vmatprep.subr.mxu0 0.0
        %1095 = vmatpush1.msra.mxu0 0.0
        %1096 = vmatprep.subr.mxu0 0.0
        %1097 = vmatpush1.msra.mxu0 0.0
        %1098 = vmatprep.subr.mxu0 0.0
        %1099 = vmatpush1.msra.mxu0 0.0
        %1100 = vmatprep.subr.mxu0 0.0
        %1101 = vmatpush1.msra.mxu0 0.0
        %1102 = vmatprep.subr.mxu0 0.0
        %1103 = vmatpush1.msra.mxu0 0.0
        %1104 = vmatprep.subr.mxu0 0.0
        %1105 = vmatpush1.msra.mxu0 0.0
        %1106 = vmatprep.subr.mxu0 0.0
        %1107 = vmatpush1.msra.mxu0 0.0
        %1108 = vmatprep.subr.mxu0 0.0
        %1109 = vmatpush1.msra.mxu0 0.0
        %1110 = vmatprep.subr.mxu0 0.0
        %1111 = vmatpush1.msra.mxu0 0.0
        %1112 = vmatprep.subr.mxu0 0.0
        %1113 = vmatpush1.msra.mxu0 0.0
        %1114 = vmatprep.subr.mxu0 0.0
        %1115 = vmatpush1.msra.mxu0 %v1079
        %1116 = vmatprep.subr.mxu0 0.0
        %1117 = vmatpush2.msra.mxu0 0.0
        %1118 = vmatprep.subr.mxu0 0.0
        %1119 = vmatpush2.msra.mxu0 0.0
        %1120 = vmatprep.subr.mxu0 0.0
        %1121 = vmatpush2.msra.mxu0 0.0
        %1122 = vmatprep.subr.mxu0 0.0
        %1123 = vmatpush2.msra.mxu0 0.0
        %1124 = vmatprep.subr.mxu0 0.0
        %1125 = vmatpush2.msra.mxu0 0.0
        %1126 = vmatprep.subr.mxu0 0.0
        %1127 = vmatpush2.msra.mxu0 0.0
        %1128 = vmatprep.subr.mxu0 0.0
        %1129 = vmatpush2.msra.mxu0 0.0
        %1130 = vmatprep.subr.mxu0 0.0
        %1131 = vmatpush2.msra.mxu0 0.0
        %1132 = vmatprep.subr.mxu0 0.0
        %1133 = vmatpush2.msra.mxu0 0.0
        %1134 = vmatprep.subr.mxu0 0.0
        %1135 = vmatpush2.msra.mxu0 0.0
        %1136 = vmatprep.subr.mxu0 0.0
        %1137 = vmatpush2.msra.mxu0 0.0
        %1138 = vmatprep.subr.mxu0 0.0
        %1139 = vmatpush2.msra.mxu0 0.0
        %1140 = vmatprep.subr.mxu0 0.0
        %1141 = vmatpush2.msra.mxu0 0.0
        %1142 = vmatprep.subr.mxu0 0.0
        %1143 = vmatpush2.msra.mxu0 0.0
        %1144 = vmatprep.subr.mxu0 0.0
        %1145 = vmatpush2.msra.mxu0 0.0
        %1146 = vmatprep.subr.mxu0 0.0
        %1147 = vmatpush2.msra.mxu0 0.0
        %1148 = vmatprep.mubr.f32.mxu0 0.0
        %1149 = vmatmul.mubr.f32.gmra.mxu0 %v1082
        %v1150 = vpop.f32.mrf.mxu0
        %v1151 = vadd.f32 0.0, %v1150
        %v1152 = vpop.f32.mrf.mxu0
        %1153 = vdwg.mxu0
        %1154 = vrot.lane.b32.xlu0 %v608, 112
        %v1155 = vpop.permute.xlu0 %1154
        %v1158 = vsel %vm724, %v1075, 0
        %1160 = vmatprep.subr.mxu0 0.0
        %1161 = vmatpush1.msra.mxu0 0.0
        %1162 = vmatprep.subr.mxu0 0.0
        %1163 = vmatpush1.msra.mxu0 0.0
        %1164 = vmatprep.subr.mxu0 0.0
        %1165 = vmatpush1.msra.mxu0 0.0
        %1166 = vmatprep.subr.mxu0 0.0
        %1167 = vmatpush1.msra.mxu0 0.0
        %1168 = vmatprep.subr.mxu0 0.0
        %1169 = vmatpush1.msra.mxu0 0.0
        %1170 = vmatprep.subr.mxu0 0.0
        %1171 = vmatpush1.msra.mxu0 0.0
        %1172 = vmatprep.subr.mxu0 0.0
        %1173 = vmatpush1.msra.mxu0 0.0
        %1174 = vmatprep.subr.mxu0 0.0
        %1175 = vmatpush1.msra.mxu0 0.0
        %1176 = vmatprep.subr.mxu0 0.0
        %1177 = vmatpush1.msra.mxu0 0.0
        %1178 = vmatprep.subr.mxu0 0.0
        %1179 = vmatpush1.msra.mxu0 0.0
        %1180 = vmatprep.subr.mxu0 0.0
        %1181 = vmatpush1.msra.mxu0 0.0
        %1182 = vmatprep.subr.mxu0 0.0
        %1183 = vmatpush1.msra.mxu0 0.0
        %1184 = vmatprep.subr.mxu0 0.0
        %1185 = vmatpush1.msra.mxu0 0.0
        %1186 = vmatprep.subr.mxu0 0.0
        %1187 = vmatpush1.msra.mxu0 0.0
        %1188 = vmatprep.subr.mxu0 0.0
        %1189 = vmatpush1.msra.mxu0 0.0
        %1190 = vmatprep.subr.mxu0 0.0
        %1191 = vmatpush1.msra.mxu0 %v1155
        %1192 = vmatprep.subr.mxu0 0.0
        %1193 = vmatpush2.msra.mxu0 0.0
        %1194 = vmatprep.subr.mxu0 0.0
        %1195 = vmatpush2.msra.mxu0 0.0
        %1196 = vmatprep.subr.mxu0 0.0
        %1197 = vmatpush2.msra.mxu0 0.0
        %1198 = vmatprep.subr.mxu0 0.0
        %1199 = vmatpush2.msra.mxu0 0.0
        %1200 = vmatprep.subr.mxu0 0.0
        %1201 = vmatpush2.msra.mxu0 0.0
        %1202 = vmatprep.subr.mxu0 0.0
        %1203 = vmatpush2.msra.mxu0 0.0
        %1204 = vmatprep.subr.mxu0 0.0
        %1205 = vmatpush2.msra.mxu0 0.0
        %1206 = vmatprep.subr.mxu0 0.0
        %1207 = vmatpush2.msra.mxu0 0.0
        %1208 = vmatprep.subr.mxu0 0.0
        %1209 = vmatpush2.msra.mxu0 0.0
        %1210 = vmatprep.subr.mxu0 0.0
        %1211 = vmatpush2.msra.mxu0 0.0
        %1212 = vmatprep.subr.mxu0 0.0
        %1213 = vmatpush2.msra.mxu0 0.0
        %1214 = vmatprep.subr.mxu0 0.0
        %1215 = vmatpush2.msra.mxu0 0.0
        %1216 = vmatprep.subr.mxu0 0.0
        %1217 = vmatpush2.msra.mxu0 0.0
        %1218 = vmatprep.subr.mxu0 0.0
        %1219 = vmatpush2.msra.mxu0 0.0
        %1220 = vmatprep.subr.mxu0 0.0
        %1221 = vmatpush2.msra.mxu0 0.0
        %1222 = vmatprep.subr.mxu0 0.0
        %1223 = vmatpush2.msra.mxu0 0.0
        %1224 = vmatprep.mubr.f32.mxu0 0.0
        %1225 = vmatmul.mubr.f32.gmra.mxu0 %v1158
        %v1226 = vpop.f32.mrf.mxu0
        %v1227 = vadd.f32 0.0, %v1226
        %v1228 = vpop.f32.mrf.mxu0
        %1229 = vdwg.mxu0
        %1230 = vrot.lane.b32.xlu0 %v660, 112
        %v1231 = vpop.permute.xlu0 %1230
        %v1234 = vsel %vm724, %v1076, 0
        %1236 = vmatprep.subr.mxu0 0.0
        %1237 = vmatpush1.msra.mxu0 0.0
        %1238 = vmatprep.subr.mxu0 0.0
        %1239 = vmatpush1.msra.mxu0 0.0
        %1240 = vmatprep.subr.mxu0 0.0
        %1241 = vmatpush1.msra.mxu0 0.0
        %1242 = vmatprep.subr.mxu0 0.0
        %1243 = vmatpush1.msra.mxu0 0.0
        %1244 = vmatprep.subr.mxu0 0.0
        %1245 = vmatpush1.msra.mxu0 0.0
        %1246 = vmatprep.subr.mxu0 0.0
        %1247 = vmatpush1.msra.mxu0 0.0
        %1248 = vmatprep.subr.mxu0 0.0
        %1249 = vmatpush1.msra.mxu0 0.0
        %1250 = vmatprep.subr.mxu0 0.0
        %1251 = vmatpush1.msra.mxu0 0.0
        %1252 = vmatprep.subr.mxu0 0.0
        %1253 = vmatpush1.msra.mxu0 0.0
        %1254 = vmatprep.subr.mxu0 0.0
        %1255 = vmatpush1.msra.mxu0 0.0
        %1256 = vmatprep.subr.mxu0 0.0
        %1257 = vmatpush1.msra.mxu0 0.0
        %1258 = vmatprep.subr.mxu0 0.0
        %1259 = vmatpush1.msra.mxu0 0.0
        %1260 = vmatprep.subr.mxu0 0.0
        %1261 = vmatpush1.msra.mxu0 0.0
        %1262 = vmatprep.subr.mxu0 0.0
        %1263 = vmatpush1.msra.mxu0 0.0
        %1264 = vmatprep.subr.mxu0 0.0
        %1265 = vmatpush1.msra.mxu0 0.0
        %1266 = vmatprep.subr.mxu0 0.0
        %1267 = vmatpush1.msra.mxu0 %v1231
        %1268 = vmatprep.subr.mxu0 0.0
        %1269 = vmatpush2.msra.mxu0 0.0
        %1270 = vmatprep.subr.mxu0 0.0
        %1271 = vmatpush2.msra.mxu0 0.0
        %1272 = vmatprep.subr.mxu0 0.0
        %1273 = vmatpush2.msra.mxu0 0.0
        %1274 = vmatprep.subr.mxu0 0.0
        %1275 = vmatpush2.msra.mxu0 0.0
        %1276 = vmatprep.subr.mxu0 0.0
        %1277 = vmatpush2.msra.mxu0 0.0
        %1278 = vmatprep.subr.mxu0 0.0
        %1279 = vmatpush2.msra.mxu0 0.0
        %1280 = vmatprep.subr.mxu0 0.0
        %1281 = vmatpush2.msra.mxu0 0.0
        %1282 = vmatprep.subr.mxu0 0.0
        %1283 = vmatpush2.msra.mxu0 0.0
        %1284 = vmatprep.subr.mxu0 0.0
        %1285 = vmatpush2.msra.mxu0 0.0
        %1286 = vmatprep.subr.mxu0 0.0
        %1287 = vmatpush2.msra.mxu0 0.0
        %1288 = vmatprep.subr.mxu0 0.0
        %1289 = vmatpush2.msra.mxu0 0.0
        %1290 = vmatprep.subr.mxu0 0.0
        %1291 = vmatpush2.msra.mxu0 0.0
        %1292 = vmatprep.subr.mxu0 0.0
        %1293 = vmatpush2.msra.mxu0 0.0
        %1294 = vmatprep.subr.mxu0 0.0
        %1295 = vmatpush2.msra.mxu0 0.0
        %1296 = vmatprep.subr.mxu0 0.0
        %1297 = vmatpush2.msra.mxu0 0.0
        %1298 = vmatprep.subr.mxu0 0.0
        %1299 = vmatpush2.msra.mxu0 0.0
        %1300 = vmatprep.mubr.f32.mxu0 0.0
        %1301 = vmatmul.mubr.f32.gmra.mxu0 %v1234
        %v1302 = vpop.f32.mrf.mxu0
        %v1303 = vadd.f32 0.0, %v1302
        %v1304 = vpop.f32.mrf.mxu0
        %1305 = vdwg.mxu0
        %1306 = vrot.lane.b32.xlu0 %v712, 112
        %v1307 = vpop.permute.xlu0 %1306
        %v1310 = vsel %vm724, %v1077, 0
        %1312 = vmatprep.subr.mxu0 0.0
        %1313 = vmatpush1.msra.mxu0 0.0
        %1314 = vmatprep.subr.mxu0 0.0
        %1315 = vmatpush1.msra.mxu0 0.0
        %1316 = vmatprep.subr.mxu0 0.0
        %1317 = vmatpush1.msra.mxu0 0.0
        %1318 = vmatprep.subr.mxu0 0.0
        %1319 = vmatpush1.msra.mxu0 0.0
        %1320 = vmatprep.subr.mxu0 0.0
        %1321 = vmatpush1.msra.mxu0 0.0
        %1322 = vmatprep.subr.mxu0 0.0
        %1323 = vmatpush1.msra.mxu0 0.0
        %1324 = vmatprep.subr.mxu0 0.0
        %1325 = vmatpush1.msra.mxu0 0.0
        %1326 = vmatprep.subr.mxu0 0.0
        %1327 = vmatpush1.msra.mxu0 0.0
        %1328 = vmatprep.subr.mxu0 0.0
        %1329 = vmatpush1.msra.mxu0 0.0
        %1330 = vmatprep.subr.mxu0 0.0
        %1331 = vmatpush1.msra.mxu0 0.0
        %1332 = vmatprep.subr.mxu0 0.0
        %1333 = vmatpush1.msra.mxu0 0.0
        %1334 = vmatprep.subr.mxu0 0.0
        %1335 = vmatpush1.msra.mxu0 0.0
        %1336 = vmatprep.subr.mxu0 0.0
        %1337 = vmatpush1.msra.mxu0 0.0
        %1338 = vmatprep.subr.mxu0 0.0
        %1339 = vmatpush1.msra.mxu0 0.0
        %1340 = vmatprep.subr.mxu0 0.0
        %1341 = vmatpush1.msra.mxu0 0.0
        %1342 = vmatprep.subr.mxu0 0.0
        %1343 = vmatpush1.msra.mxu0 %v1307
        %1344 = vmatprep.subr.mxu0 0.0
        %1345 = vmatpush2.msra.mxu0 0.0
        %1346 = vmatprep.subr.mxu0 0.0
        %1347 = vmatpush2.msra.mxu0 0.0
        %1348 = vmatprep.subr.mxu0 0.0
        %1349 = vmatpush2.msra.mxu0 0.0
        %1350 = vmatprep.subr.mxu0 0.0
        %1351 = vmatpush2.msra.mxu0 0.0
        %1352 = vmatprep.subr.mxu0 0.0
        %1353 = vmatpush2.msra.mxu0 0.0
        %1354 = vmatprep.subr.mxu0 0.0
        %1355 = vmatpush2.msra.mxu0 0.0
        %1356 = vmatprep.subr.mxu0 0.0
        %1357 = vmatpush2.msra.mxu0 0.0
        %1358 = vmatprep.subr.mxu0 0.0
        %1359 = vmatpush2.msra.mxu0 0.0
        %1360 = vmatprep.subr.mxu0 0.0
        %1361 = vmatpush2.msra.mxu0 0.0
        %1362 = vmatprep.subr.mxu0 0.0
        %1363 = vmatpush2.msra.mxu0 0.0
        %1364 = vmatprep.subr.mxu0 0.0
        %1365 = vmatpush2.msra.mxu0 0.0
        %1366 = vmatprep.subr.mxu0 0.0
        %1367 = vmatpush2.msra.mxu0 0.0
        %1368 = vmatprep.subr.mxu0 0.0
        %1369 = vmatpush2.msra.mxu0 0.0
        %1370 = vmatprep.subr.mxu0 0.0
        %1371 = vmatpush2.msra.mxu0 0.0
        %1372 = vmatprep.subr.mxu0 0.0
        %1373 = vmatpush2.msra.mxu0 0.0
        %1374 = vmatprep.subr.mxu0 0.0
        %1375 = vmatpush2.msra.mxu0 0.0
        %1376 = vmatprep.mubr.f32.mxu0 0.0
        %1377 = vmatmul.mubr.f32.gmra.mxu0 %v1310
        %v1378 = vpop.f32.mrf.mxu0
        %v1379 = vadd.f32 0.0, %v1378
        %v1380 = vpop.f32.mrf.mxu0
        %1381 = vdwg.mxu0
        %v1383 = vsel %vm724, %v1151, 0
        %vm1385 = vcmask 1043456
        %v1387 = vsel %vm1385, %v476, 0
        %1389 = vmatprep.subr.bf16.mxu0 0
        %1390 = vmatpush1.bf16.msra.mxu0 0
        %1391 = vmatprep.subr.bf16.mxu0 0
        %1392 = vmatpush1.bf16.msra.mxu0 0
        %1393 = vmatprep.subr.bf16.mxu0 0
        %1394 = vmatpush1.bf16.msra.mxu0 0
        %1395 = vmatprep.subr.bf16.mxu0 0
        %1396 = vmatpush1.bf16.msra.mxu0 0
        %1397 = vmatprep.subr.bf16.mxu0 0
        %1398 = vmatpush1.bf16.msra.mxu0 0
        %1399 = vmatprep.subr.bf16.mxu0 0
        %1400 = vmatpush1.bf16.msra.mxu0 0
        %1401 = vmatprep.subr.bf16.mxu0 0
        %1402 = vmatpush1.bf16.msra.mxu0 0
        %1403 = vmatprep.subr.bf16.mxu0 0
        %1404 = vmatpush1.bf16.msra.mxu0 %v1387
        %1405 = vmatprep.subr.bf16.mxu0 0
        %1406 = vmatpush2.bf16.msra.mxu0 0
        %1407 = vmatprep.subr.bf16.mxu0 0
        %1408 = vmatpush2.bf16.msra.mxu0 0
        %1409 = vmatprep.subr.bf16.mxu0 0
        %1410 = vmatpush2.bf16.msra.mxu0 0
        %1411 = vmatprep.subr.bf16.mxu0 0
        %1412 = vmatpush2.bf16.msra.mxu0 0
        %1413 = vmatprep.subr.bf16.mxu0 0
        %1414 = vmatpush2.bf16.msra.mxu0 0
        %1415 = vmatprep.subr.bf16.mxu0 0
        %1416 = vmatpush2.bf16.msra.mxu0 0
        %1417 = vmatprep.subr.bf16.mxu0 0
        %1418 = vmatpush2.bf16.msra.mxu0 0
        %1419 = vmatprep.subr.bf16.mxu0 0
        %1420 = vmatpush2.bf16.msra.mxu0 0
        %1421 = vmatprep.mubr.f32.mxu0 0.0
        %1422 = vmatmul.mubr.f32.gmra.mxu0 %v1383
        %v1423 = vpop.f32.mrf.mxu0
        %v1424 = vadd.f32 0.0, %v1423
        %v1425 = vpop.f32.mrf.mxu0
        %1426 = vdwg.mxu0
        %v1428 = vsel %vm724, %v1227, 0
        %v1431 = vsel %vm1385, %v477, 0
        %1433 = vmatprep.subr.bf16.mxu0 0
        %1434 = vmatpush1.bf16.msra.mxu0 0
        %1435 = vmatprep.subr.bf16.mxu0 0
        %1436 = vmatpush1.bf16.msra.mxu0 0
        %1437 = vmatprep.subr.bf16.mxu0 0
        %1438 = vmatpush1.bf16.msra.mxu0 0
        %1439 = vmatprep.subr.bf16.mxu0 0
        %1440 = vmatpush1.bf16.msra.mxu0 0
        %1441 = vmatprep.subr.bf16.mxu0 0
        %1442 = vmatpush1.bf16.msra.mxu0 0
        %1443 = vmatprep.subr.bf16.mxu0 0
        %1444 = vmatpush1.bf16.msra.mxu0 0
        %1445 = vmatprep.subr.bf16.mxu0 0
        %1446 = vmatpush1.bf16.msra.mxu0 0
        %1447 = vmatprep.subr.bf16.mxu0 0
        %1448 = vmatpush1.bf16.msra.mxu0 %v1431
        %1449 = vmatprep.subr.bf16.mxu0 0
        %1450 = vmatpush2.bf16.msra.mxu0 0
        %1451 = vmatprep.subr.bf16.mxu0 0
        %1452 = vmatpush2.bf16.msra.mxu0 0
        %1453 = vmatprep.subr.bf16.mxu0 0
        %1454 = vmatpush2.bf16.msra.mxu0 0
        %1455 = vmatprep.subr.bf16.mxu0 0
        %1456 = vmatpush2.bf16.msra.mxu0 0
        %1457 = vmatprep.subr.bf16.mxu0 0
        %1458 = vmatpush2.bf16.msra.mxu0 0
        %1459 = vmatprep.subr.bf16.mxu0 0
        %1460 = vmatpush2.bf16.msra.mxu0 0
        %1461 = vmatprep.subr.bf16.mxu0 0
        %1462 = vmatpush2.bf16.msra.mxu0 0
        %1463 = vmatprep.subr.bf16.mxu0 0
        %1464 = vmatpush2.bf16.msra.mxu0 0
        %1465 = vmatprep.mubr.f32.mxu0 0.0
        %1466 = vmatmul.mubr.f32.gmra.mxu0 %v1428
        %v1467 = vpop.f32.mrf.mxu0
        %v1468 = vadd.f32 0.0, %v1467
        %v1469 = vpop.f32.mrf.mxu0
        %1470 = vdwg.mxu0
        %v1472 = vsel %vm724, %v1303, 0
        %v1475 = vsel %vm1385, %v478, 0
        %1477 = vmatprep.subr.bf16.mxu0 0
        %1478 = vmatpush1.bf16.msra.mxu0 0
        %1479 = vmatprep.subr.bf16.mxu0 0
        %1480 = vmatpush1.bf16.msra.mxu0 0
        %1481 = vmatprep.subr.bf16.mxu0 0
        %1482 = vmatpush1.bf16.msra.mxu0 0
        %1483 = vmatprep.subr.bf16.mxu0 0
        %1484 = vmatpush1.bf16.msra.mxu0 0
        %1485 = vmatprep.subr.bf16.mxu0 0
        %1486 = vmatpush1.bf16.msra.mxu0 0
        %1487 = vmatprep.subr.bf16.mxu0 0
        %1488 = vmatpush1.bf16.msra.mxu0 0
        %1489 = vmatprep.subr.bf16.mxu0 0
        %1490 = vmatpush1.bf16.msra.mxu0 0
        %1491 = vmatprep.subr.bf16.mxu0 0
        %1492 = vmatpush1.bf16.msra.mxu0 %v1475
        %1493 = vmatprep.subr.bf16.mxu0 0
        %1494 = vmatpush2.bf16.msra.mxu0 0
        %1495 = vmatprep.subr.bf16.mxu0 0
        %1496 = vmatpush2.bf16.msra.mxu0 0
        %1497 = vmatprep.subr.bf16.mxu0 0
        %1498 = vmatpush2.bf16.msra.mxu0 0
        %1499 = vmatprep.subr.bf16.mxu0 0
        %1500 = vmatpush2.bf16.msra.mxu0 0
        %1501 = vmatprep.subr.bf16.mxu0 0
        %1502 = vmatpush2.bf16.msra.mxu0 0
        %1503 = vmatprep.subr.bf16.mxu0 0
        %1504 = vmatpush2.bf16.msra.mxu0 0
        %1505 = vmatprep.subr.bf16.mxu0 0
        %1506 = vmatpush2.bf16.msra.mxu0 0
        %1507 = vmatprep.subr.bf16.mxu0 0
        %1508 = vmatpush2.bf16.msra.mxu0 0
        %1509 = vmatprep.mubr.f32.mxu0 0.0
        %1510 = vmatmul.mubr.f32.gmra.mxu0 %v1472
        %v1511 = vpop.f32.mrf.mxu0
        %v1512 = vadd.f32 0.0, %v1511
        %v1513 = vpop.f32.mrf.mxu0
        %1514 = vdwg.mxu0
        %v1516 = vsel %vm724, %v1379, 0
        %v1519 = vsel %vm1385, %v479, 0
        %1521 = vmatprep.subr.bf16.mxu0 0
        %1522 = vmatpush1.bf16.msra.mxu0 0
        %1523 = vmatprep.subr.bf16.mxu0 0
        %1524 = vmatpush1.bf16.msra.mxu0 0
        %1525 = vmatprep.subr.bf16.mxu0 0
        %1526 = vmatpush1.bf16.msra.mxu0 0
        %1527 = vmatprep.subr.bf16.mxu0 0
        %1528 = vmatpush1.bf16.msra.mxu0 0
        %1529 = vmatprep.subr.bf16.mxu0 0
        %1530 = vmatpush1.bf16.msra.mxu0 0
        %1531 = vmatprep.subr.bf16.mxu0 0
        %1532 = vmatpush1.bf16.msra.mxu0 0
        %1533 = vmatprep.subr.bf16.mxu0 0
        %1534 = vmatpush1.bf16.msra.mxu0 0
        %1535 = vmatprep.subr.bf16.mxu0 0
        %1536 = vmatpush1.bf16.msra.mxu0 %v1519
        %1537 = vmatprep.subr.bf16.mxu0 0
        %1538 = vmatpush2.bf16.msra.mxu0 0
        %1539 = vmatprep.subr.bf16.mxu0 0
        %1540 = vmatpush2.bf16.msra.mxu0 0
        %1541 = vmatprep.subr.bf16.mxu0 0
        %1542 = vmatpush2.bf16.msra.mxu0 0
        %1543 = vmatprep.subr.bf16.mxu0 0
        %1544 = vmatpush2.bf16.msra.mxu0 0
        %1545 = vmatprep.subr.bf16.mxu0 0
        %1546 = vmatpush2.bf16.msra.mxu0 0
        %1547 = vmatprep.subr.bf16.mxu0 0
        %1548 = vmatpush2.bf16.msra.mxu0 0
        %1549 = vmatprep.subr.bf16.mxu0 0
        %1550 = vmatpush2.bf16.msra.mxu0 0
        %1551 = vmatprep.subr.bf16.mxu0 0
        %1552 = vmatpush2.bf16.msra.mxu0 0
        %1553 = vmatprep.mubr.f32.mxu0 0.0
        %1554 = vmatmul.mubr.f32.gmra.mxu0 %v1516
        %v1555 = vpop.f32.mrf.mxu0
        %v1556 = vadd.f32 0.0, %v1555
        %v1557 = vpop.f32.mrf.mxu0
        %1558 = vdwg.mxu0
        %v1559 = vsel %vm517, %v1424, 0.0
        %v1560 = vsel %vm517, %v1468, 0.0
        %v1561 = vadd.f32 %v1559, %v1560
        %v1562 = vsel %vm517, %v1512, 0.0
        %v1563 = vadd.f32 %v1561, %v1562
        %v1564 = vsel %vm517, %v1556, 0.0
        %v1565 = vadd.f32 %v1563, %v1564
        %v1566 = vlaneseq
        %v1567 = vshrl.u32 %v1566, 7
        %v1568 = vsub.s32 0, %v1567
        %v1569 = vrot.slane %v480, %v1568
        %v1570 = vadd.f32 %v1565, %v1569
        %v1571 = vunpack.c.l.bf16 %v454
        %v1572 = vadd.f32 %v1571, %v1570
        %v1573 = vld [vmem:[%s12 + $0x1] sm:$0x1]
        %v1574 = vld [vmem:[%s12 + $0x2] sm:$0x1]
        %v1575 = vsel %vm517, %v1572, 0.0
        %1576 = vadd.xlane.f32.xlu0 %v1575
        %v1577 = vpop.xlane.xlu0 %1576
        %v1578 = vrcp.pop 32.0
        %v1579 = vmul.f32 %v1577, %v1578
        %v1580 = vsub.f32 %v1572, %v1579
        %v1581 = vmul.f32 %v1580, %v1580
        %v1582 = vsel %vm517, %v1581, 0.0
        %1583 = vadd.xlane.f32.xlu0 %v1582
        %v1584 = vpop.xlane.xlu0 %1583
        %v1585 = vmul.f32 %v1584, %v1578
        %v1586 = vadd.f32 %v1585, 1e-05
        %v1587 = vrsqrt.pop %v1586
        %v1588 = vmul.f32 %v1580, %v1587
        %v1589 = vlaneseq
        %v1590 = vshrl.u32 %v1589, 7
        %v1591 = vsub.s32 0, %v1590
        %v1592 = vrot.slane %v1573, %v1591
        %v1593 = vmul.f32 %v1588, %v1592
        %v1594 = vlaneseq
        %v1595 = vshrl.u32 %v1594, 7
        %v1596 = vsub.s32 0, %v1595
        %v1597 = vrot.slane %v1574, %v1596
        %v1598 = vadd.f32 %v1593, %v1597
        %v1599 = vld [vmem:[%s5] sm:$0xf]
        %v1600 = vld [vmem:[%s5 + $0x4] sm:$0xf]
        %v1601 = vld [vmem:[%s5 + $0x8] sm:$0xf]
        %v1602 = vld [vmem:[%s5 + $0xc] sm:$0xf]
        %v1603 = vld [vmem:[%s5 + $0x10] sm:$0xf]
        %v1604 = vld [vmem:[%s5 + $0x14] sm:$0xf]
        %v1605 = vld [vmem:[%s5 + $0x18] sm:$0xf]
        %v1606 = vld [vmem:[%s5 + $0x1c] sm:$0xf]
        %v1607 = vld [vmem:[%s5 + $0x20] sm:$0xf]
        %v1608 = vld [vmem:[%s5 + $0x24] sm:$0xf]
        %v1609 = vld [vmem:[%s5 + $0x28] sm:$0xf]
        %v1610 = vld [vmem:[%s5 + $0x2c] sm:$0xf]
        %v1611 = vld [vmem:[%s5 + $0x30] sm:$0xf]
        %v1612 = vld [vmem:[%s5 + $0x34] sm:$0xf]
        %v1613 = vld [vmem:[%s5 + $0x38] sm:$0xf]
        %v1614 = vld [vmem:[%s5 + $0x3c] sm:$0xf]
        %v1615 = vld [vmem:[%s6] sm:$0xf]
        %v1616 = vld [vmem:[%s6 + $0x4] sm:$0xf]
        %v1617 = vld [vmem:[%s6 + $0x8] sm:$0xf]
        %v1618 = vld [vmem:[%s6 + $0xc] sm:$0xf]
        %v1619 = vld [vmem:[%s6 + $0x10] sm:$0xf]
        %v1620 = vld [vmem:[%s6 + $0x14] sm:$0xf]
        %v1621 = vld [vmem:[%s6 + $0x18] sm:$0xf]
        %v1622 = vld [vmem:[%s6 + $0x1c] sm:$0xf]
        %v1623 = vld [vmem:[%s6 + $0x20] sm:$0xf]
        %v1624 = vld [vmem:[%s6 + $0x24] sm:$0xf]
        %v1625 = vld [vmem:[%s6 + $0x28] sm:$0xf]
        %v1626 = vld [vmem:[%s6 + $0x2c] sm:$0xf]
        %v1627 = vld [vmem:[%s6 + $0x30] sm:$0xf]
        %v1628 = vld [vmem:[%s6 + $0x34] sm:$0xf]
        %v1629 = vld [vmem:[%s6 + $0x38] sm:$0xf]
        %v1630 = vld [vmem:[%s6 + $0x3c] sm:$0xf]
        %v1631 = vld [vmem:[%s7] sm:$0x1]
        %v1632 = vld [vmem:[%s7 + $0x1] sm:$0x1]
        %v1633 = vld [vmem:[%s7 + $0x2] sm:$0x1]
        %v1634 = vld [vmem:[%s7 + $0x3] sm:$0x1]
        %v1635 = vld [vmem:[%s8] sm:$0xf]
        %v1636 = vld [vmem:[%s8 + $0x4] sm:$0xf]
        %v1637 = vld [vmem:[%s8 + $0x8] sm:$0xf]
        %v1638 = vld [vmem:[%s8 + $0xc] sm:$0xf]
        %v1639 = vld [vmem:[%s12 + $0x3] sm:$0x1]
        %v1644 = vlaneseq
        %v1645 = vshrl.u32 %v1644, 7
        %v1646 = vsub.s32 0, %v1645
        %v1647 = vrot.slane %v1631, %v1646
        %v1648 = vlaneseq
        %v1649 = vshrl.u32 %v1648, 7
        %v1650 = vsub.s32 0, %v1649
        %v1651 = vrot.slane %v1632, %v1650
        %v1652 = vlaneseq
        %v1653 = vshrl.u32 %v1652, 7
        %v1654 = vsub.s32 0, %v1653
        %v1655 = vrot.slane %v1633, %v1654
        %v1656 = vlaneseq
        %v1657 = vshrl.u32 %v1656, 7
        %v1658 = vsub.s32 0, %v1657
        %v1659 = vrot.slane %v1634, %v1658
        %v1668 = vunpack.c.l.b16 %v1599
        %v1669 = vunpack.c.l.b16 %v1600
        %v1670 = vunpack.c.l.b16 %v1601
        %v1671 = vunpack.c.l.b16 %v1602
        %v1672 = vpack.c.b16 %v1669, %v1668
        %v1673 = vpack.c.b16 %v1671, %v1670
        %v1677 = vsel %vm517, %v1598, 0
        %1679 = vmatprep.subr.bf16.mxu0 0
        %1680 = vmatpush1.bf16.msra.mxu0 0
        %1681 = vmatprep.subr.bf16.mxu0 0
        %1682 = vmatpush1.bf16.msra.mxu0 0
        %1683 = vmatprep.subr.bf16.mxu0 0
        %1684 = vmatpush1.bf16.msra.mxu0 0
        %1685 = vmatprep.subr.bf16.mxu0 0
        %1686 = vmatpush1.bf16.msra.mxu0 0
        %1687 = vmatprep.subr.bf16.mxu0 0
        %1688 = vmatpush1.bf16.msra.mxu0 0
        %1689 = vmatprep.subr.bf16.mxu0 0
        %1690 = vmatpush1.bf16.msra.mxu0 0
        %1691 = vmatprep.subr.bf16.mxu0 0
        %1692 = vmatpush1.bf16.msra.mxu0 %v1673
        %1693 = vmatprep.subr.bf16.mxu0 0
        %1694 = vmatpush1.bf16.msra.mxu0 %v1672
        %1695 = vmatprep.subr.bf16.mxu0 0
        %1696 = vmatpush2.bf16.msra.mxu0 0
        %1697 = vmatprep.subr.bf16.mxu0 0
        %1698 = vmatpush2.bf16.msra.mxu0 0
        %1699 = vmatprep.subr.bf16.mxu0 0
        %1700 = vmatpush2.bf16.msra.mxu0 0
        %1701 = vmatprep.subr.bf16.mxu0 0
        %1702 = vmatpush2.bf16.msra.mxu0 0
        %1703 = vmatprep.subr.bf16.mxu0 0
        %1704 = vmatpush2.bf16.msra.mxu0 0
        %1705 = vmatprep.subr.bf16.mxu0 0
        %1706 = vmatpush2.bf16.msra.mxu0 0
        %1707 = vmatprep.subr.bf16.mxu0 0
        %1708 = vmatpush2.bf16.msra.mxu0 0
        %1709 = vmatprep.subr.bf16.mxu0 0
        %1710 = vmatpush2.bf16.msra.mxu0 0
        %1711 = vmatprep.mubr.f32.mxu0 0.0
        %1712 = vmatmul.mubr.f32.gmra.mxu0 %v1677
        %v1713 = vpop.f32.mrf.mxu0
        %v1714 = vadd.f32 %v1647, %v1713
        %v1715 = vpop.f32.mrf.mxu0
        %1716 = vdwg.mxu0
        %v1721 = vunpack.c.l.b16 %v1603
        %v1722 = vunpack.c.l.b16 %v1604
        %v1723 = vunpack.c.l.b16 %v1605
        %v1724 = vunpack.c.l.b16 %v1606
        %v1725 = vpack.c.b16 %v1722, %v1721
        %v1726 = vpack.c.b16 %v1724, %v1723
        %1729 = vmatprep.subr.bf16.mxu0 0
        %1730 = vmatpush1.bf16.msra.mxu0 0
        %1731 = vmatprep.subr.bf16.mxu0 0
        %1732 = vmatpush1.bf16.msra.mxu0 0
        %1733 = vmatprep.subr.bf16.mxu0 0
        %1734 = vmatpush1.bf16.msra.mxu0 0
        %1735 = vmatprep.subr.bf16.mxu0 0
        %1736 = vmatpush1.bf16.msra.mxu0 0
        %1737 = vmatprep.subr.bf16.mxu0 0
        %1738 = vmatpush1.bf16.msra.mxu0 0
        %1739 = vmatprep.subr.bf16.mxu0 0
        %1740 = vmatpush1.bf16.msra.mxu0 0
        %1741 = vmatprep.subr.bf16.mxu0 0
        %1742 = vmatpush1.bf16.msra.mxu0 %v1726
        %1743 = vmatprep.subr.bf16.mxu0 0
        %1744 = vmatpush1.bf16.msra.mxu0 %v1725
        %1745 = vmatprep.subr.bf16.mxu0 0
        %1746 = vmatpush2.bf16.msra.mxu0 0
        %1747 = vmatprep.subr.bf16.mxu0 0
        %1748 = vmatpush2.bf16.msra.mxu0 0
        %1749 = vmatprep.subr.bf16.mxu0 0
        %1750 = vmatpush2.bf16.msra.mxu0 0
        %1751 = vmatprep.subr.bf16.mxu0 0
        %1752 = vmatpush2.bf16.msra.mxu0 0
        %1753 = vmatprep.subr.bf16.mxu0 0
        %1754 = vmatpush2.bf16.msra.mxu0 0
        %1755 = vmatprep.subr.bf16.mxu0 0
        %1756 = vmatpush2.bf16.msra.mxu0 0
        %1757 = vmatprep.subr.bf16.mxu0 0
        %1758 = vmatpush2.bf16.msra.mxu0 0
        %1759 = vmatprep.subr.bf16.mxu0 0
        %1760 = vmatpush2.bf16.msra.mxu0 0
        %1761 = vmatprep.mubr.f32.mxu0 0.0
        %1762 = vmatmul.mubr.f32.gmra.mxu0 %v1677
        %v1763 = vpop.f32.mrf.mxu0
        %v1764 = vadd.f32 %v1651, %v1763
        %v1765 = vpop.f32.mrf.mxu0
        %1766 = vdwg.mxu0
        %v1771 = vunpack.c.l.b16 %v1607
        %v1772 = vunpack.c.l.b16 %v1608
        %v1773 = vunpack.c.l.b16 %v1609
        %v1774 = vunpack.c.l.b16 %v1610
        %v1775 = vpack.c.b16 %v1772, %v1771
        %v1776 = vpack.c.b16 %v1774, %v1773
        %1779 = vmatprep.subr.bf16.mxu0 0
        %1780 = vmatpush1.bf16.msra.mxu0 0
        %1781 = vmatprep.subr.bf16.mxu0 0
        %1782 = vmatpush1.bf16.msra.mxu0 0
        %1783 = vmatprep.subr.bf16.mxu0 0
        %1784 = vmatpush1.bf16.msra.mxu0 0
        %1785 = vmatprep.subr.bf16.mxu0 0
        %1786 = vmatpush1.bf16.msra.mxu0 0
        %1787 = vmatprep.subr.bf16.mxu0 0
        %1788 = vmatpush1.bf16.msra.mxu0 0
        %1789 = vmatprep.subr.bf16.mxu0 0
        %1790 = vmatpush1.bf16.msra.mxu0 0
        %1791 = vmatprep.subr.bf16.mxu0 0
        %1792 = vmatpush1.bf16.msra.mxu0 %v1776
        %1793 = vmatprep.subr.bf16.mxu0 0
        %1794 = vmatpush1.bf16.msra.mxu0 %v1775
        %1795 = vmatprep.subr.bf16.mxu0 0
        %1796 = vmatpush2.bf16.msra.mxu0 0
        %1797 = vmatprep.subr.bf16.mxu0 0
        %1798 = vmatpush2.bf16.msra.mxu0 0
        %1799 = vmatprep.subr.bf16.mxu0 0
        %1800 = vmatpush2.bf16.msra.mxu0 0
        %1801 = vmatprep.subr.bf16.mxu0 0
        %1802 = vmatpush2.bf16.msra.mxu0 0
        %1803 = vmatprep.subr.bf16.mxu0 0
        %1804 = vmatpush2.bf16.msra.mxu0 0
        %1805 = vmatprep.subr.bf16.mxu0 0
        %1806 = vmatpush2.bf16.msra.mxu0 0
        %1807 = vmatprep.subr.bf16.mxu0 0
        %1808 = vmatpush2.bf16.msra.mxu0 0
        %1809 = vmatprep.subr.bf16.mxu0 0
        %1810 = vmatpush2.bf16.msra.mxu0 0
        %1811 = vmatprep.mubr.f32.mxu0 0.0
        %1812 = vmatmul.mubr.f32.gmra.mxu0 %v1677
        %v1813 = vpop.f32.mrf.mxu0
        %v1814 = vadd.f32 %v1655, %v1813
        %v1815 = vpop.f32.mrf.mxu0
        %1816 = vdwg.mxu0
        %v1821 = vunpack.c.l.b16 %v1611
        %v1822 = vunpack.c.l.b16 %v1612
        %v1823 = vunpack.c.l.b16 %v1613
        %v1824 = vunpack.c.l.b16 %v1614
        %v1825 = vpack.c.b16 %v1822, %v1821
        %v1826 = vpack.c.b16 %v1824, %v1823
        %1829 = vmatprep.subr.bf16.mxu0 0
        %1830 = vmatpush1.bf16.msra.mxu0 0
        %1831 = vmatprep.subr.bf16.mxu0 0
        %1832 = vmatpush1.bf16.msra.mxu0 0
        %1833 = vmatprep.subr.bf16.mxu0 0
        %1834 = vmatpush1.bf16.msra.mxu0 0
        %1835 = vmatprep.subr.bf16.mxu0 0
        %1836 = vmatpush1.bf16.msra.mxu0 0
        %1837 = vmatprep.subr.bf16.mxu0 0
        %1838 = vmatpush1.bf16.msra.mxu0 0
        %1839 = vmatprep.subr.bf16.mxu0 0
        %1840 = vmatpush1.bf16.msra.mxu0 0
        %1841 = vmatprep.subr.bf16.mxu0 0
        %1842 = vmatpush1.bf16.msra.mxu0 %v1826
        %1843 = vmatprep.subr.bf16.mxu0 0
        %1844 = vmatpush1.bf16.msra.mxu0 %v1825
        %1845 = vmatprep.subr.bf16.mxu0 0
        %1846 = vmatpush2.bf16.msra.mxu0 0
        %1847 = vmatprep.subr.bf16.mxu0 0
        %1848 = vmatpush2.bf16.msra.mxu0 0
        %1849 = vmatprep.subr.bf16.mxu0 0
        %1850 = vmatpush2.bf16.msra.mxu0 0
        %1851 = vmatprep.subr.bf16.mxu0 0
        %1852 = vmatpush2.bf16.msra.mxu0 0
        %1853 = vmatprep.subr.bf16.mxu0 0
        %1854 = vmatpush2.bf16.msra.mxu0 0
        %1855 = vmatprep.subr.bf16.mxu0 0
        %1856 = vmatpush2.bf16.msra.mxu0 0
        %1857 = vmatprep.subr.bf16.mxu0 0
        %1858 = vmatpush2.bf16.msra.mxu0 0
        %1859 = vmatprep.subr.bf16.mxu0 0
        %1860 = vmatpush2.bf16.msra.mxu0 0
        %1861 = vmatprep.mubr.f32.mxu0 0.0
        %1862 = vmatmul.mubr.f32.gmra.mxu0 %v1677
        %v1863 = vpop.f32.mrf.mxu0
        %v1864 = vadd.f32 %v1659, %v1863
        %v1865 = vpop.f32.mrf.mxu0
        %1866 = vdwg.mxu0
        %v1871 = vunpack.c.l.b16 %v1615
        %v1872 = vunpack.c.l.b16 %v1616
        %v1873 = vunpack.c.l.b16 %v1617
        %v1874 = vunpack.c.l.b16 %v1618
        %v1875 = vpack.c.b16 %v1872, %v1871
        %v1876 = vpack.c.b16 %v1874, %v1873
        %1879 = vrot.lane.b32.xlu0 %v1647, 120
        %v1880 = vpop.permute.xlu0 %1879
        %v1883 = vsel %vm517, %v455, 0
        %1885 = vmatprep.subr.bf16.mxu0 0
        %1886 = vmatpush1.bf16.msra.mxu0 0
        %1887 = vmatprep.subr.bf16.mxu0 0
        %1888 = vmatpush1.bf16.msra.mxu0 0
        %1889 = vmatprep.subr.bf16.mxu0 0
        %1890 = vmatpush1.bf16.msra.mxu0 0
        %1891 = vmatprep.subr.bf16.mxu0 0
        %1892 = vmatpush1.bf16.msra.mxu0 0
        %1893 = vmatprep.subr.bf16.mxu0 0
        %1894 = vmatpush1.bf16.msra.mxu0 0
        %1895 = vmatprep.subr.bf16.mxu0 0
        %1896 = vmatpush1.bf16.msra.mxu0 0
        %1897 = vmatprep.subr.bf16.mxu0 0
        %1898 = vmatpush1.bf16.msra.mxu0 %v1876
        %1899 = vmatprep.subr.bf16.mxu0 0
        %1900 = vmatpush1.bf16.msra.mxu0 %v1875
        %1901 = vmatprep.subr.bf16.mxu0 0
        %1902 = vmatpush2.bf16.msra.mxu0 0
        %1903 = vmatprep.subr.bf16.mxu0 0
        %1904 = vmatpush2.bf16.msra.mxu0 0
        %1905 = vmatprep.subr.bf16.mxu0 0
        %1906 = vmatpush2.bf16.msra.mxu0 0
        %1907 = vmatprep.subr.bf16.mxu0 0
        %1908 = vmatpush2.bf16.msra.mxu0 0
        %1909 = vmatprep.subr.bf16.mxu0 0
        %1910 = vmatpush2.bf16.msra.mxu0 0
        %1911 = vmatprep.subr.bf16.mxu0 0
        %1912 = vmatpush2.bf16.msra.mxu0 0
        %1913 = vmatprep.subr.bf16.mxu0 0
        %1914 = vmatpush2.bf16.msra.mxu0 0
        %1915 = vmatprep.subr.bf16.mxu0 0
        %1916 = vmatpush2.bf16.msra.mxu0 0
        %1917 = vmatprep.mubr.bf16.mxu0 0
        %1918 = vmatmul.mubr.bf16.gmra.mxu0 %v1883
        %v1919 = vpop.f32.mrf.mxu0
        %v1920 = vadd.f32 %v1880, %v1919
        %v1921 = vpop.f32.mrf.mxu0
        %v1922 = vpop.f32.mrf.mxu0
        %v1923 = vpop.f32.mrf.mxu0
        %1924 = vdwg.mxu0
        %v1929 = vunpack.c.l.b16 %v1619
        %v1930 = vunpack.c.l.b16 %v1620
        %v1931 = vunpack.c.l.b16 %v1621
        %v1932 = vunpack.c.l.b16 %v1622
        %v1933 = vpack.c.b16 %v1930, %v1929
        %v1934 = vpack.c.b16 %v1932, %v1931
        %1937 = vrot.lane.b32.xlu0 %v1651, 120
        %v1938 = vpop.permute.xlu0 %1937
        %1940 = vmatprep.subr.bf16.mxu0 0
        %1941 = vmatpush1.bf16.msra.mxu0 0
        %1942 = vmatprep.subr.bf16.mxu0 0
        %1943 = vmatpush1.bf16.msra.mxu0 0
        %1944 = vmatprep.subr.bf16.mxu0 0
        %1945 = vmatpush1.bf16.msra.mxu0 0
        %1946 = vmatprep.subr.bf16.mxu0 0
        %1947 = vmatpush1.bf16.msra.mxu0 0
        %1948 = vmatprep.subr.bf16.mxu0 0
        %1949 = vmatpush1.bf16.msra.mxu0 0
        %1950 = vmatprep.subr.bf16.mxu0 0
        %1951 = vmatpush1.bf16.msra.mxu0 0
        %1952 = vmatprep.subr.bf16.mxu0 0
        %1953 = vmatpush1.bf16.msra.mxu0 %v1934
        %1954 = vmatprep.subr.bf16.mxu0 0
        %1955 = vmatpush1.bf16.msra.mxu0 %v1933
        %1956 = vmatprep.subr.bf16.mxu0 0
        %1957 = vmatpush2.bf16.msra.mxu0 0
        %1958 = vmatprep.subr.bf16.mxu0 0
        %1959 = vmatpush2.bf16.msra.mxu0 0
        %1960 = vmatprep.subr.bf16.mxu0 0
        %1961 = vmatpush2.bf16.msra.mxu0 0
        %1962 = vmatprep.subr.bf16.mxu0 0
        %1963 = vmatpush2.bf16.msra.mxu0 0
        %1964 = vmatprep.subr.bf16.mxu0 0
        %1965 = vmatpush2.bf16.msra.mxu0 0
        %1966 = vmatprep.subr.bf16.mxu0 0
        %1967 = vmatpush2.bf16.msra.mxu0 0
        %1968 = vmatprep.subr.bf16.mxu0 0
        %1969 = vmatpush2.bf16.msra.mxu0 0
        %1970 = vmatprep.subr.bf16.mxu0 0
        %1971 = vmatpush2.bf16.msra.mxu0 0
        %1972 = vmatprep.mubr.bf16.mxu0 0
        %1973 = vmatmul.mubr.bf16.gmra.mxu0 %v1883
        %v1974 = vpop.f32.mrf.mxu0
        %v1975 = vadd.f32 %v1938, %v1974
        %v1976 = vpop.f32.mrf.mxu0
        %v1977 = vpop.f32.mrf.mxu0
        %v1978 = vpop.f32.mrf.mxu0
        %1979 = vdwg.mxu0
        %v1984 = vunpack.c.l.b16 %v1623
        %v1985 = vunpack.c.l.b16 %v1624
        %v1986 = vunpack.c.l.b16 %v1625
        %v1987 = vunpack.c.l.b16 %v1626
        %v1988 = vpack.c.b16 %v1985, %v1984
        %v1989 = vpack.c.b16 %v1987, %v1986
        %1992 = vrot.lane.b32.xlu0 %v1655, 120
        %v1993 = vpop.permute.xlu0 %1992
        %1995 = vmatprep.subr.bf16.mxu0 0
        %1996 = vmatpush1.bf16.msra.mxu0 0
        %1997 = vmatprep.subr.bf16.mxu0 0
        %1998 = vmatpush1.bf16.msra.mxu0 0
        %1999 = vmatprep.subr.bf16.mxu0 0
        %2000 = vmatpush1.bf16.msra.mxu0 0
        %2001 = vmatprep.subr.bf16.mxu0 0
        %2002 = vmatpush1.bf16.msra.mxu0 0
        %2003 = vmatprep.subr.bf16.mxu0 0
        %2004 = vmatpush1.bf16.msra.mxu0 0
        %2005 = vmatprep.subr.bf16.mxu0 0
        %2006 = vmatpush1.bf16.msra.mxu0 0
        %2007 = vmatprep.subr.bf16.mxu0 0
        %2008 = vmatpush1.bf16.msra.mxu0 %v1989
        %2009 = vmatprep.subr.bf16.mxu0 0
        %2010 = vmatpush1.bf16.msra.mxu0 %v1988
        %2011 = vmatprep.subr.bf16.mxu0 0
        %2012 = vmatpush2.bf16.msra.mxu0 0
        %2013 = vmatprep.subr.bf16.mxu0 0
        %2014 = vmatpush2.bf16.msra.mxu0 0
        %2015 = vmatprep.subr.bf16.mxu0 0
        %2016 = vmatpush2.bf16.msra.mxu0 0
        %2017 = vmatprep.subr.bf16.mxu0 0
        %2018 = vmatpush2.bf16.msra.mxu0 0
        %2019 = vmatprep.subr.bf16.mxu0 0
        %2020 = vmatpush2.bf16.msra.mxu0 0
        %2021 = vmatprep.subr.bf16.mxu0 0
        %2022 = vmatpush2.bf16.msra.mxu0 0
        %2023 = vmatprep.subr.bf16.mxu0 0
        %2024 = vmatpush2.bf16.msra.mxu0 0
        %2025 = vmatprep.subr.bf16.mxu0 0
        %2026 = vmatpush2.bf16.msra.mxu0 0
        %2027 = vmatprep.mubr.bf16.mxu0 0
        %2028 = vmatmul.mubr.bf16.gmra.mxu0 %v1883
        %v2029 = vpop.f32.mrf.mxu0
        %v2030 = vadd.f32 %v1993, %v2029
        %v2031 = vpop.f32.mrf.mxu0
        %v2032 = vpop.f32.mrf.mxu0
        %v2033 = vpop.f32.mrf.mxu0
        %2034 = vdwg.mxu0
        %v2039 = vunpack.c.l.b16 %v1627
        %v2040 = vunpack.c.l.b16 %v1628
        %v2041 = vunpack.c.l.b16 %v1629
        %v2042 = vunpack.c.l.b16 %v1630
        %v2043 = vpack.c.b16 %v2040, %v2039
        %v2044 = vpack.c.b16 %v2042, %v2041
        %2047 = vrot.lane.b32.xlu0 %v1659, 120
        %v2048 = vpop.permute.xlu0 %2047
        %2050 = vmatprep.subr.bf16.mxu0 0
        %2051 = vmatpush1.bf16.msra.mxu0 0
        %2052 = vmatprep.subr.bf16.mxu0 0
        %2053 = vmatpush1.bf16.msra.mxu0 0
        %2054 = vmatprep.subr.bf16.mxu0 0
        %2055 = vmatpush1.bf16.msra.mxu0 0
        %2056 = vmatprep.subr.bf16.mxu0 0
        %2057 = vmatpush1.bf16.msra.mxu0 0
        %2058 = vmatprep.subr.bf16.mxu0 0
        %2059 = vmatpush1.bf16.msra.mxu0 0
        %2060 = vmatprep.subr.bf16.mxu0 0
        %2061 = vmatpush1.bf16.msra.mxu0 0
        %2062 = vmatprep.subr.bf16.mxu0 0
        %2063 = vmatpush1.bf16.msra.mxu0 %v2044
        %2064 = vmatprep.subr.bf16.mxu0 0
        %2065 = vmatpush1.bf16.msra.mxu0 %v2043
        %2066 = vmatprep.subr.bf16.mxu0 0
        %2067 = vmatpush2.bf16.msra.mxu0 0
        %2068 = vmatprep.subr.bf16.mxu0 0
        %2069 = vmatpush2.bf16.msra.mxu0 0
        %2070 = vmatprep.subr.bf16.mxu0 0
        %2071 = vmatpush2.bf16.msra.mxu0 0
        %2072 = vmatprep.subr.bf16.mxu0 0
        %2073 = vmatpush2.bf16.msra.mxu0 0
        %2074 = vmatprep.subr.bf16.mxu0 0
        %2075 = vmatpush2.bf16.msra.mxu0 0
        %2076 = vmatprep.subr.bf16.mxu0 0
        %2077 = vmatpush2.bf16.msra.mxu0 0
        %2078 = vmatprep.subr.bf16.mxu0 0
        %2079 = vmatpush2.bf16.msra.mxu0 0
        %2080 = vmatprep.subr.bf16.mxu0 0
        %2081 = vmatpush2.bf16.msra.mxu0 0
        %2082 = vmatprep.mubr.bf16.mxu0 0
        %2083 = vmatmul.mubr.bf16.gmra.mxu0 %v1883
        %v2084 = vpop.f32.mrf.mxu0
        %v2085 = vadd.f32 %v2048, %v2084
        %v2086 = vpop.f32.mrf.mxu0
        %v2087 = vpop.f32.mrf.mxu0
        %v2088 = vpop.f32.mrf.mxu0
        %2089 = vdwg.mxu0
        %v2090 = vmul.f32 %v1714, 0.35355338
        %v2091 = vmul.f32 %v1764, 0.35355338
        %v2092 = vmul.f32 %v1814, 0.35355338
        %v2093 = vmul.f32 %v1864, 0.35355338
        %v2095 = vsel %vm724, %v2090, 0
        %v2098 = vsel %vm724, %v1920, 0
        %2100 = vmatprep.subr.mxu0 0.0
        %2101 = vmatpush1.xpose.msra.mxu0 0.0
        %2102 = vmatprep.subr.mxu0 0.0
        %2103 = vmatpush1.xpose.msra.mxu0 0.0
        %2104 = vmatprep.subr.mxu0 0.0
        %2105 = vmatpush1.xpose.msra.mxu0 0.0
        %2106 = vmatprep.subr.mxu0 0.0
        %2107 = vmatpush1.xpose.msra.mxu0 0.0
        %2108 = vmatprep.subr.mxu0 0.0
        %2109 = vmatpush1.xpose.msra.mxu0 0.0
        %2110 = vmatprep.subr.mxu0 0.0
        %2111 = vmatpush1.xpose.msra.mxu0 0.0
        %2112 = vmatprep.subr.mxu0 0.0
        %2113 = vmatpush1.xpose.msra.mxu0 0.0
        %2114 = vmatprep.subr.mxu0 0.0
        %2115 = vmatpush1.xpose.msra.mxu0 0.0
        %2116 = vmatprep.subr.mxu0 0.0
        %2117 = vmatpush1.xpose.msra.mxu0 0.0
        %2118 = vmatprep.subr.mxu0 0.0
        %2119 = vmatpush1.xpose.msra.mxu0 0.0
        %2120 = vmatprep.subr.mxu0 0.0
        %2121 = vmatpush1.xpose.msra.mxu0 0.0
        %2122 = vmatprep.subr.mxu0 0.0
        %2123 = vmatpush1.xpose.msra.mxu0 0.0
        %2124 = vmatprep.subr.mxu0 0.0
        %2125 = vmatpush1.xpose.msra.mxu0 0.0
        %2126 = vmatprep.subr.mxu0 0.0
        %2127 = vmatpush1.xpose.msra.mxu0 0.0
        %2128 = vmatprep.subr.mxu0 0.0
        %2129 = vmatpush1.xpose.msra.mxu0 0.0
        %2130 = vmatprep.subr.mxu0 0.0
        %2131 = vmatpush1.xpose.msra.mxu0 %v2098
        %2132 = vmatprep.subr.mxu0 0.0
        %2133 = vmatpush2.xpose.msra.mxu0 0.0
        %2134 = vmatprep.subr.mxu0 0.0
        %2135 = vmatpush2.xpose.msra.mxu0 0.0
        %2136 = vmatprep.subr.mxu0 0.0
        %2137 = vmatpush2.xpose.msra.mxu0 0.0
        %2138 = vmatprep.subr.mxu0 0.0
        %2139 = vmatpush2.xpose.msra.mxu0 0.0
        %2140 = vmatprep.subr.mxu0 0.0
        %2141 = vmatpush2.xpose.msra.mxu0 0.0
        %2142 = vmatprep.subr.mxu0 0.0
        %2143 = vmatpush2.xpose.msra.mxu0 0.0
        %2144 = vmatprep.subr.mxu0 0.0
        %2145 = vmatpush2.xpose.msra.mxu0 0.0
        %2146 = vmatprep.subr.mxu0 0.0
        %2147 = vmatpush2.xpose.msra.mxu0 0.0
        %2148 = vmatprep.subr.mxu0 0.0
        %2149 = vmatpush2.xpose.msra.mxu0 0.0
        %2150 = vmatprep.subr.mxu0 0.0
        %2151 = vmatpush2.xpose.msra.mxu0 0.0
        %2152 = vmatprep.subr.mxu0 0.0
        %2153 = vmatpush2.xpose.msra.mxu0 0.0
        %2154 = vmatprep.subr.mxu0 0.0
        %2155 = vmatpush2.xpose.msra.mxu0 0.0
        %2156 = vmatprep.subr.mxu0 0.0
        %2157 = vmatpush2.xpose.msra.mxu0 0.0
        %2158 = vmatprep.subr.mxu0 0.0
        %2159 = vmatpush2.xpose.msra.mxu0 0.0
        %2160 = vmatprep.subr.mxu0 0.0
        %2161 = vmatpush2.xpose.msra.mxu0 0.0
        %2162 = vmatprep.subr.mxu0 0.0
        %2163 = vmatpush2.xpose.msra.mxu0 0.0
        %2164 = vmatprep.mubr.f32.mxu0 0.0
        %2165 = vmatmul.mubr.f32.gmra.mxu0 %v2095
        %v2166 = vpop.f32.mrf.mxu0
        %v2167 = vadd.f32 0.0, %v2166
        %v2168 = vpop.f32.mrf.mxu0
        %2169 = vdwg.mxu0
        %v2171 = vsel %vm724, %v2091, 0
        %v2174 = vsel %vm724, %v1975, 0
        %2176 = vmatprep.subr.mxu0 0.0
        %2177 = vmatpush1.xpose.msra.mxu0 0.0
        %2178 = vmatprep.subr.mxu0 0.0
        %2179 = vmatpush1.xpose.msra.mxu0 0.0
        %2180 = vmatprep.subr.mxu0 0.0
        %2181 = vmatpush1.xpose.msra.mxu0 0.0
        %2182 = vmatprep.subr.mxu0 0.0
        %2183 = vmatpush1.xpose.msra.mxu0 0.0
        %2184 = vmatprep.subr.mxu0 0.0
        %2185 = vmatpush1.xpose.msra.mxu0 0.0
        %2186 = vmatprep.subr.mxu0 0.0
        %2187 = vmatpush1.xpose.msra.mxu0 0.0
        %2188 = vmatprep.subr.mxu0 0.0
        %2189 = vmatpush1.xpose.msra.mxu0 0.0
        %2190 = vmatprep.subr.mxu0 0.0
        %2191 = vmatpush1.xpose.msra.mxu0 0.0
        %2192 = vmatprep.subr.mxu0 0.0
        %2193 = vmatpush1.xpose.msra.mxu0 0.0
        %2194 = vmatprep.subr.mxu0 0.0
        %2195 = vmatpush1.xpose.msra.mxu0 0.0
        %2196 = vmatprep.subr.mxu0 0.0
        %2197 = vmatpush1.xpose.msra.mxu0 0.0
        %2198 = vmatprep.subr.mxu0 0.0
        %2199 = vmatpush1.xpose.msra.mxu0 0.0
        %2200 = vmatprep.subr.mxu0 0.0
        %2201 = vmatpush1.xpose.msra.mxu0 0.0
        %2202 = vmatprep.subr.mxu0 0.0
        %2203 = vmatpush1.xpose.msra.mxu0 0.0
        %2204 = vmatprep.subr.mxu0 0.0
        %2205 = vmatpush1.xpose.msra.mxu0 0.0
        %2206 = vmatprep.subr.mxu0 0.0
        %2207 = vmatpush1.xpose.msra.mxu0 %v2174
        %2208 = vmatprep.subr.mxu0 0.0
        %2209 = vmatpush2.xpose.msra.mxu0 0.0
        %2210 = vmatprep.subr.mxu0 0.0
        %2211 = vmatpush2.xpose.msra.mxu0 0.0
        %2212 = vmatprep.subr.mxu0 0.0
        %2213 = vmatpush2.xpose.msra.mxu0 0.0
        %2214 = vmatprep.subr.mxu0 0.0
        %2215 = vmatpush2.xpose.msra.mxu0 0.0
        %2216 = vmatprep.subr.mxu0 0.0
        %2217 = vmatpush2.xpose.msra.mxu0 0.0
        %2218 = vmatprep.subr.mxu0 0.0
        %2219 = vmatpush2.xpose.msra.mxu0 0.0
        %2220 = vmatprep.subr.mxu0 0.0
        %2221 = vmatpush2.xpose.msra.mxu0 0.0
        %2222 = vmatprep.subr.mxu0 0.0
        %2223 = vmatpush2.xpose.msra.mxu0 0.0
        %2224 = vmatprep.subr.mxu0 0.0
        %2225 = vmatpush2.xpose.msra.mxu0 0.0
        %2226 = vmatprep.subr.mxu0 0.0
        %2227 = vmatpush2.xpose.msra.mxu0 0.0
        %2228 = vmatprep.subr.mxu0 0.0
        %2229 = vmatpush2.xpose.msra.mxu0 0.0
        %2230 = vmatprep.subr.mxu0 0.0
        %2231 = vmatpush2.xpose.msra.mxu0 0.0
        %2232 = vmatprep.subr.mxu0 0.0
        %2233 = vmatpush2.xpose.msra.mxu0 0.0
        %2234 = vmatprep.subr.mxu0 0.0
        %2235 = vmatpush2.xpose.msra.mxu0 0.0
        %2236 = vmatprep.subr.mxu0 0.0
        %2237 = vmatpush2.xpose.msra.mxu0 0.0
        %2238 = vmatprep.subr.mxu0 0.0
        %2239 = vmatpush2.xpose.msra.mxu0 0.0
        %2240 = vmatprep.mubr.f32.mxu0 0.0
        %2241 = vmatmul.mubr.f32.gmra.mxu0 %v2171
        %v2242 = vpop.f32.mrf.mxu0
        %v2243 = vadd.f32 0.0, %v2242
        %v2244 = vpop.f32.mrf.mxu0
        %2245 = vdwg.mxu0
        %v2247 = vsel %vm724, %v2092, 0
        %v2250 = vsel %vm724, %v2030, 0
        %2252 = vmatprep.subr.mxu0 0.0
        %2253 = vmatpush1.xpose.msra.mxu0 0.0
        %2254 = vmatprep.subr.mxu0 0.0
        %2255 = vmatpush1.xpose.msra.mxu0 0.0
        %2256 = vmatprep.subr.mxu0 0.0
        %2257 = vmatpush1.xpose.msra.mxu0 0.0
        %2258 = vmatprep.subr.mxu0 0.0
        %2259 = vmatpush1.xpose.msra.mxu0 0.0
        %2260 = vmatprep.subr.mxu0 0.0
        %2261 = vmatpush1.xpose.msra.mxu0 0.0
        %2262 = vmatprep.subr.mxu0 0.0
        %2263 = vmatpush1.xpose.msra.mxu0 0.0
        %2264 = vmatprep.subr.mxu0 0.0
        %2265 = vmatpush1.xpose.msra.mxu0 0.0
        %2266 = vmatprep.subr.mxu0 0.0
        %2267 = vmatpush1.xpose.msra.mxu0 0.0
        %2268 = vmatprep.subr.mxu0 0.0
        %2269 = vmatpush1.xpose.msra.mxu0 0.0
        %2270 = vmatprep.subr.mxu0 0.0
        %2271 = vmatpush1.xpose.msra.mxu0 0.0
        %2272 = vmatprep.subr.mxu0 0.0
        %2273 = vmatpush1.xpose.msra.mxu0 0.0
        %2274 = vmatprep.subr.mxu0 0.0
        %2275 = vmatpush1.xpose.msra.mxu0 0.0
        %2276 = vmatprep.subr.mxu0 0.0
        %2277 = vmatpush1.xpose.msra.mxu0 0.0
        %2278 = vmatprep.subr.mxu0 0.0
        %2279 = vmatpush1.xpose.msra.mxu0 0.0
        %2280 = vmatprep.subr.mxu0 0.0
        %2281 = vmatpush1.xpose.msra.mxu0 0.0
        %2282 = vmatprep.subr.mxu0 0.0
        %2283 = vmatpush1.xpose.msra.mxu0 %v2250
        %2284 = vmatprep.subr.mxu0 0.0
        %2285 = vmatpush2.xpose.msra.mxu0 0.0
        %2286 = vmatprep.subr.mxu0 0.0
        %2287 = vmatpush2.xpose.msra.mxu0 0.0
        %2288 = vmatprep.subr.mxu0 0.0
        %2289 = vmatpush2.xpose.msra.mxu0 0.0
        %2290 = vmatprep.subr.mxu0 0.0
        %2291 = vmatpush2.xpose.msra.mxu0 0.0
        %2292 = vmatprep.subr.mxu0 0.0
        %2293 = vmatpush2.xpose.msra.mxu0 0.0
        %2294 = vmatprep.subr.mxu0 0.0
        %2295 = vmatpush2.xpose.msra.mxu0 0.0
        %2296 = vmatprep.subr.mxu0 0.0
        %2297 = vmatpush2.xpose.msra.mxu0 0.0
        %2298 = vmatprep.subr.mxu0 0.0
        %2299 = vmatpush2.xpose.msra.mxu0 0.0
        %2300 = vmatprep.subr.mxu0 0.0
        %2301 = vmatpush2.xpose.msra.mxu0 0.0
        %2302 = vmatprep.subr.mxu0 0.0
        %2303 = vmatpush2.xpose.msra.mxu0 0.0
        %2304 = vmatprep.subr.mxu0 0.0
        %2305 = vmatpush2.xpose.msra.mxu0 0.0
        %2306 = vmatprep.subr.mxu0 0.0
        %2307 = vmatpush2.xpose.msra.mxu0 0.0
        %2308 = vmatprep.subr.mxu0 0.0
        %2309 = vmatpush2.xpose.msra.mxu0 0.0
        %2310 = vmatprep.subr.mxu0 0.0
        %2311 = vmatpush2.xpose.msra.mxu0 0.0
        %2312 = vmatprep.subr.mxu0 0.0
        %2313 = vmatpush2.xpose.msra.mxu0 0.0
        %2314 = vmatprep.subr.mxu0 0.0
        %2315 = vmatpush2.xpose.msra.mxu0 0.0
        %2316 = vmatprep.mubr.f32.mxu0 0.0
        %2317 = vmatmul.mubr.f32.gmra.mxu0 %v2247
        %v2318 = vpop.f32.mrf.mxu0
        %v2319 = vadd.f32 0.0, %v2318
        %v2320 = vpop.f32.mrf.mxu0
        %2321 = vdwg.mxu0
        %v2323 = vsel %vm724, %v2093, 0
        %v2326 = vsel %vm724, %v2085, 0
        %2328 = vmatprep.subr.mxu0 0.0
        %2329 = vmatpush1.xpose.msra.mxu0 0.0
        %2330 = vmatprep.subr.mxu0 0.0
        %2331 = vmatpush1.xpose.msra.mxu0 0.0
        %2332 = vmatprep.subr.mxu0 0.0
        %2333 = vmatpush1.xpose.msra.mxu0 0.0
        %2334 = vmatprep.subr.mxu0 0.0
        %2335 = vmatpush1.xpose.msra.mxu0 0.0
        %2336 = vmatprep.subr.mxu0 0.0
        %2337 = vmatpush1.xpose.msra.mxu0 0.0
        %2338 = vmatprep.subr.mxu0 0.0
        %2339 = vmatpush1.xpose.msra.mxu0 0.0
        %2340 = vmatprep.subr.mxu0 0.0
        %2341 = vmatpush1.xpose.msra.mxu0 0.0
        %2342 = vmatprep.subr.mxu0 0.0
        %2343 = vmatpush1.xpose.msra.mxu0 0.0
        %2344 = vmatprep.subr.mxu0 0.0
        %2345 = vmatpush1.xpose.msra.mxu0 0.0
        %2346 = vmatprep.subr.mxu0 0.0
        %2347 = vmatpush1.xpose.msra.mxu0 0.0
        %2348 = vmatprep.subr.mxu0 0.0
        %2349 = vmatpush1.xpose.msra.mxu0 0.0
        %2350 = vmatprep.subr.mxu0 0.0
        %2351 = vmatpush1.xpose.msra.mxu0 0.0
        %2352 = vmatprep.subr.mxu0 0.0
        %2353 = vmatpush1.xpose.msra.mxu0 0.0
        %2354 = vmatprep.subr.mxu0 0.0
        %2355 = vmatpush1.xpose.msra.mxu0 0.0
        %2356 = vmatprep.subr.mxu0 0.0
        %2357 = vmatpush1.xpose.msra.mxu0 0.0
        %2358 = vmatprep.subr.mxu0 0.0
        %2359 = vmatpush1.xpose.msra.mxu0 %v2326
        %2360 = vmatprep.subr.mxu0 0.0
        %2361 = vmatpush2.xpose.msra.mxu0 0.0
        %2362 = vmatprep.subr.mxu0 0.0
        %2363 = vmatpush2.xpose.msra.mxu0 0.0
        %2364 = vmatprep.subr.mxu0 0.0
        %2365 = vmatpush2.xpose.msra.mxu0 0.0
        %2366 = vmatprep.subr.mxu0 0.0
        %2367 = vmatpush2.xpose.msra.mxu0 0.0
        %2368 = vmatprep.subr.mxu0 0.0
        %2369 = vmatpush2.xpose.msra.mxu0 0.0
        %2370 = vmatprep.subr.mxu0 0.0
        %2371 = vmatpush2.xpose.msra.mxu0 0.0
        %2372 = vmatprep.subr.mxu0 0.0
        %2373 = vmatpush2.xpose.msra.mxu0 0.0
        %2374 = vmatprep.subr.mxu0 0.0
        %2375 = vmatpush2.xpose.msra.mxu0 0.0
        %2376 = vmatprep.subr.mxu0 0.0
        %2377 = vmatpush2.xpose.msra.mxu0 0.0
        %2378 = vmatprep.subr.mxu0 0.0
        %2379 = vmatpush2.xpose.msra.mxu0 0.0
        %2380 = vmatprep.subr.mxu0 0.0
        %2381 = vmatpush2.xpose.msra.mxu0 0.0
        %2382 = vmatprep.subr.mxu0 0.0
        %2383 = vmatpush2.xpose.msra.mxu0 0.0
        %2384 = vmatprep.subr.mxu0 0.0
        %2385 = vmatpush2.xpose.msra.mxu0 0.0
        %2386 = vmatprep.subr.mxu0 0.0
        %2387 = vmatpush2.xpose.msra.mxu0 0.0
        %2388 = vmatprep.subr.mxu0 0.0
        %2389 = vmatpush2.xpose.msra.mxu0 0.0
        %2390 = vmatprep.subr.mxu0 0.0
        %2391 = vmatpush2.xpose.msra.mxu0 0.0
        %2392 = vmatprep.mubr.f32.mxu0 0.0
        %2393 = vmatmul.mubr.f32.gmra.mxu0 %v2323
        %v2394 = vpop.f32.mrf.mxu0
        %v2395 = vadd.f32 0.0, %v2394
        %v2396 = vpop.f32.mrf.mxu0
        %2397 = vdwg.mxu0
        %v2398 = vsel %vm724, %v2167, -inf
        %2399 = vmax.xlane.f32.xlu0 %v2398
        %v2400 = vpop.xlane.xlu0 %2399
        %v2401 = vsel %vm724, %v2243, -inf
        %2402 = vmax.xlane.f32.xlu0 %v2401
        %v2403 = vpop.xlane.xlu0 %2402
        %v2404 = vsel %vm724, %v2319, -inf
        %2405 = vmax.xlane.f32.xlu0 %v2404
        %v2406 = vpop.xlane.xlu0 %2405
        %v2407 = vsel %vm724, %v2395, -inf
        %2408 = vmax.xlane.f32.xlu0 %v2407
        %v2409 = vpop.xlane.xlu0 %2408
        %v2410 = vsub.f32 %v2167, %v2400
        %v2411 = vsub.f32 %v2243, %v2403
        %v2412 = vsub.f32 %v2319, %v2406
        %v2413 = vsub.f32 %v2395, %v2409
        %v2414 = vmul.f32 %v2410, 1.442695
        %v2415 = vpow.pop %v2414
        %v2416 = vmul.f32 %v2411, 1.442695
        %v2417 = vpow.pop %v2416
        %v2418 = vmul.f32 %v2412, 1.442695
        %v2419 = vpow.pop %v2418
        %v2420 = vmul.f32 %v2413, 1.442695
        %v2421 = vpow.pop %v2420
        %v2422 = vsel %vm724, %v2415, 0.0
        %2423 = vadd.xlane.f32.xlu0 %v2422
        %v2424 = vpop.xlane.xlu0 %2423
        %v2425 = vsel %vm724, %v2417, 0.0
        %2426 = vadd.xlane.f32.xlu0 %v2425
        %v2427 = vpop.xlane.xlu0 %2426
        %v2428 = vsel %vm724, %v2419, 0.0
        %2429 = vadd.xlane.f32.xlu0 %v2428
        %v2430 = vpop.xlane.xlu0 %2429
        %v2431 = vsel %vm724, %v2421, 0.0
        %2432 = vadd.xlane.f32.xlu0 %v2431
        %v2433 = vpop.xlane.xlu0 %2432
        %v2434 = vrcp.pop %v2424
        %v2435 = vrcp.pop %v2427
        %v2436 = vrcp.pop %v2430
        %v2437 = vrcp.pop %v2433
        %v2438 = vmul.f32 %v2415, %v2434
        %v2439 = vmul.f32 %v2417, %v2435
        %v2440 = vmul.f32 %v2419, %v2436
        %v2441 = vmul.f32 %v2421, %v2437
        %2442 = vrot.lane.b32.xlu0 %v1920, 120
        %v2443 = vpop.permute.xlu0 %2442
        %v2446 = vsel %vm724, %v2438, 0
        %2448 = vmatprep.subr.mxu0 0.0
        %2449 = vmatpush1.msra.mxu0 0.0
        %2450 = vmatprep.subr.mxu0 0.0
        %2451 = vmatpush1.msra.mxu0 0.0
        %2452 = vmatprep.subr.mxu0 0.0
        %2453 = vmatpush1.msra.mxu0 0.0
        %2454 = vmatprep.subr.mxu0 0.0
        %2455 = vmatpush1.msra.mxu0 0.0
        %2456 = vmatprep.subr.mxu0 0.0
        %2457 = vmatpush1.msra.mxu0 0.0
        %2458 = vmatprep.subr.mxu0 0.0
        %2459 = vmatpush1.msra.mxu0 0.0
        %2460 = vmatprep.subr.mxu0 0.0
        %2461 = vmatpush1.msra.mxu0 0.0
        %2462 = vmatprep.subr.mxu0 0.0
        %2463 = vmatpush1.msra.mxu0 0.0
        %2464 = vmatprep.subr.mxu0 0.0
        %2465 = vmatpush1.msra.mxu0 0.0
        %2466 = vmatprep.subr.mxu0 0.0
        %2467 = vmatpush1.msra.mxu0 0.0
        %2468 = vmatprep.subr.mxu0 0.0
        %2469 = vmatpush1.msra.mxu0 0.0
        %2470 = vmatprep.subr.mxu0 0.0
        %2471 = vmatpush1.msra.mxu0 0.0
        %2472 = vmatprep.subr.mxu0 0.0
        %2473 = vmatpush1.msra.mxu0 0.0
        %2474 = vmatprep.subr.mxu0 0.0
        %2475 = vmatpush1.msra.mxu0 0.0
        %2476 = vmatprep.subr.mxu0 0.0
        %2477 = vmatpush1.msra.mxu0 0.0
        %2478 = vmatprep.subr.mxu0 0.0
        %2479 = vmatpush1.msra.mxu0 %v2443
        %2480 = vmatprep.subr.mxu0 0.0
        %2481 = vmatpush2.msra.mxu0 0.0
        %2482 = vmatprep.subr.mxu0 0.0
        %2483 = vmatpush2.msra.mxu0 0.0
        %2484 = vmatprep.subr.mxu0 0.0
        %2485 = vmatpush2.msra.mxu0 0.0
        %2486 = vmatprep.subr.mxu0 0.0
        %2487 = vmatpush2.msra.mxu0 0.0
        %2488 = vmatprep.subr.mxu0 0.0
        %2489 = vmatpush2.msra.mxu0 0.0
        %2490 = vmatprep.subr.mxu0 0.0
        %2491 = vmatpush2.msra.mxu0 0.0
        %2492 = vmatprep.subr.mxu0 0.0
        %2493 = vmatpush2.msra.mxu0 0.0
        %2494 = vmatprep.subr.mxu0 0.0
        %2495 = vmatpush2.msra.mxu0 0.0
        %2496 = vmatprep.subr.mxu0 0.0
        %2497 = vmatpush2.msra.mxu0 0.0
        %2498 = vmatprep.subr.mxu0 0.0
        %2499 = vmatpush2.msra.mxu0 0.0
        %2500 = vmatprep.subr.mxu0 0.0
        %2501 = vmatpush2.msra.mxu0 0.0
        %2502 = vmatprep.subr.mxu0 0.0
        %2503 = vmatpush2.msra.mxu0 0.0
        %2504 = vmatprep.subr.mxu0 0.0
        %2505 = vmatpush2.msra.mxu0 0.0
        %2506 = vmatprep.subr.mxu0 0.0
        %2507 = vmatpush2.msra.mxu0 0.0
        %2508 = vmatprep.subr.mxu0 0.0
        %2509 = vmatpush2.msra.mxu0 0.0
        %2510 = vmatprep.subr.mxu0 0.0
        %2511 = vmatpush2.msra.mxu0 0.0
        %2512 = vmatprep.mubr.f32.mxu0 0.0
        %2513 = vmatmul.mubr.f32.gmra.mxu0 %v2446
        %v2514 = vpop.f32.mrf.mxu0
        %v2515 = vadd.f32 0.0, %v2514
        %v2516 = vpop.f32.mrf.mxu0
        %2517 = vdwg.mxu0
        %2518 = vrot.lane.b32.xlu0 %v1975, 120
        %v2519 = vpop.permute.xlu0 %2518
        %v2522 = vsel %vm724, %v2439, 0
        %2524 = vmatprep.subr.mxu0 0.0
        %2525 = vmatpush1.msra.mxu0 0.0
        %2526 = vmatprep.subr.mxu0 0.0
        %2527 = vmatpush1.msra.mxu0 0.0
        %2528 = vmatprep.subr.mxu0 0.0
        %2529 = vmatpush1.msra.mxu0 0.0
        %2530 = vmatprep.subr.mxu0 0.0
        %2531 = vmatpush1.msra.mxu0 0.0
        %2532 = vmatprep.subr.mxu0 0.0
        %2533 = vmatpush1.msra.mxu0 0.0
        %2534 = vmatprep.subr.mxu0 0.0
        %2535 = vmatpush1.msra.mxu0 0.0
        %2536 = vmatprep.subr.mxu0 0.0
        %2537 = vmatpush1.msra.mxu0 0.0
        %2538 = vmatprep.subr.mxu0 0.0
        %2539 = vmatpush1.msra.mxu0 0.0
        %2540 = vmatprep.subr.mxu0 0.0
        %2541 = vmatpush1.msra.mxu0 0.0
        %2542 = vmatprep.subr.mxu0 0.0
        %2543 = vmatpush1.msra.mxu0 0.0
        %2544 = vmatprep.subr.mxu0 0.0
        %2545 = vmatpush1.msra.mxu0 0.0
        %2546 = vmatprep.subr.mxu0 0.0
        %2547 = vmatpush1.msra.mxu0 0.0
        %2548 = vmatprep.subr.mxu0 0.0
        %2549 = vmatpush1.msra.mxu0 0.0
        %2550 = vmatprep.subr.mxu0 0.0
        %2551 = vmatpush1.msra.mxu0 0.0
        %2552 = vmatprep.subr.mxu0 0.0
        %2553 = vmatpush1.msra.mxu0 0.0
        %2554 = vmatprep.subr.mxu0 0.0
        %2555 = vmatpush1.msra.mxu0 %v2519
        %2556 = vmatprep.subr.mxu0 0.0
        %2557 = vmatpush2.msra.mxu0 0.0
        %2558 = vmatprep.subr.mxu0 0.0
        %2559 = vmatpush2.msra.mxu0 0.0
        %2560 = vmatprep.subr.mxu0 0.0
        %2561 = vmatpush2.msra.mxu0 0.0
        %2562 = vmatprep.subr.mxu0 0.0
        %2563 = vmatpush2.msra.mxu0 0.0
        %2564 = vmatprep.subr.mxu0 0.0
        %2565 = vmatpush2.msra.mxu0 0.0
        %2566 = vmatprep.subr.mxu0 0.0
        %2567 = vmatpush2.msra.mxu0 0.0
        %2568 = vmatprep.subr.mxu0 0.0
        %2569 = vmatpush2.msra.mxu0 0.0
        %2570 = vmatprep.subr.mxu0 0.0
        %2571 = vmatpush2.msra.mxu0 0.0
        %2572 = vmatprep.subr.mxu0 0.0
        %2573 = vmatpush2.msra.mxu0 0.0
        %2574 = vmatprep.subr.mxu0 0.0
        %2575 = vmatpush2.msra.mxu0 0.0
        %2576 = vmatprep.subr.mxu0 0.0
        %2577 = vmatpush2.msra.mxu0 0.0
        %2578 = vmatprep.subr.mxu0 0.0
        %2579 = vmatpush2.msra.mxu0 0.0
        %2580 = vmatprep.subr.mxu0 0.0
        %2581 = vmatpush2.msra.mxu0 0.0
        %2582 = vmatprep.subr.mxu0 0.0
        %2583 = vmatpush2.msra.mxu0 0.0
        %2584 = vmatprep.subr.mxu0 0.0
        %2585 = vmatpush2.msra.mxu0 0.0
        %2586 = vmatprep.subr.mxu0 0.0
        %2587 = vmatpush2.msra.mxu0 0.0
        %2588 = vmatprep.mubr.f32.mxu0 0.0
        %2589 = vmatmul.mubr.f32.gmra.mxu0 %v2522
        %v2590 = vpop.f32.mrf.mxu0
        %v2591 = vadd.f32 0.0, %v2590
        %v2592 = vpop.f32.mrf.mxu0
        %2593 = vdwg.mxu0
        %2594 = vrot.lane.b32.xlu0 %v2030, 120
        %v2595 = vpop.permute.xlu0 %2594
        %v2598 = vsel %vm724, %v2440, 0
        %2600 = vmatprep.subr.mxu0 0.0
        %2601 = vmatpush1.msra.mxu0 0.0
        %2602 = vmatprep.subr.mxu0 0.0
        %2603 = vmatpush1.msra.mxu0 0.0
        %2604 = vmatprep.subr.mxu0 0.0
        %2605 = vmatpush1.msra.mxu0 0.0
        %2606 = vmatprep.subr.mxu0 0.0
        %2607 = vmatpush1.msra.mxu0 0.0
        %2608 = vmatprep.subr.mxu0 0.0
        %2609 = vmatpush1.msra.mxu0 0.0
        %2610 = vmatprep.subr.mxu0 0.0
        %2611 = vmatpush1.msra.mxu0 0.0
        %2612 = vmatprep.subr.mxu0 0.0
        %2613 = vmatpush1.msra.mxu0 0.0
        %2614 = vmatprep.subr.mxu0 0.0
        %2615 = vmatpush1.msra.mxu0 0.0
        %2616 = vmatprep.subr.mxu0 0.0
        %2617 = vmatpush1.msra.mxu0 0.0
        %2618 = vmatprep.subr.mxu0 0.0
        %2619 = vmatpush1.msra.mxu0 0.0
        %2620 = vmatprep.subr.mxu0 0.0
        %2621 = vmatpush1.msra.mxu0 0.0
        %2622 = vmatprep.subr.mxu0 0.0
        %2623 = vmatpush1.msra.mxu0 0.0
        %2624 = vmatprep.subr.mxu0 0.0
        %2625 = vmatpush1.msra.mxu0 0.0
        %2626 = vmatprep.subr.mxu0 0.0
        %2627 = vmatpush1.msra.mxu0 0.0
        %2628 = vmatprep.subr.mxu0 0.0
        %2629 = vmatpush1.msra.mxu0 0.0
        %2630 = vmatprep.subr.mxu0 0.0
        %2631 = vmatpush1.msra.mxu0 %v2595
        %2632 = vmatprep.subr.mxu0 0.0
        %2633 = vmatpush2.msra.mxu0 0.0
        %2634 = vmatprep.subr.mxu0 0.0
        %2635 = vmatpush2.msra.mxu0 0.0
        %2636 = vmatprep.subr.mxu0 0.0
        %2637 = vmatpush2.msra.mxu0 0.0
        %2638 = vmatprep.subr.mxu0 0.0
        %2639 = vmatpush2.msra.mxu0 0.0
        %2640 = vmatprep.subr.mxu0 0.0
        %2641 = vmatpush2.msra.mxu0 0.0
        %2642 = vmatprep.subr.mxu0 0.0
        %2643 = vmatpush2.msra.mxu0 0.0
        %2644 = vmatprep.subr.mxu0 0.0
        %2645 = vmatpush2.msra.mxu0 0.0
        %2646 = vmatprep.subr.mxu0 0.0
        %2647 = vmatpush2.msra.mxu0 0.0
        %2648 = vmatprep.subr.mxu0 0.0
        %2649 = vmatpush2.msra.mxu0 0.0
        %2650 = vmatprep.subr.mxu0 0.0
        %2651 = vmatpush2.msra.mxu0 0.0
        %2652 = vmatprep.subr.mxu0 0.0
        %2653 = vmatpush2.msra.mxu0 0.0
        %2654 = vmatprep.subr.mxu0 0.0
        %2655 = vmatpush2.msra.mxu0 0.0
        %2656 = vmatprep.subr.mxu0 0.0
        %2657 = vmatpush2.msra.mxu0 0.0
        %2658 = vmatprep.subr.mxu0 0.0
        %2659 = vmatpush2.msra.mxu0 0.0
        %2660 = vmatprep.subr.mxu0 0.0
        %2661 = vmatpush2.msra.mxu0 0.0
        %2662 = vmatprep.subr.mxu0 0.0
        %2663 = vmatpush2.msra.mxu0 0.0
        %2664 = vmatprep.mubr.f32.mxu0 0.0
        %2665 = vmatmul.mubr.f32.gmra.mxu0 %v2598
        %v2666 = vpop.f32.mrf.mxu0
        %v2667 = vadd.f32 0.0, %v2666
        %v2668 = vpop.f32.mrf.mxu0
        %2669 = vdwg.mxu0
        %2670 = vrot.lane.b32.xlu0 %v2085, 120
        %v2671 = vpop.permute.xlu0 %2670
        %v2674 = vsel %vm724, %v2441, 0
        %2676 = vmatprep.subr.mxu0 0.0
        %2677 = vmatpush1.msra.mxu0 0.0
        %2678 = vmatprep.subr.mxu0 0.0
        %2679 = vmatpush1.msra.mxu0 0.0
        %2680 = vmatprep.subr.mxu0 0.0
        %2681 = vmatpush1.msra.mxu0 0.0
        %2682 = vmatprep.subr.mxu0 0.0
        %2683 = vmatpush1.msra.mxu0 0.0
        %2684 = vmatprep.subr.mxu0 0.0
        %2685 = vmatpush1.msra.mxu0 0.0
        %2686 = vmatprep.subr.mxu0 0.0
        %2687 = vmatpush1.msra.mxu0 0.0
        %2688 = vmatprep.subr.mxu0 0.0
        %2689 = vmatpush1.msra.mxu0 0.0
        %2690 = vmatprep.subr.mxu0 0.0
        %2691 = vmatpush1.msra.mxu0 0.0
        %2692 = vmatprep.subr.mxu0 0.0
        %2693 = vmatpush1.msra.mxu0 0.0
        %2694 = vmatprep.subr.mxu0 0.0
        %2695 = vmatpush1.msra.mxu0 0.0
        %2696 = vmatprep.subr.mxu0 0.0
        %2697 = vmatpush1.msra.mxu0 0.0
        %2698 = vmatprep.subr.mxu0 0.0
        %2699 = vmatpush1.msra.mxu0 0.0
        %2700 = vmatprep.subr.mxu0 0.0
        %2701 = vmatpush1.msra.mxu0 0.0
        %2702 = vmatprep.subr.mxu0 0.0
        %2703 = vmatpush1.msra.mxu0 0.0
        %2704 = vmatprep.subr.mxu0 0.0
        %2705 = vmatpush1.msra.mxu0 0.0
        %2706 = vmatprep.subr.mxu0 0.0
        %2707 = vmatpush1.msra.mxu0 %v2671
        %2708 = vmatprep.subr.mxu0 0.0
        %2709 = vmatpush2.msra.mxu0 0.0
        %2710 = vmatprep.subr.mxu0 0.0
        %2711 = vmatpush2.msra.mxu0 0.0
        %2712 = vmatprep.subr.mxu0 0.0
        %2713 = vmatpush2.msra.mxu0 0.0
        %2714 = vmatprep.subr.mxu0 0.0
        %2715 = vmatpush2.msra.mxu0 0.0
        %2716 = vmatprep.subr.mxu0 0.0
        %2717 = vmatpush2.msra.mxu0 0.0
        %2718 = vmatprep.subr.mxu0 0.0
        %2719 = vmatpush2.msra.mxu0 0.0
        %2720 = vmatprep.subr.mxu0 0.0
        %2721 = vmatpush2.msra.mxu0 0.0
        %2722 = vmatprep.subr.mxu0 0.0
        %2723 = vmatpush2.msra.mxu0 0.0
        %2724 = vmatprep.subr.mxu0 0.0
        %2725 = vmatpush2.msra.mxu0 0.0
        %2726 = vmatprep.subr.mxu0 0.0
        %2727 = vmatpush2.msra.mxu0 0.0
        %2728 = vmatprep.subr.mxu0 0.0
        %2729 = vmatpush2.msra.mxu0 0.0
        %2730 = vmatprep.subr.mxu0 0.0
        %2731 = vmatpush2.msra.mxu0 0.0
        %2732 = vmatprep.subr.mxu0 0.0
        %2733 = vmatpush2.msra.mxu0 0.0
        %2734 = vmatprep.subr.mxu0 0.0
        %2735 = vmatpush2.msra.mxu0 0.0
        %2736 = vmatprep.subr.mxu0 0.0
        %2737 = vmatpush2.msra.mxu0 0.0
        %2738 = vmatprep.subr.mxu0 0.0
        %2739 = vmatpush2.msra.mxu0 0.0
        %2740 = vmatprep.mubr.f32.mxu0 0.0
        %2741 = vmatmul.mubr.f32.gmra.mxu0 %v2674
        %v2742 = vpop.f32.mrf.mxu0
        %v2743 = vadd.f32 0.0, %v2742
        %v2744 = vpop.f32.mrf.mxu0
        %2745 = vdwg.mxu0
        %v2747 = vsel %vm724, %v2515, 0
        %v2750 = vsel %vm1385, %v1635, 0
        %2752 = vmatprep.subr.bf16.mxu0 0
        %2753 = vmatpush1.bf16.msra.mxu0 0
        %2754 = vmatprep.subr.bf16.mxu0 0
        %2755 = vmatpush1.bf16.msra.mxu0 0
        %2756 = vmatprep.subr.bf16.mxu0 0
        %2757 = vmatpush1.bf16.msra.mxu0 0
        %2758 = vmatprep.subr.bf16.mxu0 0
        %2759 = vmatpush1.bf16.msra.mxu0 0
        %2760 = vmatprep.subr.bf16.mxu0 0
        %2761 = vmatpush1.bf16.msra.mxu0 0
        %2762 = vmatprep.subr.bf16.mxu0 0
        %2763 = vmatpush1.bf16.msra.mxu0 0
        %2764 = vmatprep.subr.bf16.mxu0 0
        %2765 = vmatpush1.bf16.msra.mxu0 0
        %2766 = vmatprep.subr.bf16.mxu0 0
        %2767 = vmatpush1.bf16.msra.mxu0 %v2750
        %2768 = vmatprep.subr.bf16.mxu0 0
        %2769 = vmatpush2.bf16.msra.mxu0 0
        %2770 = vmatprep.subr.bf16.mxu0 0
        %2771 = vmatpush2.bf16.msra.mxu0 0
        %2772 = vmatprep.subr.bf16.mxu0 0
        %2773 = vmatpush2.bf16.msra.mxu0 0
        %2774 = vmatprep.subr.bf16.mxu0 0
        %2775 = vmatpush2.bf16.msra.mxu0 0
        %2776 = vmatprep.subr.bf16.mxu0 0
        %2777 = vmatpush2.bf16.msra.mxu0 0
        %2778 = vmatprep.subr.bf16.mxu0 0
        %2779 = vmatpush2.bf16.msra.mxu0 0
        %2780 = vmatprep.subr.bf16.mxu0 0
        %2781 = vmatpush2.bf16.msra.mxu0 0
        %2782 = vmatprep.subr.bf16.mxu0 0
        %2783 = vmatpush2.bf16.msra.mxu0 0
        %2784 = vmatprep.mubr.f32.mxu0 0.0
        %2785 = vmatmul.mubr.f32.gmra.mxu0 %v2747
        %v2786 = vpop.f32.mrf.mxu0
        %v2787 = vadd.f32 0.0, %v2786
        %v2788 = vpop.f32.mrf.mxu0
        %2789 = vdwg.mxu0
        %v2791 = vsel %vm724, %v2591, 0
        %v2794 = vsel %vm1385, %v1636, 0
        %2796 = vmatprep.subr.bf16.mxu0 0
        %2797 = vmatpush1.bf16.msra.mxu0 0
        %2798 = vmatprep.subr.bf16.mxu0 0
        %2799 = vmatpush1.bf16.msra.mxu0 0
        %2800 = vmatprep.subr.bf16.mxu0 0
        %2801 = vmatpush1.bf16.msra.mxu0 0
        %2802 = vmatprep.subr.bf16.mxu0 0
        %2803 = vmatpush1.bf16.msra.mxu0 0
        %2804 = vmatprep.subr.bf16.mxu0 0
        %2805 = vmatpush1.bf16.msra.mxu0 0
        %2806 = vmatprep.subr.bf16.mxu0 0
        %2807 = vmatpush1.bf16.msra.mxu0 0
        %2808 = vmatprep.subr.bf16.mxu0 0
        %2809 = vmatpush1.bf16.msra.mxu0 0
        %2810 = vmatprep.subr.bf16.mxu0 0
        %2811 = vmatpush1.bf16.msra.mxu0 %v2794
        %2812 = vmatprep.subr.bf16.mxu0 0
        %2813 = vmatpush2.bf16.msra.mxu0 0
        %2814 = vmatprep.subr.bf16.mxu0 0
        %2815 = vmatpush2.bf16.msra.mxu0 0
        %2816 = vmatprep.subr.bf16.mxu0 0
        %2817 = vmatpush2.bf16.msra.mxu0 0
        %2818 = vmatprep.subr.bf16.mxu0 0
        %2819 = vmatpush2.bf16.msra.mxu0 0
        %2820 = vmatprep.subr.bf16.mxu0 0
        %2821 = vmatpush2.bf16.msra.mxu0 0
        %2822 = vmatprep.subr.bf16.mxu0 0
        %2823 = vmatpush2.bf16.msra.mxu0 0
        %2824 = vmatprep.subr.bf16.mxu0 0
        %2825 = vmatpush2.bf16.msra.mxu0 0
        %2826 = vmatprep.subr.bf16.mxu0 0
        %2827 = vmatpush2.bf16.msra.mxu0 0
        %2828 = vmatprep.mubr.f32.mxu0 0.0
        %2829 = vmatmul.mubr.f32.gmra.mxu0 %v2791
        %v2830 = vpop.f32.mrf.mxu0
        %v2831 = vadd.f32 0.0, %v2830
        %v2832 = vpop.f32.mrf.mxu0
        %2833 = vdwg.mxu0
        %v2835 = vsel %vm724, %v2667, 0
        %v2838 = vsel %vm1385, %v1637, 0
        %2840 = vmatprep.subr.bf16.mxu0 0
        %2841 = vmatpush1.bf16.msra.mxu0 0
        %2842 = vmatprep.subr.bf16.mxu0 0
        %2843 = vmatpush1.bf16.msra.mxu0 0
        %2844 = vmatprep.subr.bf16.mxu0 0
        %2845 = vmatpush1.bf16.msra.mxu0 0
        %2846 = vmatprep.subr.bf16.mxu0 0
        %2847 = vmatpush1.bf16.msra.mxu0 0
        %2848 = vmatprep.subr.bf16.mxu0 0
        %2849 = vmatpush1.bf16.msra.mxu0 0
        %2850 = vmatprep.subr.bf16.mxu0 0
        %2851 = vmatpush1.bf16.msra.mxu0 0
        %2852 = vmatprep.subr.bf16.mxu0 0
        %2853 = vmatpush1.bf16.msra.mxu0 0
        %2854 = vmatprep.subr.bf16.mxu0 0
        %2855 = vmatpush1.bf16.msra.mxu0 %v2838
        %2856 = vmatprep.subr.bf16.mxu0 0
        %2857 = vmatpush2.bf16.msra.mxu0 0
        %2858 = vmatprep.subr.bf16.mxu0 0
        %2859 = vmatpush2.bf16.msra.mxu0 0
        %2860 = vmatprep.subr.bf16.mxu0 0
        %2861 = vmatpush2.bf16.msra.mxu0 0
        %2862 = vmatprep.subr.bf16.mxu0 0
        %2863 = vmatpush2.bf16.msra.mxu0 0
        %2864 = vmatprep.subr.bf16.mxu0 0
        %2865 = vmatpush2.bf16.msra.mxu0 0
        %2866 = vmatprep.subr.bf16.mxu0 0
        %2867 = vmatpush2.bf16.msra.mxu0 0
        %2868 = vmatprep.subr.bf16.mxu0 0
        %2869 = vmatpush2.bf16.msra.mxu0 0
        %2870 = vmatprep.subr.bf16.mxu0 0
        %2871 = vmatpush2.bf16.msra.mxu0 0
        %2872 = vmatprep.mubr.f32.mxu0 0.0
        %2873 = vmatmul.mubr.f32.gmra.mxu0 %v2835
        %v2874 = vpop.f32.mrf.mxu0
        %v2875 = vadd.f32 0.0, %v2874
        %v2876 = vpop.f32.mrf.mxu0
        %2877 = vdwg.mxu0
        %v2879 = vsel %vm724, %v2743, 0
        %v2882 = vsel %vm1385, %v1638, 0
        %2884 = vmatprep.subr.bf16.mxu0 0
        %2885 = vmatpush1.bf16.msra.mxu0 0
        %2886 = vmatprep.subr.bf16.mxu0 0
        %2887 = vmatpush1.bf16.msra.mxu0 0
        %2888 = vmatprep.subr.bf16.mxu0 0
        %2889 = vmatpush1.bf16.msra.mxu0 0
        %2890 = vmatprep.subr.bf16.mxu0 0
        %2891 = vmatpush1.bf16.msra.mxu0 0
        %2892 = vmatprep.subr.bf16.mxu0 0
        %2893 = vmatpush1.bf16.msra.mxu0 0
        %2894 = vmatprep.subr.bf16.mxu0 0
        %2895 = vmatpush1.bf16.msra.mxu0 0
        %2896 = vmatprep.subr.bf16.mxu0 0
        %2897 = vmatpush1.bf16.msra.mxu0 0
        %2898 = vmatprep.subr.bf16.mxu0 0
        %2899 = vmatpush1.bf16.msra.mxu0 %v2882
        %2900 = vmatprep.subr.bf16.mxu0 0
        %2901 = vmatpush2.bf16.msra.mxu0 0
        %2902 = vmatprep.subr.bf16.mxu0 0
        %2903 = vmatpush2.bf16.msra.mxu0 0
        %2904 = vmatprep.subr.bf16.mxu0 0
        %2905 = vmatpush2.bf16.msra.mxu0 0
        %2906 = vmatprep.subr.bf16.mxu0 0
        %2907 = vmatpush2.bf16.msra.mxu0 0
        %2908 = vmatprep.subr.bf16.mxu0 0
        %2909 = vmatpush2.bf16.msra.mxu0 0
        %2910 = vmatprep.subr.bf16.mxu0 0
        %2911 = vmatpush2.bf16.msra.mxu0 0
        %2912 = vmatprep.subr.bf16.mxu0 0
        %2913 = vmatpush2.bf16.msra.mxu0 0
        %2914 = vmatprep.subr.bf16.mxu0 0
        %2915 = vmatpush2.bf16.msra.mxu0 0
        %2916 = vmatprep.mubr.f32.mxu0 0.0
        %2917 = vmatmul.mubr.f32.gmra.mxu0 %v2879
        %v2918 = vpop.f32.mrf.mxu0
        %v2919 = vadd.f32 0.0, %v2918
        %v2920 = vpop.f32.mrf.mxu0
        %2921 = vdwg.mxu0
        %v2922 = vsel %vm517, %v2787, 0.0
        %v2923 = vsel %vm517, %v2831, 0.0
        %v2924 = vadd.f32 %v2922, %v2923
        %v2925 = vsel %vm517, %v2875, 0.0
        %v2926 = vadd.f32 %v2924, %v2925
        %v2927 = vsel %vm517, %v2919, 0.0
        %v2928 = vadd.f32 %v2926, %v2927
        %v2929 = vlaneseq
        %v2930 = vshrl.u32 %v2929, 7
        %v2931 = vsub.s32 0, %v2930
        %v2932 = vrot.slane %v1639, %v2931
        %v2933 = vadd.f32 %v2928, %v2932
        %v2934 = vadd.f32 %v1598, %v2933
        %v2935 = vld [vmem:[%s12 + $0x4] sm:$0x1]
        %v2936 = vld [vmem:[%s12 + $0x5] sm:$0x1]
        %v2937 = vsel %vm517, %v2934, 0.0
        %2938 = vadd.xlane.f32.xlu0 %v2937
        %v2939 = vpop.xlane.xlu0 %2938
        %v2940 = vmul.f32 %v2939, %v1578
        %v2941 = vsub.f32 %v2934, %v2940
        %v2942 = vmul.f32 %v2941, %v2941
        %v2943 = vsel %vm517, %v2942, 0.0
        %2944 = vadd.xlane.f32.xlu0 %v2943
        %v2945 = vpop.xlane.xlu0 %2944
        %v2946 = vmul.f32 %v2945, %v1578
        %v2947 = vadd.f32 %v2946, 1e-05
        %v2948 = vrsqrt.pop %v2947
        %v2949 = vmul.f32 %v2941, %v2948
        %v2950 = vlaneseq
        %v2951 = vshrl.u32 %v2950, 7
        %v2952 = vsub.s32 0, %v2951
        %v2953 = vrot.slane %v2935, %v2952
        %v2954 = vmul.f32 %v2949, %v2953
        %v2955 = vlaneseq
        %v2956 = vshrl.u32 %v2955, 7
        %v2957 = vsub.s32 0, %v2956
        %v2958 = vrot.slane %v2936, %v2957
        %v2959 = vadd.f32 %v2954, %v2958
        %v2960 = vld [vmem:[%s9] sm:$0xf]
        %v2961 = vld [vmem:[%s9 + $0x4] sm:$0xf]
        %v2962 = vld [vmem:[%s9 + $0x8] sm:$0xf]
        %v2963 = vld [vmem:[%s9 + $0xc] sm:$0xf]
        %v2964 = vld [vmem:[%s10] sm:$0x1]
        %v2966 = vlaneseq
        %v2967 = vshrl.u32 %v2966, 7
        %v2968 = vsub.s32 0, %v2967
        %v2969 = vrot.slane %v2964, %v2968
        %v2975 = vunpack.c.l.b16 %v2960
        %v2976 = vunpack.c.l.b16 %v2961
        %v2977 = vunpack.c.l.b16 %v2962
        %v2978 = vunpack.c.l.b16 %v2963
        %v2979 = vpack.c.b16 %v2976, %v2975
        %v2980 = vpack.c.b16 %v2978, %v2977
        %v2984 = vsel %vm517, %v2959, 0
        %2986 = vmatprep.subr.bf16.mxu0 0
        %2987 = vmatpush1.bf16.msra.mxu0 0
        %2988 = vmatprep.subr.bf16.mxu0 0
        %2989 = vmatpush1.bf16.msra.mxu0 0
        %2990 = vmatprep.subr.bf16.mxu0 0
        %2991 = vmatpush1.bf16.msra.mxu0 0
        %2992 = vmatprep.subr.bf16.mxu0 0
        %2993 = vmatpush1.bf16.msra.mxu0 0
        %2994 = vmatprep.subr.bf16.mxu0 0
        %2995 = vmatpush1.bf16.msra.mxu0 0
        %2996 = vmatprep.subr.bf16.mxu0 0
        %2997 = vmatpush1.bf16.msra.mxu0 0
        %2998 = vmatprep.subr.bf16.mxu0 0
        %2999 = vmatpush1.bf16.msra.mxu0 %v2980
        %3000 = vmatprep.subr.bf16.mxu0 0
        %3001 = vmatpush1.bf16.msra.mxu0 %v2979
        %3002 = vmatprep.subr.bf16.mxu0 0
        %3003 = vmatpush2.bf16.msra.mxu0 0
        %3004 = vmatprep.subr.bf16.mxu0 0
        %3005 = vmatpush2.bf16.msra.mxu0 0
        %3006 = vmatprep.subr.bf16.mxu0 0
        %3007 = vmatpush2.bf16.msra.mxu0 0
        %3008 = vmatprep.subr.bf16.mxu0 0
        %3009 = vmatpush2.bf16.msra.mxu0 0
        %3010 = vmatprep.subr.bf16.mxu0 0
        %3011 = vmatpush2.bf16.msra.mxu0 0
        %3012 = vmatprep.subr.bf16.mxu0 0
        %3013 = vmatpush2.bf16.msra.mxu0 0
        %3014 = vmatprep.subr.bf16.mxu0 0
        %3015 = vmatpush2.bf16.msra.mxu0 0
        %3016 = vmatprep.subr.bf16.mxu0 0
        %3017 = vmatpush2.bf16.msra.mxu0 0
        %3018 = vmatprep.mubr.f32.mxu0 0.0
        %3019 = vmatmul.mubr.f32.gmra.mxu0 %v2984
        %v3020 = vpop.f32.mrf.mxu0
        %v3021 = vadd.f32 %v2969, %v3020
        %v3022 = vpop.f32.mrf.mxu0
        %3023 = vdwg.mxu0
        %v3024 = vmax.f32 %v3021, 0.0
        %v3025 = vld [vmem:[%s11] sm:$0xf]
        %v3026 = vld [vmem:[%s11 + $0x4] sm:$0xf]
        %v3027 = vld [vmem:[%s11 + $0x8] sm:$0xf]
        %v3028 = vld [vmem:[%s11 + $0xc] sm:$0xf]
        %v3029 = vld [vmem:[%s11 + $0x10] sm:$0xf]
        %v3030 = vld [vmem:[%s11 + $0x14] sm:$0xf]
        %v3031 = vld [vmem:[%s11 + $0x18] sm:$0xf]
        %v3032 = vld [vmem:[%s11 + $0x1c] sm:$0xf]
        %v3033 = vld [vmem:[%s12 + $0x6] sm:$0x1]
        %v3034 = vlaneseq
        %v3035 = vshrl.u32 %v3034, 7
        %v3036 = vsub.s32 0, %v3035
        %v3037 = vrot.slane %v3033, %v3036
        %v3046 = vunpack.c.l.b16 %v3025
        %v3047 = vunpack.c.l.b16 %v3026
        %v3048 = vunpack.c.l.b16 %v3027
        %v3049 = vunpack.c.l.b16 %v3028
        %v3050 = vunpack.c.l.b16 %v3029
        %v3051 = vunpack.c.l.b16 %v3030
        %v3052 = vunpack.c.l.b16 %v3031
        %v3053 = vunpack.c.l.b16 %v3032
        %v3054 = vpack.c.b16 %v3047, %v3046
        %v3055 = vpack.c.b16 %v3049, %v3048
        %v3056 = vpack.c.b16 %v3051, %v3050
        %v3057 = vpack.c.b16 %v3053, %v3052
        %vm3062 = vcmask 523264
        %v3064 = vsel %vm3062, %v3024, 0
        %3066 = vmatprep.subr.bf16.mxu0 0
        %3067 = vmatpush1.bf16.msra.mxu0 0
        %3068 = vmatprep.subr.bf16.mxu0 0
        %3069 = vmatpush1.bf16.msra.mxu0 0
        %3070 = vmatprep.subr.bf16.mxu0 0
        %3071 = vmatpush1.bf16.msra.mxu0 0
        %3072 = vmatprep.subr.bf16.mxu0 0
        %3073 = vmatpush1.bf16.msra.mxu0 0
        %3074 = vmatprep.subr.bf16.mxu0 0
        %3075 = vmatpush1.bf16.msra.mxu0 %v3057
        %3076 = vmatprep.subr.bf16.mxu0 0
        %3077 = vmatpush1.bf16.msra.mxu0 %v3056
        %3078 = vmatprep.subr.bf16.mxu0 0
        %3079 = vmatpush1.bf16.msra.mxu0 %v3055
        %3080 = vmatprep.subr.bf16.mxu0 0
        %3081 = vmatpush1.bf16.msra.mxu0 %v3054
        %3082 = vmatprep.subr.bf16.mxu0 0
        %3083 = vmatpush2.bf16.msra.mxu0 0
        %3084 = vmatprep.subr.bf16.mxu0 0
        %3085 = vmatpush2.bf16.msra.mxu0 0
        %3086 = vmatprep.subr.bf16.mxu0 0
        %3087 = vmatpush2.bf16.msra.mxu0 0
        %3088 = vmatprep.subr.bf16.mxu0 0
        %3089 = vmatpush2.bf16.msra.mxu0 0
        %3090 = vmatprep.subr.bf16.mxu0 0
        %3091 = vmatpush2.bf16.msra.mxu0 0
        %3092 = vmatprep.subr.bf16.mxu0 0
        %3093 = vmatpush2.bf16.msra.mxu0 0
        %3094 = vmatprep.subr.bf16.mxu0 0
        %3095 = vmatpush2.bf16.msra.mxu0 0
        %3096 = vmatprep.subr.bf16.mxu0 0
        %3097 = vmatpush2.bf16.msra.mxu0 0
        %3098 = vmatprep.mubr.f32.mxu0 0.0
        %3099 = vmatmul.mubr.f32.gmra.mxu0 %v3064
        %v3100 = vpop.f32.mrf.mxu0
        %v3101 = vadd.f32 %v3037, %v3100
        %v3102 = vpop.f32.mrf.mxu0
        %3103 = vdwg.mxu0
        %v3104 = vadd.f32 %v2959, %v3101
        %v3105 = vld [vmem:[%s12 + $0x7] sm:$0x1]
        %v3106 = vld [vmem:[%s12 + $0x8] sm:$0x1]
        %v3107 = vsel %vm517, %v3104, 0.0
        %3108 = vadd.xlane.f32.xlu0 %v3107
        %v3109 = vpop.xlane.xlu0 %3108
        %v3110 = vmul.f32 %v3109, %v1578
        %v3111 = vsub.f32 %v3104, %v3110
        %v3112 = vmul.f32 %v3111, %v3111
        %v3113 = vsel %vm517, %v3112, 0.0
        %3114 = vadd.xlane.f32.xlu0 %v3113
        %v3115 = vpop.xlane.xlu0 %3114
        %v3116 = vmul.f32 %v3115, %v1578
        %v3117 = vadd.f32 %v3116, 1e-05
        %v3118 = vrsqrt.pop %v3117
        %v3119 = vmul.f32 %v3111, %v3118
        %v3120 = vlaneseq
        %v3121 = vshrl.u32 %v3120, 7
        %v3122 = vsub.s32 0, %v3121
        %v3123 = vrot.slane %v3105, %v3122
        %v3124 = vmul.f32 %v3119, %v3123
        %v3125 = vlaneseq
        %v3126 = vshrl.u32 %v3125, 7
        %v3127 = vsub.s32 0, %v3126
        %v3128 = vrot.slane %v3106, %v3127
        %v3129 = vadd.f32 %v3124, %v3128
        %3130 = vst.msk [vmem:[%s444] sm:$0xff] %vm517, %v3129
        %s3131 = sand.u32 %s318, 1
        %s3132 = scalar_lea.sflag [#allocation3], %s3131
        %s3133 = sand.u32 %s318, 1
        %s3134 = smul.addr %s3133, 8
        %s3135 = scalar_lea.vmem [#allocation2], %s3134
        // Predicated region
        $region73: #{tpu_custom_call.1} parent=71 // pred_check
          %p3136 = pneg %p328
        $region74: #{tpu_custom_call.1} parent=71 // pred_check_branch
          %3138 = sbr.rel (%p3136) target = $region76
        $region75: #{tpu_custom_call.1} parent=71 // pred_region
          %s3140 = ssub.s32 128, 128
          %3141 = vsyncadd %s3132, %s3140
          %s3142 = smul.addr %s27, 128
          %s3143 = scalar_lea.hbm %s13, %s3142
          %s3145 = sshll.u32 %s3135, 4
          %s3146 = int_to_ptr.vmem [resolvable:$true] %s3145
          %3148 = dma.vmem_to_hbm [thread:$0]  %s3146, 128, %s3143, %s3132
        $region76: #{tpu_custom_call.1} parent=71 // pred_fallthru
          _
      $region72: #{tpu_custom_call.1} parent=5 // pred_fallthru
        _
      %p3149 = scmp.le.s32.totalorder 2, %s22
      // Predicated region
      $region77: #{tpu_custom_call.1} parent=5 // pred_check
        %p3150 = pneg %p3149
      $region78: #{tpu_custom_call.1} parent=5 // pred_check_branch
        %3152 = sbr.rel (%p3150) target = $region80
      $region79: #{tpu_custom_call.1} parent=5 // pred_region
        %s3153 = ssub.s32 %s22, 2
        // Predicated region
        $region81: #{tpu_custom_call.1} parent=79 // pred_check
          %p3154 = pneg %p334
        $region82: #{tpu_custom_call.1} parent=79 // pred_check_branch
          %3156 = sbr.rel (%p3154) target = $region84
        $region83: #{tpu_custom_call.1} parent=79 // pred_region
          %s3157 = sand.u32 %s319, 1
          %s3158 = scalar_lea.sflag [#allocation3], %s3157
          %s3159 = sand.u32 %s319, 1
          %s3160 = smul.addr %s3159, 8
          %s3161 = scalar_lea.vmem [#allocation2], %s3160
          %3162 = dma.done %s3158, 128
        $region84: #{tpu_custom_call.1} parent=79 // pred_fallthru
          _
      $region80: #{tpu_custom_call.1} parent=5 // pred_fallthru
        _
    $region6: #{tpu_custom_call.1} parent=1 // loop_footer
      %s26 = sadd.s32 1, %s22
    $region7: #{tpu_custom_call.1} parent=1 // loop_footer_branch
      %21 = sbr.rel target = $region3
    $region8: #{tpu_custom_call.1} parent=1 // loop_exit
      _
    %3163 = vsyncpa [#allocation3], 1
    %s3164 = scalar_lea.sflag [#allocation3], 1
    %3165 = vsyncpa %s3164, 1

</llo_original>
